<compile_context>
chip_gen: v7x
topology: tpu7x:2x2x1
jax: 0.10.0
libtpu: 0.0.40
codegen_flags: <defaults>
</compile_context>

<pallas_src>
import jax
import jax.numpy as jnp
from jax.experimental import pallas as pl
from jax.experimental.pallas import tpu as pltpu


# ----------------------------------------------------------------------------
# Fused kernel: BiLSTM recurrence + linear projection + linear-chain CRF
# ----------------------------------------------------------------------------
def bilstm_crf_kernel(x_ref, mask_ref, lab_ref,
                      wih_ref, bih_ref, whh_ref,
                      wlin_ref, blin_ref,
                      trans_ref, trans_t_ref, start_ref, end_ref, sel_ref,
                      llh_ref, bp_ref, last_ref,
                      gx_scr, hid_scr, emit_scr):
    # x_ref:    (T*Bb, D)  bf16, time-major rows (row = t*Bb + b)
    # mask_ref: (T*Bb, 1)  f32    lab_ref: (T*Bb, 1) i32
    # wih_ref:  (D, 8H) bf16 [fwd i,f,g,o | bwd i,f,g,o]   bih_ref: (1, 8H) f32
    # whh_ref:  (2H, 4H) bf16 [fwd rows ; bwd rows]
    # wlin_ref: (2H, L) bf16   blin_ref: (1, L) f32
    # trans:    (L, L) [from -> to], trans_t = trans.T, start/end: (1, L) f32
    # sel_ref:  (Bb, T*Bb) f32 selector for the per-batch time reduction
    # outputs:  llh (Bb,1) f32, bp (T*Bb, L) i32, last (Bb,1) i32
    # scratch:  gx (T*Bb, 8H) f32, hid (T*Bb, 2H) f32, emit (T*Bb, L) f32
    TB, L = bp_ref.shape
    Bb = llh_ref.shape[0]
    T = TB // Bb
    H = whh_ref.shape[0] // 2
    G = 4 * H

    mask = mask_ref[...]                                       # (T*Bb, 1)

    # ---- hoisted input projection: ONE bf16 MXU pass for both directions ----
    gx_scr[...] = (jnp.dot(x_ref[...], wih_ref[...],
                           preferred_element_type=jnp.float32)
                   + bih_ref[...])                             # (T*Bb, 8H) f32

    whh = whh_ref[...]                                         # (2H, 4H) bf16
    # block-diagonal selector: rows < Bb use the fwd weight rows, rest use bwd
    diag = ((jax.lax.broadcasted_iota(jnp.int32, (2 * Bb, 2 * H), 0) < Bb)
            == (jax.lax.broadcasted_iota(jnp.int32, (2 * Bb, 2 * H), 1) < H))

    # ---- fused bidirectional LSTM: single serial loop of length T -----------
    def lstm_step(t, carry):
        h, c = carry                                           # (2Bb, H) f32
        rf = pl.multiple_of(t * Bb, Bb)                        # fwd time t
        rb = pl.multiple_of((T - 1 - t) * Bb, Bb)              # bwd time T-1-t
        g = jnp.concatenate(
            [gx_scr[pl.ds(rf, Bb), 0:G], gx_scr[pl.ds(rb, Bb), G:2 * G]],
            axis=0)                                            # (2Bb, 4H)
        m = jnp.concatenate(
            [mask_ref[pl.ds(rf, Bb), :], mask_ref[pl.ds(rb, Bb), :]],
            axis=0) > 0.0                                      # (2Bb, 1)
        # block-diag hidden so ONE matmul drives both directions' gates
        hbd = jnp.where(diag, jnp.concatenate([h, h], axis=1), 0.0)
        gates = g + jnp.dot(hbd.astype(jnp.bfloat16), whh,
                            preferred_element_type=jnp.float32)    # (2Bb, 4H)
        i_g = jax.nn.sigmoid(gates[:, 0:H])
        f_g = jax.nn.sigmoid(gates[:, H:2 * H])
        g_g = jnp.tanh(gates[:, 2 * H:3 * H])
        o_g = jax.nn.sigmoid(gates[:, 3 * H:4 * H])
        c_new = f_g * c + i_g * g_g
        h_new = o_g * jnp.tanh(c_new)
        # pack_padded_sequence semantics: state advances only on valid steps
        h = jnp.where(m, h_new, h)
        c = jnp.where(m, c_new, c)
        # per-direction hidden -> (T*Bb, 2H) scratch (padded rows masked later)
        hid_scr[pl.ds(rf, Bb), 0:H] = h_new[:Bb]
        hid_scr[pl.ds(rb, Bb), H:2 * H] = h_new[Bb:]
        return h, c

    zero = jnp.zeros((2 * Bb, H), jnp.float32)
    _ = jax.lax.fori_loop(0, T, lstm_step, (zero, zero), unroll=True)

    # ---- emission projection: ONE (T*Bb,2H)@(2H,L) pass, then `out *= mask` -
    emit = (jnp.dot(hid_scr[...].astype(jnp.bfloat16), wlin_ref[...],
                    preferred_element_type=jnp.float32)
            + blin_ref[...]) * mask                            # (T*Bb, L) f32
    emit_scr[...] = emit

    # ---- CRF gold path score: fully vectorized, no serial loop --------------
    lab = lab_ref[...]                                         # (T*Bb, 1) i32
    lane = jax.lax.broadcasted_iota(jnp.int32, (TB, L), 1)
    row = jax.lax.broadcasted_iota(jnp.int32, (TB, 1), 0)
    oh = (lane == lab).astype(jnp.float32)                     # (T*Bb, L)
    is_t0 = (row < Bb).astype(jnp.float32)                     # first-step rows
    start = start_ref[...]
    end = end_ref[...]

    # trans[y_{t-1}, :] for every row, via one matmul + a Bb-row shift
    rows_from = jnp.dot(oh, trans_ref[...],
                        preferred_element_type=jnp.float32)    # (T*Bb, L)
    rows_prev = jnp.concatenate(
        [jnp.zeros((Bb, L), jnp.float32), rows_from[:TB - Bb]], axis=0)
    # last-valid-position indicator: mask_t - mask_{t+1}
    mask_next = jnp.concatenate(
        [mask[Bb:], jnp.zeros((Bb, 1), jnp.float32)], axis=0)
    is_last = mask - mask_next
    gold_terms = oh * (emit + rows_prev * mask + start * is_t0 + end * is_last)
    gold = jnp.sum(jnp.dot(sel_ref[...], gold_terms,
                           preferred_element_type=jnp.float32),
                   axis=-1, keepdims=True)                     # (Bb, 1)

    # ---- CRF recursion: forward log-sum-exp + Viterbi backpointers ----------
    trans_t = trans_t_ref[...]                                 # (L_to, L_from)
    lane_b = jax.lax.broadcasted_iota(jnp.int32, (Bb, L), 1)
    idx3 = jax.lax.broadcasted_iota(jnp.int32, (Bb, L, L), 2)

    def crf_step(t, carry):
        alpha, vit = carry                                     # (Bb, L) f32
        r = pl.multiple_of(t * Bb, Bb)
        e = emit_scr[pl.ds(r, Bb), :]                          # (Bb, L)
        m = mask_ref[pl.ds(r, Bb), :] > 0.0                    # (Bb, 1)
        sa = alpha[:, None, :] + trans_t[None, :, :]           # (Bb, to, from)
        ma = jnp.max(sa, axis=-1)
        lse = ma + jnp.log(jnp.sum(jnp.exp(sa - ma[:, :, None]), axis=-1))
        sv = vit[:, None, :] + trans_t[None, :, :]
        mv = jnp.max(sv, axis=-1)
        # first-occurrence argmax over the previous-label axis (backpointers)
        bp_ref[pl.ds(r, Bb), :] = jnp.min(
            jnp.where(sv == mv[:, :, None], idx3, jnp.int32(L)), axis=-1)
        alpha = jnp.where(m, lse + e, alpha)
        vit = jnp.where(m, mv + e, vit)
        return alpha, vit

    init = start + emit_scr[0:Bb, :]                           # (Bb, L)
    bp_ref[0:Bb, :] = jnp.zeros((Bb, L), jnp.int32)
    alpha, vit = jax.lax.fori_loop(1, T, crf_step, (init, init), unroll=True)

    # ---- finalize: per-sequence log-likelihood + best last label ------------
    alpha_f = alpha + end
    mx = jnp.max(alpha_f, axis=-1, keepdims=True)
    log_z = mx + jnp.log(jnp.sum(jnp.exp(alpha_f - mx), axis=-1, keepdims=True))
    llh_ref[...] = gold - log_z

    vit_f = vit + end
    mxv = jnp.max(vit_f, axis=-1, keepdims=True)
    last_ref[...] = jnp.min(jnp.where(vit_f == mxv, lane_b, jnp.int32(L)),
                            axis=-1, keepdims=True)


# ----------------------------------------------------------------------------
# Wrapper: layout prep (plain XLA) + gridded pallas_call
# ----------------------------------------------------------------------------
def bilstm_crf_forward(params, input_embed, mask, labels, batch_tile=None):
    """input_embed: (B,T,D) f32, mask: (B,T) {0,1}, labels: (B,T) int."""
    B, T, D = input_embed.shape
    L = params["trans"].shape[0]
    H = params["w_hh_f"].shape[0]
    Bb = B if batch_tile is None else min(batch_tile, B)
    assert B % Bb == 0, "batch tile must divide batch"
    nb = B // Bb

    # pre-tiled, time-major layout: (nb, T*Bb, feat), row = t*Bb + b_local
    def retile(a, feat, dtype):
        a = a.reshape(nb, Bb, T, feat).transpose(0, 2, 1, 3)
        return a.reshape(nb, T * Bb, feat).astype(dtype)

    x_t = retile(input_embed, D, jnp.bfloat16)
    m_t = retile(mask[..., None], 1, jnp.float32)
    l_t = retile(labels[..., None], 1, jnp.int32)

    # fused / stacked weights: bf16 for MXU operands, f32 biases & CRF params
    wih8 = jnp.concatenate([params["w_ih_f"], params["w_ih_b"]],
                           axis=1).astype(jnp.bfloat16)         # (D, 8H)
    bih8 = jnp.concatenate([params["b_f"], params["b_b"]],
                           axis=1).astype(jnp.float32)          # (1, 8H)
    whh2 = jnp.concatenate([params["w_hh_f"], params["w_hh_b"]],
                           axis=0).astype(jnp.bfloat16)         # (2H, 4H)
    wlin = params["w_lin"].astype(jnp.bfloat16)                 # (2H, L)
    blin = params["b_lin"].astype(jnp.float32)
    trans = params["trans"].astype(jnp.float32)
    start = params["start"].astype(jnp.float32)
    end = params["end"].astype(jnp.float32)
    # per-batch-row selector for the gold-score time reduction
    sel = (jnp.arange(T * Bb, dtype=jnp.int32)[None, :] % Bb
           == jnp.arange(Bb, dtype=jnp.int32)[:, None]).astype(jnp.float32)

    tiled = lambda shape: pl.BlockSpec((None,) + shape, lambda i: (i, 0, 0))
    full = lambda shape: pl.BlockSpec(shape, lambda i: (0,) * len(shape))

    llh, bp, last = pl.pallas_call(
        bilstm_crf_kernel,
        grid=(nb,),
        out_shape=(jax.ShapeDtypeStruct((nb, Bb, 1), jnp.float32),
                   jax.ShapeDtypeStruct((nb, T * Bb, L), jnp.int32),
                   jax.ShapeDtypeStruct((nb, Bb, 1), jnp.int32)),
        in_specs=[tiled((T * Bb, D)),           # x (bf16, time-major tile)
                  tiled((T * Bb, 1)),           # mask
                  tiled((T * Bb, 1)),           # labels
                  full((D, 8 * H)),             # W_ih (both directions)
                  full((1, 8 * H)),             # bias (both directions)
                  full((2 * H, 4 * H)),         # W_hh (stacked directions)
                  full((2 * H, L)),             # W_lin
                  full((1, L)),                 # b_lin
                  full((L, L)),                 # transitions
                  full((L, L)),                 # transitions^T
                  full((1, L)),                 # start transitions
                  full((1, L)),                 # end transitions
                  full((Bb, T * Bb))],          # gold-score selector
        out_specs=(tiled((Bb, 1)),
                   tiled((T * Bb, L)),
                   tiled((Bb, 1))),
        scratch_shapes=[pltpu.VMEM((T * Bb, 8 * H), jnp.float32),   # gx
                        pltpu.VMEM((T * Bb, 2 * H), jnp.float32),   # hidden
                        pltpu.VMEM((T * Bb, L), jnp.float32)],      # emissions
        compiler_params=pltpu.CompilerParams(
            dimension_semantics=("parallel",),          # megacore on v7x
            vmem_limit_bytes=48 * 1024 * 1024),         # safe on v5e/v6e/v7x
    )(x_t, m_t, l_t, wih8, bih8, whh2, wlin, blin,
      trans, trans.T, start, end, sel)

    llh = llh.reshape(B, 1)
    last = last.reshape(B, 1)
    bp = bp.reshape(nb, T, Bb, L).transpose(1, 0, 2, 3).reshape(T, B, L)
    loss = -jnp.mean(llh[:, 0])            # -torch.mean(score, dim=0)
    return loss, llh, bp, last


def viterbi_backtrack(bp, last, mask):
    """Host-side CRF backtrack + length trimming -> List[List[int]]."""
    bp = jax.device_get(bp)               # (T, B, L)
    last = jax.device_get(last)[:, 0]     # (B,)
    mask = jax.device_get(mask)           # (B, T)
    T, B, _ = bp.shape
    lengths = mask.sum(axis=1).astype(int)
    paths = []
    for b in range(B):
        idx = int(last[b])
        seq = [idx]
        for t in range(T - 2, -1, -1):
            if mask[b, t + 1] > 0:
                idx = int(bp[t + 1, b, idx])
            seq.append(idx)
        seq = seq[::-1]
        paths.append(seq[: int(lengths[b])])
    return paths


# ----------------------------------------------------------------------------
# main
# ----------------------------------------------------------------------------
if __name__ == "__main__":
    key = jax.random.PRNGKey(0)
    B, T = 2, 8
    word_emb_dim, char_emb_dim, pos_emb_dim = 16, 8, 4
    D = word_emb_dim + char_emb_dim + 2 * pos_emb_dim        # 32 = LSTM input dim
    rnn_hidden_size = 32
    H = rnn_hidden_size // 2                                 # 16 per direction
    L = 8                                                    # num_labels

    keys = jax.random.split(key, 16)
    s = 0.1
    params = {
        "w_ih_f": s * jax.random.normal(keys[0], (D, 4 * H), jnp.float32),
        "w_hh_f": s * jax.random.normal(keys[1], (H, 4 * H), jnp.float32),
        "b_f":    s * jax.random.normal(keys[2], (1, 4 * H), jnp.float32),
        "w_ih_b": s * jax.random.normal(keys[3], (D, 4 * H), jnp.float32),
        "w_hh_b": s * jax.random.normal(keys[4], (H, 4 * H), jnp.float32),
        "b_b":    s * jax.random.normal(keys[5], (1, 4 * H), jnp.float32),
        "w_lin":  s * jax.random.normal(keys[6], (2 * H, L), jnp.float32),
        "b_lin":  s * jax.random.normal(keys[7], (1, L), jnp.float32),
        "trans":  s * jax.random.normal(keys[8], (L, L), jnp.float32),
        "start":  s * jax.random.normal(keys[9], (1, L), jnp.float32),
        "end":    s * jax.random.normal(keys[10], (1, L), jnp.float32),
    }

    input_embed = jax.random.normal(keys[11], (B, T, D), jnp.float32)
    lengths = jnp.array([T, 5], dtype=jnp.int32)
    mask = (jnp.arange(T)[None, :] < lengths[:, None]).astype(jnp.float32)  # (B,T)
    labels = jax.random.randint(keys[12], (B, T), 0, L, dtype=jnp.int32)
    labels = labels * mask.astype(jnp.int32)   # contract: padded labels forced to 0

    loss, llh, bp, last = bilstm_crf_forward(params, input_embed, mask, labels)
    jax.block_until_ready((loss, llh, bp, last))
    predicted_labels = viterbi_backtrack(bp, last, mask)

    assert jnp.isfinite(loss), "loss is not finite"
    assert len(predicted_labels) == B
    assert [len(p) for p in predicted_labels] == [int(x) for x in lengths]
    print("KERNEL_OK")
</pallas_src>

<mosaic_0001>
module attributes {stable_mosaic.version = 11 : i64} {
  func.func @bilstm_crf_kernel(%arg0: i32, %arg1: memref<1x16x32xbf16, #tpu.memory_space<vmem>>, %arg2: memref<1x16x1xf32, #tpu.memory_space<vmem>>, %arg3: memref<1x16x1xi32, #tpu.memory_space<vmem>>, %arg4: memref<32x128xbf16, #tpu.memory_space<vmem>>, %arg5: memref<1x128xf32, #tpu.memory_space<vmem>>, %arg6: memref<32x64xbf16, #tpu.memory_space<vmem>>, %arg7: memref<32x8xbf16, #tpu.memory_space<vmem>>, %arg8: memref<1x8xf32, #tpu.memory_space<vmem>>, %arg9: memref<8x8xf32, #tpu.memory_space<vmem>>, %arg10: memref<8x8xf32, #tpu.memory_space<vmem>>, %arg11: memref<1x8xf32, #tpu.memory_space<vmem>>, %arg12: memref<1x8xf32, #tpu.memory_space<vmem>>, %arg13: memref<2x16xf32, #tpu.memory_space<vmem>>, %arg14: memref<1x2x1xf32, #tpu.memory_space<vmem>>, %arg15: memref<1x16x8xi32, #tpu.memory_space<vmem>>, %arg16: memref<1x2x1xi32, #tpu.memory_space<vmem>>, %arg17: memref<16x128xf32, #tpu.memory_space<vmem>>, %arg18: memref<16x32xf32, #tpu.memory_space<vmem>>, %arg19: memref<16x8xf32, #tpu.memory_space<vmem>>) attributes {dimension_semantics = [#tpu.dimension_semantics<parallel>], iteration_bounds = array<i64: 1>, scalar_prefetch = 0 : i64, scratch_operands = 3 : i64, tpu.core_type = #tpu.core_type<tc>, window_params = [{transform_indices = @transform_0, window_bounds = array<i64: 1, 16, 32>}, {transform_indices = @transform_1, window_bounds = array<i64: 1, 16, 1>}, {transform_indices = @transform_2, window_bounds = array<i64: 1, 16, 1>}, {pipeline_mode = #tpu.pipeline_mode<synchronous>, transform_indices = @transform_3, window_bounds = array<i64: 32, 128>}, {pipeline_mode = #tpu.pipeline_mode<synchronous>, transform_indices = @transform_4, window_bounds = array<i64: 1, 128>}, {pipeline_mode = #tpu.pipeline_mode<synchronous>, transform_indices = @transform_5, window_bounds = array<i64: 32, 64>}, {pipeline_mode = #tpu.pipeline_mode<synchronous>, transform_indices = @transform_6, window_bounds = array<i64: 32, 8>}, {pipeline_mode = #tpu.pipeline_mode<synchronous>, transform_indices = @transform_7, window_bounds = array<i64: 1, 8>}, {pipeline_mode = #tpu.pipeline_mode<synchronous>, transform_indices = @transform_8, window_bounds = array<i64: 8, 8>}, {pipeline_mode = #tpu.pipeline_mode<synchronous>, transform_indices = @transform_9, window_bounds = array<i64: 8, 8>}, {pipeline_mode = #tpu.pipeline_mode<synchronous>, transform_indices = @transform_10, window_bounds = array<i64: 1, 8>}, {pipeline_mode = #tpu.pipeline_mode<synchronous>, transform_indices = @transform_11, window_bounds = array<i64: 1, 8>}, {pipeline_mode = #tpu.pipeline_mode<synchronous>, transform_indices = @transform_12, window_bounds = array<i64: 2, 16>}, {transform_indices = @transform_13, window_bounds = array<i64: 1, 2, 1>}, {transform_indices = @transform_14, window_bounds = array<i64: 1, 16, 8>}, {transform_indices = @transform_15, window_bounds = array<i64: 1, 2, 1>}]} {
    %c0 = arith.constant 0 : index
    %c0_0 = arith.constant 0 : index
    %c0_1 = arith.constant 0 : index
    %0 = vector.load %arg2[%c0, %c0_0, %c0_1] : memref<1x16x1xf32, #tpu.memory_space<vmem>>, vector<1x16x1xf32>
    %1 = vector.shape_cast %0 : vector<1x16x1xf32> to vector<16x1xf32>
    %c0_2 = arith.constant 0 : index
    %c0_3 = arith.constant 0 : index
    %c0_4 = arith.constant 0 : index
    %2 = vector.load %arg1[%c0_2, %c0_3, %c0_4] : memref<1x16x32xbf16, #tpu.memory_space<vmem>>, vector<1x16x32xbf16>
    %3 = vector.shape_cast %2 : vector<1x16x32xbf16> to vector<16x32xbf16>
    %c0_5 = arith.constant 0 : index
    %c0_6 = arith.constant 0 : index
    %4 = vector.load %arg4[%c0_5, %c0_6] : memref<32x128xbf16, #tpu.memory_space<vmem>>, vector<32x128xbf16>
    %cst = arith.constant dense<0.000000e+00> : vector<16x128xf32>
    %5 = tpu.matmul %3, %4, %cst {dimension_numbers = #tpu.dot_dimension_numbers<[1], [0], [0], [1], [0, 0, 1, 1], [], []>} : vector<16x32xbf16>, vector<32x128xbf16>, vector<16x128xf32> -> vector<16x128xf32>
    %c0_7 = arith.constant 0 : index
    %c0_8 = arith.constant 0 : index
    %6 = vector.load %arg5[%c0_7, %c0_8] : memref<1x128xf32, #tpu.memory_space<vmem>>, vector<1x128xf32>
    %7 = vector.broadcast %6 : vector<1x128xf32> to vector<16x128xf32>
    %8 = arith.addf %5, %7 : vector<16x128xf32>
    %c0_9 = arith.constant 0 : index
    %c0_10 = arith.constant 0 : index
    %9 = vector.load %arg17[%c0_9, %c0_10] : memref<16x128xf32, #tpu.memory_space<vmem>>, vector<16x128xf32>
    tpu.vector_store %arg17[%c0_9, %c0_10], %8 {strides = array<i32>} : memref<16x128xf32, #tpu.memory_space<vmem>>, vector<16x128xf32>,
    %c0_11 = arith.constant 0 : index
    %c0_12 = arith.constant 0 : index
    %10 = vector.load %arg6[%c0_11, %c0_12] : memref<32x64xbf16, #tpu.memory_space<vmem>>, vector<32x64xbf16>
    %11 = tpu.iota {dimensions = array<i32: 0>} : vector<4x32xi32>
    %c2_i32 = arith.constant 2 : i32
    %12 = vector.broadcast %c2_i32 : i32 to vector<4x32xi32>
    %13 = arith.cmpi slt, %11, %12 : vector<4x32xi32>
    %14 = tpu.iota {dimensions = array<i32: 1>} : vector<4x32xi32>
    %c16_i32 = arith.constant 16 : i32
    %15 = vector.broadcast %c16_i32 : i32 to vector<4x32xi32>
    %16 = arith.cmpi slt, %14, %15 : vector<4x32xi32>
    %17 = arith.xori %13, %16 : vector<4x32xi1>
    %cst_13 = arith.constant dense<true> : vector<4x32xi1>
    %18 = arith.xori %17, %cst_13 : vector<4x32xi1>
    %cst_14 = arith.constant 0.000000e+00 : f32
    %19 = vector.broadcast %cst_14 : f32 to vector<4x16xf32>
    %c0_i32 = arith.constant 0 : i32
    %c2_i32_15 = arith.constant 2 : i32
    %20 = arith.muli %c0_i32, %c2_i32_15 : i32
    %21 = tpu.assume_multiple %20, 2 : i32
    %c7_i32 = arith.constant 7 : i32
    %22 = arith.subi %c7_i32, %c0_i32 : i32
    %c2_i32_16 = arith.constant 2 : i32
    %23 = arith.muli %22, %c2_i32_16 : i32
    %24 = tpu.assume_multiple %23, 2 : i32
    %25 = arith.index_cast %21 : i32 to index
    %c0_17 = arith.constant 0 : index
    %26 = vector.load %arg17[%25, %c0_17] : memref<16x128xf32, #tpu.memory_space<vmem>>, vector<2x64xf32>
    %27 = arith.index_cast %24 : i32 to index
    %c64 = arith.constant 64 : index
    %28 = vector.load %arg17[%27, %c64] : memref<16x128xf32, #tpu.memory_space<vmem>>, vector<2x64xf32>
    %29 = tpu.concatenate %26, %28 in 0 : vector<2x64xf32>, vector<2x64xf32> -> vector<4x64xf32>
    %c0_18 = arith.constant 0 : index
    %30 = arith.index_cast %21 : i32 to index
    %c0_19 = arith.constant 0 : index
    %31 = vector.load %arg2[%c0_18, %30, %c0_19] : memref<1x16x1xf32, #tpu.memory_space<vmem>>, vector<1x2x1xf32>
    %32 = vector.shape_cast %31 : vector<1x2x1xf32> to vector<2x1xf32>
    %c0_20 = arith.constant 0 : index
    %33 = arith.index_cast %24 : i32 to index
    %c0_21 = arith.constant 0 : index
    %34 = vector.load %arg2[%c0_20, %33, %c0_21] : memref<1x16x1xf32, #tpu.memory_space<vmem>>, vector<1x2x1xf32>
    %35 = vector.shape_cast %34 : vector<1x2x1xf32> to vector<2x1xf32>
    %36 = tpu.concatenate %32, %35 in 0 : vector<2x1xf32>, vector<2x1xf32> -> vector<4x1xf32>
    %cst_22 = arith.constant 0.000000e+00 : f32
    %37 = vector.broadcast %cst_22 : f32 to vector<4x1xf32>
    %38 = arith.cmpf ogt, %36, %37 : vector<4x1xf32>
    %39 = tpu.concatenate %19, %19 in 1 : vector<4x16xf32>, vector<4x16xf32> -> vector<4x32xf32>
    %cst_23 = arith.constant 0.000000e+00 : f32
    %40 = vector.broadcast %cst_23 : f32 to vector<4x32xf32>
    %41 = arith.select %18, %39, %40 : vector<4x32xi1>, vector<4x32xf32>
    %42 = arith.truncf %41 : vector<4x32xf32> to vector<4x32xbf16>
    %cst_24 = arith.constant dense<0.000000e+00> : vector<4x64xf32>
    %43 = tpu.matmul %42, %10, %cst_24 {dimension_numbers = #tpu.dot_dimension_numbers<[1], [0], [0], [1], [0, 0, 1, 1], [], []>} : vector<4x32xbf16>, vector<32x64xbf16>, vector<4x64xf32> -> vector<4x64xf32>
    %44 = arith.addf %29, %43 : vector<4x64xf32>
    %45 = vector.extract_strided_slice %44 {offsets = [0, 0], sizes = [4, 16], strides = [1, 1]} : vector<4x64xf32> to vector<4x16xf32>
    %46 = arith.negf %45 : vector<4x16xf32>
    %47 = math.exp %46 : vector<4x16xf32>
    %cst_25 = arith.constant 1.000000e+00 : f32
    %48 = vector.broadcast %cst_25 : f32 to vector<4x16xf32>
    %49 = arith.addf %48, %47 : vector<4x16xf32>
    %50 = arith.divf %48, %49 : vector<4x16xf32>
    %51 = vector.extract_strided_slice %44 {offsets = [0, 16], sizes = [4, 16], strides = [1, 1]} : vector<4x64xf32> to vector<4x16xf32>
    %52 = arith.negf %51 : vector<4x16xf32>
    %53 = math.exp %52 : vector<4x16xf32>
    %cst_26 = arith.constant 1.000000e+00 : f32
    %54 = vector.broadcast %cst_26 : f32 to vector<4x16xf32>
    %55 = arith.addf %54, %53 : vector<4x16xf32>
    %56 = arith.divf %54, %55 : vector<4x16xf32>
    %57 = vector.extract_strided_slice %44 {offsets = [0, 32], sizes = [4, 16], strides = [1, 1]} : vector<4x64xf32> to vector<4x16xf32>
    %58 = math.tanh %57 : vector<4x16xf32>
    %59 = vector.extract_strided_slice %44 {offsets = [0, 48], sizes = [4, 16], strides = [1, 1]} : vector<4x64xf32> to vector<4x16xf32>
    %60 = arith.negf %59 : vector<4x16xf32>
    %61 = math.exp %60 : vector<4x16xf32>
    %cst_27 = arith.constant 1.000000e+00 : f32
    %62 = vector.broadcast %cst_27 : f32 to vector<4x16xf32>
    %63 = arith.addf %62, %61 : vector<4x16xf32>
    %64 = arith.divf %62, %63 : vector<4x16xf32>
    %65 = arith.mulf %56, %19 : vector<4x16xf32>
    %66 = arith.mulf %50, %58 : vector<4x16xf32>
    %67 = arith.addf %65, %66 : vector<4x16xf32>
    %68 = math.tanh %67 : vector<4x16xf32>
    %69 = arith.mulf %64, %68 : vector<4x16xf32>
    %70 = vector.shape_cast %38 : vector<4x1xi1> to vector<4x1xi1>
    %71 = vector.broadcast %70 : vector<4x1xi1> to vector<4x16xi1>
    %72 = arith.select %71, %69, %19 : vector<4x16xi1>, vector<4x16xf32>
    %73 = vector.shape_cast %38 : vector<4x1xi1> to vector<4x1xi1>
    %74 = vector.broadcast %73 : vector<4x1xi1> to vector<4x16xi1>
    %75 = arith.select %74, %67, %19 : vector<4x16xi1>, vector<4x16xf32>
    %76 = vector.extract_strided_slice %69 {offsets = [0, 0], sizes = [2, 16], strides = [1, 1]} : vector<4x16xf32> to vector<2x16xf32>
    %77 = arith.index_cast %21 : i32 to index
    %c0_28 = arith.constant 0 : index
    %78 = vector.load %arg18[%77, %c0_28] : memref<16x32xf32, #tpu.memory_space<vmem>>, vector<2x16xf32>
    tpu.vector_store %arg18[%77, %c0_28], %76 {strides = array<i32>} : memref<16x32xf32, #tpu.memory_space<vmem>>, vector<2x16xf32>,
    %79 = vector.extract_strided_slice %69 {offsets = [2, 0], sizes = [2, 16], strides = [1, 1]} : vector<4x16xf32> to vector<2x16xf32>
    %80 = arith.index_cast %24 : i32 to index
    %c16 = arith.constant 16 : index
    %81 = vector.load %arg18[%80, %c16] : memref<16x32xf32, #tpu.memory_space<vmem>>, vector<2x16xf32>
    tpu.vector_store %arg18[%80, %c16], %79 {strides = array<i32>} : memref<16x32xf32, #tpu.memory_space<vmem>>, vector<2x16xf32>,
    %c1_i32 = arith.constant 1 : i32
    %c2_i32_29 = arith.constant 2 : i32
    %82 = arith.muli %c1_i32, %c2_i32_29 : i32
    %83 = tpu.assume_multiple %82, 2 : i32
    %c7_i32_30 = arith.constant 7 : i32
    %84 = arith.subi %c7_i32_30, %c1_i32 : i32
    %c2_i32_31 = arith.constant 2 : i32
    %85 = arith.muli %84, %c2_i32_31 : i32
    %86 = tpu.assume_multiple %85, 2 : i32
    %87 = arith.index_cast %83 : i32 to index
    %c0_32 = arith.constant 0 : index
    %88 = vector.load %arg17[%87, %c0_32] : memref<16x128xf32, #tpu.memory_space<vmem>>, vector<2x64xf32>
    %89 = arith.index_cast %86 : i32 to index
    %c64_33 = arith.constant 64 : index
    %90 = vector.load %arg17[%89, %c64_33] : memref<16x128xf32, #tpu.memory_space<vmem>>, vector<2x64xf32>
    %91 = tpu.concatenate %88, %90 in 0 : vector<2x64xf32>, vector<2x64xf32> -> vector<4x64xf32>
    %c0_34 = arith.constant 0 : index
    %92 = arith.index_cast %83 : i32 to index
    %c0_35 = arith.constant 0 : index
    %93 = vector.load %arg2[%c0_34, %92, %c0_35] : memref<1x16x1xf32, #tpu.memory_space<vmem>>, vector<1x2x1xf32>
    %94 = vector.shape_cast %93 : vector<1x2x1xf32> to vector<2x1xf32>
    %c0_36 = arith.constant 0 : index
    %95 = arith.index_cast %86 : i32 to index
    %c0_37 = arith.constant 0 : index
    %96 = vector.load %arg2[%c0_36, %95, %c0_37] : memref<1x16x1xf32, #tpu.memory_space<vmem>>, vector<1x2x1xf32>
    %97 = vector.shape_cast %96 : vector<1x2x1xf32> to vector<2x1xf32>
    %98 = tpu.concatenate %94, %97 in 0 : vector<2x1xf32>, vector<2x1xf32> -> vector<4x1xf32>
    %cst_38 = arith.constant 0.000000e+00 : f32
    %99 = vector.broadcast %cst_38 : f32 to vector<4x1xf32>
    %100 = arith.cmpf ogt, %98, %99 : vector<4x1xf32>
    %101 = tpu.concatenate %72, %72 in 1 : vector<4x16xf32>, vector<4x16xf32> -> vector<4x32xf32>
    %cst_39 = arith.constant 0.000000e+00 : f32
    %102 = vector.broadcast %cst_39 : f32 to vector<4x32xf32>
    %103 = arith.select %18, %101, %102 : vector<4x32xi1>, vector<4x32xf32>
    %104 = arith.truncf %103 : vector<4x32xf32> to vector<4x32xbf16>
    %cst_40 = arith.constant dense<0.000000e+00> : vector<4x64xf32>
    %105 = tpu.matmul %104, %10, %cst_40 {dimension_numbers = #tpu.dot_dimension_numbers<[1], [0], [0], [1], [0, 0, 1, 1], [], []>} : vector<4x32xbf16>, vector<32x64xbf16>, vector<4x64xf32> -> vector<4x64xf32>
    %106 = arith.addf %91, %105 : vector<4x64xf32>
    %107 = vector.extract_strided_slice %106 {offsets = [0, 0], sizes = [4, 16], strides = [1, 1]} : vector<4x64xf32> to vector<4x16xf32>
    %108 = arith.negf %107 : vector<4x16xf32>
    %109 = math.exp %108 : vector<4x16xf32>
    %cst_41 = arith.constant 1.000000e+00 : f32
    %110 = vector.broadcast %cst_41 : f32 to vector<4x16xf32>
    %111 = arith.addf %110, %109 : vector<4x16xf32>
    %112 = arith.divf %110, %111 : vector<4x16xf32>
    %113 = vector.extract_strided_slice %106 {offsets = [0, 16], sizes = [4, 16], strides = [1, 1]} : vector<4x64xf32> to vector<4x16xf32>
    %114 = arith.negf %113 : vector<4x16xf32>
    %115 = math.exp %114 : vector<4x16xf32>
    %cst_42 = arith.constant 1.000000e+00 : f32
    %116 = vector.broadcast %cst_42 : f32 to vector<4x16xf32>
    %117 = arith.addf %116, %115 : vector<4x16xf32>
    %118 = arith.divf %116, %117 : vector<4x16xf32>
    %119 = vector.extract_strided_slice %106 {offsets = [0, 32], sizes = [4, 16], strides = [1, 1]} : vector<4x64xf32> to vector<4x16xf32>
    %120 = math.tanh %119 : vector<4x16xf32>
    %121 = vector.extract_strided_slice %106 {offsets = [0, 48], sizes = [4, 16], strides = [1, 1]} : vector<4x64xf32> to vector<4x16xf32>
    %122 = arith.negf %121 : vector<4x16xf32>
    %123 = math.exp %122 : vector<4x16xf32>
    %cst_43 = arith.constant 1.000000e+00 : f32
    %124 = vector.broadcast %cst_43 : f32 to vector<4x16xf32>
    %125 = arith.addf %124, %123 : vector<4x16xf32>
    %126 = arith.divf %124, %125 : vector<4x16xf32>
    %127 = arith.mulf %118, %75 : vector<4x16xf32>
    %128 = arith.mulf %112, %120 : vector<4x16xf32>
    %129 = arith.addf %127, %128 : vector<4x16xf32>
    %130 = math.tanh %129 : vector<4x16xf32>
    %131 = arith.mulf %126, %130 : vector<4x16xf32>
    %132 = vector.shape_cast %100 : vector<4x1xi1> to vector<4x1xi1>
    %133 = vector.broadcast %132 : vector<4x1xi1> to vector<4x16xi1>
    %134 = arith.select %133, %131, %72 : vector<4x16xi1>, vector<4x16xf32>
    %135 = vector.shape_cast %100 : vector<4x1xi1> to vector<4x1xi1>
    %136 = vector.broadcast %135 : vector<4x1xi1> to vector<4x16xi1>
    %137 = arith.select %136, %129, %75 : vector<4x16xi1>, vector<4x16xf32>
    %138 = vector.extract_strided_slice %131 {offsets = [0, 0], sizes = [2, 16], strides = [1, 1]} : vector<4x16xf32> to vector<2x16xf32>
    %139 = arith.index_cast %83 : i32 to index
    %c0_44 = arith.constant 0 : index
    %140 = vector.load %arg18[%139, %c0_44] : memref<16x32xf32, #tpu.memory_space<vmem>>, vector<2x16xf32>
    tpu.vector_store %arg18[%139, %c0_44], %138 {strides = array<i32>} : memref<16x32xf32, #tpu.memory_space<vmem>>, vector<2x16xf32>,
    %141 = vector.extract_strided_slice %131 {offsets = [2, 0], sizes = [2, 16], strides = [1, 1]} : vector<4x16xf32> to vector<2x16xf32>
    %142 = arith.index_cast %86 : i32 to index
    %c16_45 = arith.constant 16 : index
    %143 = vector.load %arg18[%142, %c16_45] : memref<16x32xf32, #tpu.memory_space<vmem>>, vector<2x16xf32>
    tpu.vector_store %arg18[%142, %c16_45], %141 {strides = array<i32>} : memref<16x32xf32, #tpu.memory_space<vmem>>, vector<2x16xf32>,
    %c2_i32_46 = arith.constant 2 : i32
    %c2_i32_47 = arith.constant 2 : i32
    %144 = arith.muli %c2_i32_46, %c2_i32_47 : i32
    %145 = tpu.assume_multiple %144, 2 : i32
    %c7_i32_48 = arith.constant 7 : i32
    %146 = arith.subi %c7_i32_48, %c2_i32_46 : i32
    %c2_i32_49 = arith.constant 2 : i32
    %147 = arith.muli %146, %c2_i32_49 : i32
    %148 = tpu.assume_multiple %147, 2 : i32
    %149 = arith.index_cast %145 : i32 to index
    %c0_50 = arith.constant 0 : index
    %150 = vector.load %arg17[%149, %c0_50] : memref<16x128xf32, #tpu.memory_space<vmem>>, vector<2x64xf32>
    %151 = arith.index_cast %148 : i32 to index
    %c64_51 = arith.constant 64 : index
    %152 = vector.load %arg17[%151, %c64_51] : memref<16x128xf32, #tpu.memory_space<vmem>>, vector<2x64xf32>
    %153 = tpu.concatenate %150, %152 in 0 : vector<2x64xf32>, vector<2x64xf32> -> vector<4x64xf32>
    %c0_52 = arith.constant 0 : index
    %154 = arith.index_cast %145 : i32 to index
    %c0_53 = arith.constant 0 : index
    %155 = vector.load %arg2[%c0_52, %154, %c0_53] : memref<1x16x1xf32, #tpu.memory_space<vmem>>, vector<1x2x1xf32>
    %156 = vector.shape_cast %155 : vector<1x2x1xf32> to vector<2x1xf32>
    %c0_54 = arith.constant 0 : index
    %157 = arith.index_cast %148 : i32 to index
    %c0_55 = arith.constant 0 : index
    %158 = vector.load %arg2[%c0_54, %157, %c0_55] : memref<1x16x1xf32, #tpu.memory_space<vmem>>, vector<1x2x1xf32>
    %159 = vector.shape_cast %158 : vector<1x2x1xf32> to vector<2x1xf32>
    %160 = tpu.concatenate %156, %159 in 0 : vector<2x1xf32>, vector<2x1xf32> -> vector<4x1xf32>
    %cst_56 = arith.constant 0.000000e+00 : f32
    %161 = vector.broadcast %cst_56 : f32 to vector<4x1xf32>
    %162 = arith.cmpf ogt, %160, %161 : vector<4x1xf32>
    %163 = tpu.concatenate %134, %134 in 1 : vector<4x16xf32>, vector<4x16xf32> -> vector<4x32xf32>
    %cst_57 = arith.constant 0.000000e+00 : f32
    %164 = vector.broadcast %cst_57 : f32 to vector<4x32xf32>
    %165 = arith.select %18, %163, %164 : vector<4x32xi1>, vector<4x32xf32>
    %166 = arith.truncf %165 : vector<4x32xf32> to vector<4x32xbf16>
    %cst_58 = arith.constant dense<0.000000e+00> : vector<4x64xf32>
    %167 = tpu.matmul %166, %10, %cst_58 {dimension_numbers = #tpu.dot_dimension_numbers<[1], [0], [0], [1], [0, 0, 1, 1], [], []>} : vector<4x32xbf16>, vector<32x64xbf16>, vector<4x64xf32> -> vector<4x64xf32>
    %168 = arith.addf %153, %167 : vector<4x64xf32>
    %169 = vector.extract_strided_slice %168 {offsets = [0, 0], sizes = [4, 16], strides = [1, 1]} : vector<4x64xf32> to vector<4x16xf32>
    %170 = arith.negf %169 : vector<4x16xf32>
    %171 = math.exp %170 : vector<4x16xf32>
    %cst_59 = arith.constant 1.000000e+00 : f32
    %172 = vector.broadcast %cst_59 : f32 to vector<4x16xf32>
    %173 = arith.addf %172, %171 : vector<4x16xf32>
    %174 = arith.divf %172, %173 : vector<4x16xf32>
    %175 = vector.extract_strided_slice %168 {offsets = [0, 16], sizes = [4, 16], strides = [1, 1]} : vector<4x64xf32> to vector<4x16xf32>
    %176 = arith.negf %175 : vector<4x16xf32>
    %177 = math.exp %176 : vector<4x16xf32>
    %cst_60 = arith.constant 1.000000e+00 : f32
    %178 = vector.broadcast %cst_60 : f32 to vector<4x16xf32>
    %179 = arith.addf %178, %177 : vector<4x16xf32>
    %180 = arith.divf %178, %179 : vector<4x16xf32>
    %181 = vector.extract_strided_slice %168 {offsets = [0, 32], sizes = [4, 16], strides = [1, 1]} : vector<4x64xf32> to vector<4x16xf32>
    %182 = math.tanh %181 : vector<4x16xf32>
    %183 = vector.extract_strided_slice %168 {offsets = [0, 48], sizes = [4, 16], strides = [1, 1]} : vector<4x64xf32> to vector<4x16xf32>
    %184 = arith.negf %183 : vector<4x16xf32>
    %185 = math.exp %184 : vector<4x16xf32>
    %cst_61 = arith.constant 1.000000e+00 : f32
    %186 = vector.broadcast %cst_61 : f32 to vector<4x16xf32>
    %187 = arith.addf %186, %185 : vector<4x16xf32>
    %188 = arith.divf %186, %187 : vector<4x16xf32>
    %189 = arith.mulf %180, %137 : vector<4x16xf32>
    %190 = arith.mulf %174, %182 : vector<4x16xf32>
    %191 = arith.addf %189, %190 : vector<4x16xf32>
    %192 = math.tanh %191 : vector<4x16xf32>
    %193 = arith.mulf %188, %192 : vector<4x16xf32>
    %194 = vector.shape_cast %162 : vector<4x1xi1> to vector<4x1xi1>
    %195 = vector.broadcast %194 : vector<4x1xi1> to vector<4x16xi1>
    %196 = arith.select %195, %193, %134 : vector<4x16xi1>, vector<4x16xf32>
    %197 = vector.shape_cast %162 : vector<4x1xi1> to vector<4x1xi1>
    %198 = vector.broadcast %197 : vector<4x1xi1> to vector<4x16xi1>
    %199 = arith.select %198, %191, %137 : vector<4x16xi1>, vector<4x16xf32>
    %200 = vector.extract_strided_slice %193 {offsets = [0, 0], sizes = [2, 16], strides = [1, 1]} : vector<4x16xf32> to vector<2x16xf32>
    %201 = arith.index_cast %145 : i32 to index
    %c0_62 = arith.constant 0 : index
    %202 = vector.load %arg18[%201, %c0_62] : memref<16x32xf32, #tpu.memory_space<vmem>>, vector<2x16xf32>
    tpu.vector_store %arg18[%201, %c0_62], %200 {strides = array<i32>} : memref<16x32xf32, #tpu.memory_space<vmem>>, vector<2x16xf32>,
    %203 = vector.extract_strided_slice %193 {offsets = [2, 0], sizes = [2, 16], strides = [1, 1]} : vector<4x16xf32> to vector<2x16xf32>
    %204 = arith.index_cast %148 : i32 to index
    %c16_63 = arith.constant 16 : index
    %205 = vector.load %arg18[%204, %c16_63] : memref<16x32xf32, #tpu.memory_space<vmem>>, vector<2x16xf32>
    tpu.vector_store %arg18[%204, %c16_63], %203 {strides = array<i32>} : memref<16x32xf32, #tpu.memory_space<vmem>>, vector<2x16xf32>,
    %c3_i32 = arith.constant 3 : i32
    %c2_i32_64 = arith.constant 2 : i32
    %206 = arith.muli %c3_i32, %c2_i32_64 : i32
    %207 = tpu.assume_multiple %206, 2 : i32
    %c7_i32_65 = arith.constant 7 : i32
    %208 = arith.subi %c7_i32_65, %c3_i32 : i32
    %c2_i32_66 = arith.constant 2 : i32
    %209 = arith.muli %208, %c2_i32_66 : i32
    %210 = tpu.assume_multiple %209, 2 : i32
    %211 = arith.index_cast %207 : i32 to index
    %c0_67 = arith.constant 0 : index
    %212 = vector.load %arg17[%211, %c0_67] : memref<16x128xf32, #tpu.memory_space<vmem>>, vector<2x64xf32>
    %213 = arith.index_cast %210 : i32 to index
    %c64_68 = arith.constant 64 : index
    %214 = vector.load %arg17[%213, %c64_68] : memref<16x128xf32, #tpu.memory_space<vmem>>, vector<2x64xf32>
    %215 = tpu.concatenate %212, %214 in 0 : vector<2x64xf32>, vector<2x64xf32> -> vector<4x64xf32>
    %c0_69 = arith.constant 0 : index
    %216 = arith.index_cast %207 : i32 to index
    %c0_70 = arith.constant 0 : index
    %217 = vector.load %arg2[%c0_69, %216, %c0_70] : memref<1x16x1xf32, #tpu.memory_space<vmem>>, vector<1x2x1xf32>
    %218 = vector.shape_cast %217 : vector<1x2x1xf32> to vector<2x1xf32>
    %c0_71 = arith.constant 0 : index
    %219 = arith.index_cast %210 : i32 to index
    %c0_72 = arith.constant 0 : index
    %220 = vector.load %arg2[%c0_71, %219, %c0_72] : memref<1x16x1xf32, #tpu.memory_space<vmem>>, vector<1x2x1xf32>
    %221 = vector.shape_cast %220 : vector<1x2x1xf32> to vector<2x1xf32>
    %222 = tpu.concatenate %218, %221 in 0 : vector<2x1xf32>, vector<2x1xf32> -> vector<4x1xf32>
    %cst_73 = arith.constant 0.000000e+00 : f32
    %223 = vector.broadcast %cst_73 : f32 to vector<4x1xf32>
    %224 = arith.cmpf ogt, %222, %223 : vector<4x1xf32>
    %225 = tpu.concatenate %196, %196 in 1 : vector<4x16xf32>, vector<4x16xf32> -> vector<4x32xf32>
    %cst_74 = arith.constant 0.000000e+00 : f32
    %226 = vector.broadcast %cst_74 : f32 to vector<4x32xf32>
    %227 = arith.select %18, %225, %226 : vector<4x32xi1>, vector<4x32xf32>
    %228 = arith.truncf %227 : vector<4x32xf32> to vector<4x32xbf16>
    %cst_75 = arith.constant dense<0.000000e+00> : vector<4x64xf32>
    %229 = tpu.matmul %228, %10, %cst_75 {dimension_numbers = #tpu.dot_dimension_numbers<[1], [0], [0], [1], [0, 0, 1, 1], [], []>} : vector<4x32xbf16>, vector<32x64xbf16>, vector<4x64xf32> -> vector<4x64xf32>
    %230 = arith.addf %215, %229 : vector<4x64xf32>
    %231 = vector.extract_strided_slice %230 {offsets = [0, 0], sizes = [4, 16], strides = [1, 1]} : vector<4x64xf32> to vector<4x16xf32>
    %232 = arith.negf %231 : vector<4x16xf32>
    %233 = math.exp %232 : vector<4x16xf32>
    %cst_76 = arith.constant 1.000000e+00 : f32
    %234 = vector.broadcast %cst_76 : f32 to vector<4x16xf32>
    %235 = arith.addf %234, %233 : vector<4x16xf32>
    %236 = arith.divf %234, %235 : vector<4x16xf32>
    %237 = vector.extract_strided_slice %230 {offsets = [0, 16], sizes = [4, 16], strides = [1, 1]} : vector<4x64xf32> to vector<4x16xf32>
    %238 = arith.negf %237 : vector<4x16xf32>
    %239 = math.exp %238 : vector<4x16xf32>
    %cst_77 = arith.constant 1.000000e+00 : f32
    %240 = vector.broadcast %cst_77 : f32 to vector<4x16xf32>
    %241 = arith.addf %240, %239 : vector<4x16xf32>
    %242 = arith.divf %240, %241 : vector<4x16xf32>
    %243 = vector.extract_strided_slice %230 {offsets = [0, 32], sizes = [4, 16], strides = [1, 1]} : vector<4x64xf32> to vector<4x16xf32>
    %244 = math.tanh %243 : vector<4x16xf32>
    %245 = vector.extract_strided_slice %230 {offsets = [0, 48], sizes = [4, 16], strides = [1, 1]} : vector<4x64xf32> to vector<4x16xf32>
    %246 = arith.negf %245 : vector<4x16xf32>
    %247 = math.exp %246 : vector<4x16xf32>
    %cst_78 = arith.constant 1.000000e+00 : f32
    %248 = vector.broadcast %cst_78 : f32 to vector<4x16xf32>
    %249 = arith.addf %248, %247 : vector<4x16xf32>
    %250 = arith.divf %248, %249 : vector<4x16xf32>
    %251 = arith.mulf %242, %199 : vector<4x16xf32>
    %252 = arith.mulf %236, %244 : vector<4x16xf32>
    %253 = arith.addf %251, %252 : vector<4x16xf32>
    %254 = math.tanh %253 : vector<4x16xf32>
    %255 = arith.mulf %250, %254 : vector<4x16xf32>
    %256 = vector.shape_cast %224 : vector<4x1xi1> to vector<4x1xi1>
    %257 = vector.broadcast %256 : vector<4x1xi1> to vector<4x16xi1>
    %258 = arith.select %257, %255, %196 : vector<4x16xi1>, vector<4x16xf32>
    %259 = vector.shape_cast %224 : vector<4x1xi1> to vector<4x1xi1>
    %260 = vector.broadcast %259 : vector<4x1xi1> to vector<4x16xi1>
    %261 = arith.select %260, %253, %199 : vector<4x16xi1>, vector<4x16xf32>
    %262 = vector.extract_strided_slice %255 {offsets = [0, 0], sizes = [2, 16], strides = [1, 1]} : vector<4x16xf32> to vector<2x16xf32>
    %263 = arith.index_cast %207 : i32 to index
    %c0_79 = arith.constant 0 : index
    %264 = vector.load %arg18[%263, %c0_79] : memref<16x32xf32, #tpu.memory_space<vmem>>, vector<2x16xf32>
    tpu.vector_store %arg18[%263, %c0_79], %262 {strides = array<i32>} : memref<16x32xf32, #tpu.memory_space<vmem>>, vector<2x16xf32>,
    %265 = vector.extract_strided_slice %255 {offsets = [2, 0], sizes = [2, 16], strides = [1, 1]} : vector<4x16xf32> to vector<2x16xf32>
    %266 = arith.index_cast %210 : i32 to index
    %c16_80 = arith.constant 16 : index
    %267 = vector.load %arg18[%266, %c16_80] : memref<16x32xf32, #tpu.memory_space<vmem>>, vector<2x16xf32>
    tpu.vector_store %arg18[%266, %c16_80], %265 {strides = array<i32>} : memref<16x32xf32, #tpu.memory_space<vmem>>, vector<2x16xf32>,
    %c4_i32 = arith.constant 4 : i32
    %c2_i32_81 = arith.constant 2 : i32
    %268 = arith.muli %c4_i32, %c2_i32_81 : i32
    %269 = tpu.assume_multiple %268, 2 : i32
    %c7_i32_82 = arith.constant 7 : i32
    %270 = arith.subi %c7_i32_82, %c4_i32 : i32
    %c2_i32_83 = arith.constant 2 : i32
    %271 = arith.muli %270, %c2_i32_83 : i32
    %272 = tpu.assume_multiple %271, 2 : i32
    %273 = arith.index_cast %269 : i32 to index
    %c0_84 = arith.constant 0 : index
    %274 = vector.load %arg17[%273, %c0_84] : memref<16x128xf32, #tpu.memory_space<vmem>>, vector<2x64xf32>
    %275 = arith.index_cast %272 : i32 to index
    %c64_85 = arith.constant 64 : index
    %276 = vector.load %arg17[%275, %c64_85] : memref<16x128xf32, #tpu.memory_space<vmem>>, vector<2x64xf32>
    %277 = tpu.concatenate %274, %276 in 0 : vector<2x64xf32>, vector<2x64xf32> -> vector<4x64xf32>
    %c0_86 = arith.constant 0 : index
    %278 = arith.index_cast %269 : i32 to index
    %c0_87 = arith.constant 0 : index
    %279 = vector.load %arg2[%c0_86, %278, %c0_87] : memref<1x16x1xf32, #tpu.memory_space<vmem>>, vector<1x2x1xf32>
    %280 = vector.shape_cast %279 : vector<1x2x1xf32> to vector<2x1xf32>
    %c0_88 = arith.constant 0 : index
    %281 = arith.index_cast %272 : i32 to index
    %c0_89 = arith.constant 0 : index
    %282 = vector.load %arg2[%c0_88, %281, %c0_89] : memref<1x16x1xf32, #tpu.memory_space<vmem>>, vector<1x2x1xf32>
    %283 = vector.shape_cast %282 : vector<1x2x1xf32> to vector<2x1xf32>
    %284 = tpu.concatenate %280, %283 in 0 : vector<2x1xf32>, vector<2x1xf32> -> vector<4x1xf32>
    %cst_90 = arith.constant 0.000000e+00 : f32
    %285 = vector.broadcast %cst_90 : f32 to vector<4x1xf32>
    %286 = arith.cmpf ogt, %284, %285 : vector<4x1xf32>
    %287 = tpu.concatenate %258, %258 in 1 : vector<4x16xf32>, vector<4x16xf32> -> vector<4x32xf32>
    %cst_91 = arith.constant 0.000000e+00 : f32
    %288 = vector.broadcast %cst_91 : f32 to vector<4x32xf32>
    %289 = arith.select %18, %287, %288 : vector<4x32xi1>, vector<4x32xf32>
    %290 = arith.truncf %289 : vector<4x32xf32> to vector<4x32xbf16>
    %cst_92 = arith.constant dense<0.000000e+00> : vector<4x64xf32>
    %291 = tpu.matmul %290, %10, %cst_92 {dimension_numbers = #tpu.dot_dimension_numbers<[1], [0], [0], [1], [0, 0, 1, 1], [], []>} : vector<4x32xbf16>, vector<32x64xbf16>, vector<4x64xf32> -> vector<4x64xf32>
    %292 = arith.addf %277, %291 : vector<4x64xf32>
    %293 = vector.extract_strided_slice %292 {offsets = [0, 0], sizes = [4, 16], strides = [1, 1]} : vector<4x64xf32> to vector<4x16xf32>
    %294 = arith.negf %293 : vector<4x16xf32>
    %295 = math.exp %294 : vector<4x16xf32>
    %cst_93 = arith.constant 1.000000e+00 : f32
    %296 = vector.broadcast %cst_93 : f32 to vector<4x16xf32>
    %297 = arith.addf %296, %295 : vector<4x16xf32>
    %298 = arith.divf %296, %297 : vector<4x16xf32>
    %299 = vector.extract_strided_slice %292 {offsets = [0, 16], sizes = [4, 16], strides = [1, 1]} : vector<4x64xf32> to vector<4x16xf32>
    %300 = arith.negf %299 : vector<4x16xf32>
    %301 = math.exp %300 : vector<4x16xf32>
    %cst_94 = arith.constant 1.000000e+00 : f32
    %302 = vector.broadcast %cst_94 : f32 to vector<4x16xf32>
    %303 = arith.addf %302, %301 : vector<4x16xf32>
    %304 = arith.divf %302, %303 : vector<4x16xf32>
    %305 = vector.extract_strided_slice %292 {offsets = [0, 32], sizes = [4, 16], strides = [1, 1]} : vector<4x64xf32> to vector<4x16xf32>
    %306 = math.tanh %305 : vector<4x16xf32>
    %307 = vector.extract_strided_slice %292 {offsets = [0, 48], sizes = [4, 16], strides = [1, 1]} : vector<4x64xf32> to vector<4x16xf32>
    %308 = arith.negf %307 : vector<4x16xf32>
    %309 = math.exp %308 : vector<4x16xf32>
    %cst_95 = arith.constant 1.000000e+00 : f32
    %310 = vector.broadcast %cst_95 : f32 to vector<4x16xf32>
    %311 = arith.addf %310, %309 : vector<4x16xf32>
    %312 = arith.divf %310, %311 : vector<4x16xf32>
    %313 = arith.mulf %304, %261 : vector<4x16xf32>
    %314 = arith.mulf %298, %306 : vector<4x16xf32>
    %315 = arith.addf %313, %314 : vector<4x16xf32>
    %316 = math.tanh %315 : vector<4x16xf32>
    %317 = arith.mulf %312, %316 : vector<4x16xf32>
    %318 = vector.shape_cast %286 : vector<4x1xi1> to vector<4x1xi1>
    %319 = vector.broadcast %318 : vector<4x1xi1> to vector<4x16xi1>
    %320 = arith.select %319, %317, %258 : vector<4x16xi1>, vector<4x16xf32>
    %321 = vector.shape_cast %286 : vector<4x1xi1> to vector<4x1xi1>
    %322 = vector.broadcast %321 : vector<4x1xi1> to vector<4x16xi1>
    %323 = arith.select %322, %315, %261 : vector<4x16xi1>, vector<4x16xf32>
    %324 = vector.extract_strided_slice %317 {offsets = [0, 0], sizes = [2, 16], strides = [1, 1]} : vector<4x16xf32> to vector<2x16xf32>
    %325 = arith.index_cast %269 : i32 to index
    %c0_96 = arith.constant 0 : index
    %326 = vector.load %arg18[%325, %c0_96] : memref<16x32xf32, #tpu.memory_space<vmem>>, vector<2x16xf32>
    tpu.vector_store %arg18[%325, %c0_96], %324 {strides = array<i32>} : memref<16x32xf32, #tpu.memory_space<vmem>>, vector<2x16xf32>,
    %327 = vector.extract_strided_slice %317 {offsets = [2, 0], sizes = [2, 16], strides = [1, 1]} : vector<4x16xf32> to vector<2x16xf32>
    %328 = arith.index_cast %272 : i32 to index
    %c16_97 = arith.constant 16 : index
    %329 = vector.load %arg18[%328, %c16_97] : memref<16x32xf32, #tpu.memory_space<vmem>>, vector<2x16xf32>
    tpu.vector_store %arg18[%328, %c16_97], %327 {strides = array<i32>} : memref<16x32xf32, #tpu.memory_space<vmem>>, vector<2x16xf32>,
    %c5_i32 = arith.constant 5 : i32
    %c2_i32_98 = arith.constant 2 : i32
    %330 = arith.muli %c5_i32, %c2_i32_98 : i32
    %331 = tpu.assume_multiple %330, 2 : i32
    %c7_i32_99 = arith.constant 7 : i32
    %332 = arith.subi %c7_i32_99, %c5_i32 : i32
    %c2_i32_100 = arith.constant 2 : i32
    %333 = arith.muli %332, %c2_i32_100 : i32
    %334 = tpu.assume_multiple %333, 2 : i32
    %335 = arith.index_cast %331 : i32 to index
    %c0_101 = arith.constant 0 : index
    %336 = vector.load %arg17[%335, %c0_101] : memref<16x128xf32, #tpu.memory_space<vmem>>, vector<2x64xf32>
    %337 = arith.index_cast %334 : i32 to index
    %c64_102 = arith.constant 64 : index
    %338 = vector.load %arg17[%337, %c64_102] : memref<16x128xf32, #tpu.memory_space<vmem>>, vector<2x64xf32>
    %339 = tpu.concatenate %336, %338 in 0 : vector<2x64xf32>, vector<2x64xf32> -> vector<4x64xf32>
    %c0_103 = arith.constant 0 : index
    %340 = arith.index_cast %331 : i32 to index
    %c0_104 = arith.constant 0 : index
    %341 = vector.load %arg2[%c0_103, %340, %c0_104] : memref<1x16x1xf32, #tpu.memory_space<vmem>>, vector<1x2x1xf32>
    %342 = vector.shape_cast %341 : vector<1x2x1xf32> to vector<2x1xf32>
    %c0_105 = arith.constant 0 : index
    %343 = arith.index_cast %334 : i32 to index
    %c0_106 = arith.constant 0 : index
    %344 = vector.load %arg2[%c0_105, %343, %c0_106] : memref<1x16x1xf32, #tpu.memory_space<vmem>>, vector<1x2x1xf32>
    %345 = vector.shape_cast %344 : vector<1x2x1xf32> to vector<2x1xf32>
    %346 = tpu.concatenate %342, %345 in 0 : vector<2x1xf32>, vector<2x1xf32> -> vector<4x1xf32>
    %cst_107 = arith.constant 0.000000e+00 : f32
    %347 = vector.broadcast %cst_107 : f32 to vector<4x1xf32>
    %348 = arith.cmpf ogt, %346, %347 : vector<4x1xf32>
    %349 = tpu.concatenate %320, %320 in 1 : vector<4x16xf32>, vector<4x16xf32> -> vector<4x32xf32>
    %cst_108 = arith.constant 0.000000e+00 : f32
    %350 = vector.broadcast %cst_108 : f32 to vector<4x32xf32>
    %351 = arith.select %18, %349, %350 : vector<4x32xi1>, vector<4x32xf32>
    %352 = arith.truncf %351 : vector<4x32xf32> to vector<4x32xbf16>
    %cst_109 = arith.constant dense<0.000000e+00> : vector<4x64xf32>
    %353 = tpu.matmul %352, %10, %cst_109 {dimension_numbers = #tpu.dot_dimension_numbers<[1], [0], [0], [1], [0, 0, 1, 1], [], []>} : vector<4x32xbf16>, vector<32x64xbf16>, vector<4x64xf32> -> vector<4x64xf32>
    %354 = arith.addf %339, %353 : vector<4x64xf32>
    %355 = vector.extract_strided_slice %354 {offsets = [0, 0], sizes = [4, 16], strides = [1, 1]} : vector<4x64xf32> to vector<4x16xf32>
    %356 = arith.negf %355 : vector<4x16xf32>
    %357 = math.exp %356 : vector<4x16xf32>
    %cst_110 = arith.constant 1.000000e+00 : f32
    %358 = vector.broadcast %cst_110 : f32 to vector<4x16xf32>
    %359 = arith.addf %358, %357 : vector<4x16xf32>
    %360 = arith.divf %358, %359 : vector<4x16xf32>
    %361 = vector.extract_strided_slice %354 {offsets = [0, 16], sizes = [4, 16], strides = [1, 1]} : vector<4x64xf32> to vector<4x16xf32>
    %362 = arith.negf %361 : vector<4x16xf32>
    %363 = math.exp %362 : vector<4x16xf32>
    %cst_111 = arith.constant 1.000000e+00 : f32
    %364 = vector.broadcast %cst_111 : f32 to vector<4x16xf32>
    %365 = arith.addf %364, %363 : vector<4x16xf32>
    %366 = arith.divf %364, %365 : vector<4x16xf32>
    %367 = vector.extract_strided_slice %354 {offsets = [0, 32], sizes = [4, 16], strides = [1, 1]} : vector<4x64xf32> to vector<4x16xf32>
    %368 = math.tanh %367 : vector<4x16xf32>
    %369 = vector.extract_strided_slice %354 {offsets = [0, 48], sizes = [4, 16], strides = [1, 1]} : vector<4x64xf32> to vector<4x16xf32>
    %370 = arith.negf %369 : vector<4x16xf32>
    %371 = math.exp %370 : vector<4x16xf32>
    %cst_112 = arith.constant 1.000000e+00 : f32
    %372 = vector.broadcast %cst_112 : f32 to vector<4x16xf32>
    %373 = arith.addf %372, %371 : vector<4x16xf32>
    %374 = arith.divf %372, %373 : vector<4x16xf32>
    %375 = arith.mulf %366, %323 : vector<4x16xf32>
    %376 = arith.mulf %360, %368 : vector<4x16xf32>
    %377 = arith.addf %375, %376 : vector<4x16xf32>
    %378 = math.tanh %377 : vector<4x16xf32>
    %379 = arith.mulf %374, %378 : vector<4x16xf32>
    %380 = vector.shape_cast %348 : vector<4x1xi1> to vector<4x1xi1>
    %381 = vector.broadcast %380 : vector<4x1xi1> to vector<4x16xi1>
    %382 = arith.select %381, %379, %320 : vector<4x16xi1>, vector<4x16xf32>
    %383 = vector.shape_cast %348 : vector<4x1xi1> to vector<4x1xi1>
    %384 = vector.broadcast %383 : vector<4x1xi1> to vector<4x16xi1>
    %385 = arith.select %384, %377, %323 : vector<4x16xi1>, vector<4x16xf32>
    %386 = vector.extract_strided_slice %379 {offsets = [0, 0], sizes = [2, 16], strides = [1, 1]} : vector<4x16xf32> to vector<2x16xf32>
    %387 = arith.index_cast %331 : i32 to index
    %c0_113 = arith.constant 0 : index
    %388 = vector.load %arg18[%387, %c0_113] : memref<16x32xf32, #tpu.memory_space<vmem>>, vector<2x16xf32>
    tpu.vector_store %arg18[%387, %c0_113], %386 {strides = array<i32>} : memref<16x32xf32, #tpu.memory_space<vmem>>, vector<2x16xf32>,
    %389 = vector.extract_strided_slice %379 {offsets = [2, 0], sizes = [2, 16], strides = [1, 1]} : vector<4x16xf32> to vector<2x16xf32>
    %390 = arith.index_cast %334 : i32 to index
    %c16_114 = arith.constant 16 : index
    %391 = vector.load %arg18[%390, %c16_114] : memref<16x32xf32, #tpu.memory_space<vmem>>, vector<2x16xf32>
    tpu.vector_store %arg18[%390, %c16_114], %389 {strides = array<i32>} : memref<16x32xf32, #tpu.memory_space<vmem>>, vector<2x16xf32>,
    %c6_i32 = arith.constant 6 : i32
    %c2_i32_115 = arith.constant 2 : i32
    %392 = arith.muli %c6_i32, %c2_i32_115 : i32
    %393 = tpu.assume_multiple %392, 2 : i32
    %c7_i32_116 = arith.constant 7 : i32
    %394 = arith.subi %c7_i32_116, %c6_i32 : i32
    %c2_i32_117 = arith.constant 2 : i32
    %395 = arith.muli %394, %c2_i32_117 : i32
    %396 = tpu.assume_multiple %395, 2 : i32
    %397 = arith.index_cast %393 : i32 to index
    %c0_118 = arith.constant 0 : index
    %398 = vector.load %arg17[%397, %c0_118] : memref<16x128xf32, #tpu.memory_space<vmem>>, vector<2x64xf32>
    %399 = arith.index_cast %396 : i32 to index
    %c64_119 = arith.constant 64 : index
    %400 = vector.load %arg17[%399, %c64_119] : memref<16x128xf32, #tpu.memory_space<vmem>>, vector<2x64xf32>
    %401 = tpu.concatenate %398, %400 in 0 : vector<2x64xf32>, vector<2x64xf32> -> vector<4x64xf32>
    %c0_120 = arith.constant 0 : index
    %402 = arith.index_cast %393 : i32 to index
    %c0_121 = arith.constant 0 : index
    %403 = vector.load %arg2[%c0_120, %402, %c0_121] : memref<1x16x1xf32, #tpu.memory_space<vmem>>, vector<1x2x1xf32>
    %404 = vector.shape_cast %403 : vector<1x2x1xf32> to vector<2x1xf32>
    %c0_122 = arith.constant 0 : index
    %405 = arith.index_cast %396 : i32 to index
    %c0_123 = arith.constant 0 : index
    %406 = vector.load %arg2[%c0_122, %405, %c0_123] : memref<1x16x1xf32, #tpu.memory_space<vmem>>, vector<1x2x1xf32>
    %407 = vector.shape_cast %406 : vector<1x2x1xf32> to vector<2x1xf32>
    %408 = tpu.concatenate %404, %407 in 0 : vector<2x1xf32>, vector<2x1xf32> -> vector<4x1xf32>
    %cst_124 = arith.constant 0.000000e+00 : f32
    %409 = vector.broadcast %cst_124 : f32 to vector<4x1xf32>
    %410 = arith.cmpf ogt, %408, %409 : vector<4x1xf32>
    %411 = tpu.concatenate %382, %382 in 1 : vector<4x16xf32>, vector<4x16xf32> -> vector<4x32xf32>
    %cst_125 = arith.constant 0.000000e+00 : f32
    %412 = vector.broadcast %cst_125 : f32 to vector<4x32xf32>
    %413 = arith.select %18, %411, %412 : vector<4x32xi1>, vector<4x32xf32>
    %414 = arith.truncf %413 : vector<4x32xf32> to vector<4x32xbf16>
    %cst_126 = arith.constant dense<0.000000e+00> : vector<4x64xf32>
    %415 = tpu.matmul %414, %10, %cst_126 {dimension_numbers = #tpu.dot_dimension_numbers<[1], [0], [0], [1], [0, 0, 1, 1], [], []>} : vector<4x32xbf16>, vector<32x64xbf16>, vector<4x64xf32> -> vector<4x64xf32>
    %416 = arith.addf %401, %415 : vector<4x64xf32>
    %417 = vector.extract_strided_slice %416 {offsets = [0, 0], sizes = [4, 16], strides = [1, 1]} : vector<4x64xf32> to vector<4x16xf32>
    %418 = arith.negf %417 : vector<4x16xf32>
    %419 = math.exp %418 : vector<4x16xf32>
    %cst_127 = arith.constant 1.000000e+00 : f32
    %420 = vector.broadcast %cst_127 : f32 to vector<4x16xf32>
    %421 = arith.addf %420, %419 : vector<4x16xf32>
    %422 = arith.divf %420, %421 : vector<4x16xf32>
    %423 = vector.extract_strided_slice %416 {offsets = [0, 16], sizes = [4, 16], strides = [1, 1]} : vector<4x64xf32> to vector<4x16xf32>
    %424 = arith.negf %423 : vector<4x16xf32>
    %425 = math.exp %424 : vector<4x16xf32>
    %cst_128 = arith.constant 1.000000e+00 : f32
    %426 = vector.broadcast %cst_128 : f32 to vector<4x16xf32>
    %427 = arith.addf %426, %425 : vector<4x16xf32>
    %428 = arith.divf %426, %427 : vector<4x16xf32>
    %429 = vector.extract_strided_slice %416 {offsets = [0, 32], sizes = [4, 16], strides = [1, 1]} : vector<4x64xf32> to vector<4x16xf32>
    %430 = math.tanh %429 : vector<4x16xf32>
    %431 = vector.extract_strided_slice %416 {offsets = [0, 48], sizes = [4, 16], strides = [1, 1]} : vector<4x64xf32> to vector<4x16xf32>
    %432 = arith.negf %431 : vector<4x16xf32>
    %433 = math.exp %432 : vector<4x16xf32>
    %cst_129 = arith.constant 1.000000e+00 : f32
    %434 = vector.broadcast %cst_129 : f32 to vector<4x16xf32>
    %435 = arith.addf %434, %433 : vector<4x16xf32>
    %436 = arith.divf %434, %435 : vector<4x16xf32>
    %437 = arith.mulf %428, %385 : vector<4x16xf32>
    %438 = arith.mulf %422, %430 : vector<4x16xf32>
    %439 = arith.addf %437, %438 : vector<4x16xf32>
    %440 = math.tanh %439 : vector<4x16xf32>
    %441 = arith.mulf %436, %440 : vector<4x16xf32>
    %442 = vector.shape_cast %410 : vector<4x1xi1> to vector<4x1xi1>
    %443 = vector.broadcast %442 : vector<4x1xi1> to vector<4x16xi1>
    %444 = arith.select %443, %441, %382 : vector<4x16xi1>, vector<4x16xf32>
    %445 = vector.shape_cast %410 : vector<4x1xi1> to vector<4x1xi1>
    %446 = vector.broadcast %445 : vector<4x1xi1> to vector<4x16xi1>
    %447 = arith.select %446, %439, %385 : vector<4x16xi1>, vector<4x16xf32>
    %448 = vector.extract_strided_slice %441 {offsets = [0, 0], sizes = [2, 16], strides = [1, 1]} : vector<4x16xf32> to vector<2x16xf32>
    %449 = arith.index_cast %393 : i32 to index
    %c0_130 = arith.constant 0 : index
    %450 = vector.load %arg18[%449, %c0_130] : memref<16x32xf32, #tpu.memory_space<vmem>>, vector<2x16xf32>
    tpu.vector_store %arg18[%449, %c0_130], %448 {strides = array<i32>} : memref<16x32xf32, #tpu.memory_space<vmem>>, vector<2x16xf32>,
    %451 = vector.extract_strided_slice %441 {offsets = [2, 0], sizes = [2, 16], strides = [1, 1]} : vector<4x16xf32> to vector<2x16xf32>
    %452 = arith.index_cast %396 : i32 to index
    %c16_131 = arith.constant 16 : index
    %453 = vector.load %arg18[%452, %c16_131] : memref<16x32xf32, #tpu.memory_space<vmem>>, vector<2x16xf32>
    tpu.vector_store %arg18[%452, %c16_131], %451 {strides = array<i32>} : memref<16x32xf32, #tpu.memory_space<vmem>>, vector<2x16xf32>,
    %c7_i32_132 = arith.constant 7 : i32
    %c2_i32_133 = arith.constant 2 : i32
    %454 = arith.muli %c7_i32_132, %c2_i32_133 : i32
    %455 = tpu.assume_multiple %454, 2 : i32
    %c7_i32_134 = arith.constant 7 : i32
    %456 = arith.subi %c7_i32_134, %c7_i32_132 : i32
    %c2_i32_135 = arith.constant 2 : i32
    %457 = arith.muli %456, %c2_i32_135 : i32
    %458 = tpu.assume_multiple %457, 2 : i32
    %459 = arith.index_cast %455 : i32 to index
    %c0_136 = arith.constant 0 : index
    %460 = vector.load %arg17[%459, %c0_136] : memref<16x128xf32, #tpu.memory_space<vmem>>, vector<2x64xf32>
    %461 = arith.index_cast %458 : i32 to index
    %c64_137 = arith.constant 64 : index
    %462 = vector.load %arg17[%461, %c64_137] : memref<16x128xf32, #tpu.memory_space<vmem>>, vector<2x64xf32>
    %463 = tpu.concatenate %460, %462 in 0 : vector<2x64xf32>, vector<2x64xf32> -> vector<4x64xf32>
    %c0_138 = arith.constant 0 : index
    %464 = arith.index_cast %455 : i32 to index
    %c0_139 = arith.constant 0 : index
    %465 = vector.load %arg2[%c0_138, %464, %c0_139] : memref<1x16x1xf32, #tpu.memory_space<vmem>>, vector<1x2x1xf32>
    %466 = vector.shape_cast %465 : vector<1x2x1xf32> to vector<2x1xf32>
    %c0_140 = arith.constant 0 : index
    %467 = arith.index_cast %458 : i32 to index
    %c0_141 = arith.constant 0 : index
    %468 = vector.load %arg2[%c0_140, %467, %c0_141] : memref<1x16x1xf32, #tpu.memory_space<vmem>>, vector<1x2x1xf32>
    %469 = vector.shape_cast %468 : vector<1x2x1xf32> to vector<2x1xf32>
    %470 = tpu.concatenate %466, %469 in 0 : vector<2x1xf32>, vector<2x1xf32> -> vector<4x1xf32>
    %cst_142 = arith.constant 0.000000e+00 : f32
    %471 = vector.broadcast %cst_142 : f32 to vector<4x1xf32>
    %472 = arith.cmpf ogt, %470, %471 : vector<4x1xf32>
    %473 = tpu.concatenate %444, %444 in 1 : vector<4x16xf32>, vector<4x16xf32> -> vector<4x32xf32>
    %cst_143 = arith.constant 0.000000e+00 : f32
    %474 = vector.broadcast %cst_143 : f32 to vector<4x32xf32>
    %475 = arith.select %18, %473, %474 : vector<4x32xi1>, vector<4x32xf32>
    %476 = arith.truncf %475 : vector<4x32xf32> to vector<4x32xbf16>
    %cst_144 = arith.constant dense<0.000000e+00> : vector<4x64xf32>
    %477 = tpu.matmul %476, %10, %cst_144 {dimension_numbers = #tpu.dot_dimension_numbers<[1], [0], [0], [1], [0, 0, 1, 1], [], []>} : vector<4x32xbf16>, vector<32x64xbf16>, vector<4x64xf32> -> vector<4x64xf32>
    %478 = arith.addf %463, %477 : vector<4x64xf32>
    %479 = vector.extract_strided_slice %478 {offsets = [0, 0], sizes = [4, 16], strides = [1, 1]} : vector<4x64xf32> to vector<4x16xf32>
    %480 = arith.negf %479 : vector<4x16xf32>
    %481 = math.exp %480 : vector<4x16xf32>
    %cst_145 = arith.constant 1.000000e+00 : f32
    %482 = vector.broadcast %cst_145 : f32 to vector<4x16xf32>
    %483 = arith.addf %482, %481 : vector<4x16xf32>
    %484 = arith.divf %482, %483 : vector<4x16xf32>
    %485 = vector.extract_strided_slice %478 {offsets = [0, 16], sizes = [4, 16], strides = [1, 1]} : vector<4x64xf32> to vector<4x16xf32>
    %486 = arith.negf %485 : vector<4x16xf32>
    %487 = math.exp %486 : vector<4x16xf32>
    %cst_146 = arith.constant 1.000000e+00 : f32
    %488 = vector.broadcast %cst_146 : f32 to vector<4x16xf32>
    %489 = arith.addf %488, %487 : vector<4x16xf32>
    %490 = arith.divf %488, %489 : vector<4x16xf32>
    %491 = vector.extract_strided_slice %478 {offsets = [0, 32], sizes = [4, 16], strides = [1, 1]} : vector<4x64xf32> to vector<4x16xf32>
    %492 = math.tanh %491 : vector<4x16xf32>
    %493 = vector.extract_strided_slice %478 {offsets = [0, 48], sizes = [4, 16], strides = [1, 1]} : vector<4x64xf32> to vector<4x16xf32>
    %494 = arith.negf %493 : vector<4x16xf32>
    %495 = math.exp %494 : vector<4x16xf32>
    %cst_147 = arith.constant 1.000000e+00 : f32
    %496 = vector.broadcast %cst_147 : f32 to vector<4x16xf32>
    %497 = arith.addf %496, %495 : vector<4x16xf32>
    %498 = arith.divf %496, %497 : vector<4x16xf32>
    %499 = arith.mulf %490, %447 : vector<4x16xf32>
    %500 = arith.mulf %484, %492 : vector<4x16xf32>
    %501 = arith.addf %499, %500 : vector<4x16xf32>
    %502 = math.tanh %501 : vector<4x16xf32>
    %503 = arith.mulf %498, %502 : vector<4x16xf32>
    %504 = vector.shape_cast %472 : vector<4x1xi1> to vector<4x1xi1>
    %505 = vector.broadcast %504 : vector<4x1xi1> to vector<4x16xi1>
    %506 = arith.select %505, %503, %444 : vector<4x16xi1>, vector<4x16xf32>
    %507 = vector.shape_cast %472 : vector<4x1xi1> to vector<4x1xi1>
    %508 = vector.broadcast %507 : vector<4x1xi1> to vector<4x16xi1>
    %509 = arith.select %508, %501, %447 : vector<4x16xi1>, vector<4x16xf32>
    %510 = vector.extract_strided_slice %503 {offsets = [0, 0], sizes = [2, 16], strides = [1, 1]} : vector<4x16xf32> to vector<2x16xf32>
    %511 = arith.index_cast %455 : i32 to index
    %c0_148 = arith.constant 0 : index
    %512 = vector.load %arg18[%511, %c0_148] : memref<16x32xf32, #tpu.memory_space<vmem>>, vector<2x16xf32>
    tpu.vector_store %arg18[%511, %c0_148], %510 {strides = array<i32>} : memref<16x32xf32, #tpu.memory_space<vmem>>, vector<2x16xf32>,
    %513 = vector.extract_strided_slice %503 {offsets = [2, 0], sizes = [2, 16], strides = [1, 1]} : vector<4x16xf32> to vector<2x16xf32>
    %514 = arith.index_cast %458 : i32 to index
    %c16_149 = arith.constant 16 : index
    %515 = vector.load %arg18[%514, %c16_149] : memref<16x32xf32, #tpu.memory_space<vmem>>, vector<2x16xf32>
    tpu.vector_store %arg18[%514, %c16_149], %513 {strides = array<i32>} : memref<16x32xf32, #tpu.memory_space<vmem>>, vector<2x16xf32>,
    %c8_i32 = arith.constant 8 : i32
    %c0_150 = arith.constant 0 : index
    %c0_151 = arith.constant 0 : index
    %516 = vector.load %arg18[%c0_150, %c0_151] : memref<16x32xf32, #tpu.memory_space<vmem>>, vector<16x32xf32>
    %517 = arith.truncf %516 : vector<16x32xf32> to vector<16x32xbf16>
    %c0_152 = arith.constant 0 : index
    %c0_153 = arith.constant 0 : index
    %518 = vector.load %arg7[%c0_152, %c0_153] : memref<32x8xbf16, #tpu.memory_space<vmem>>, vector<32x8xbf16>
    %cst_154 = arith.constant dense<0.000000e+00> : vector<16x8xf32>
    %519 = tpu.matmul %517, %518, %cst_154 {dimension_numbers = #tpu.dot_dimension_numbers<[1], [0], [0], [1], [0, 0, 1, 1], [], []>} : vector<16x32xbf16>, vector<32x8xbf16>, vector<16x8xf32> -> vector<16x8xf32>
    %c0_155 = arith.constant 0 : index
    %c0_156 = arith.constant 0 : index
    %520 = vector.load %arg8[%c0_155, %c0_156] : memref<1x8xf32, #tpu.memory_space<vmem>>, vector<1x8xf32>
    %521 = vector.broadcast %520 : vector<1x8xf32> to vector<16x8xf32>
    %522 = arith.addf %519, %521 : vector<16x8xf32>
    %523 = vector.broadcast %1 : vector<16x1xf32> to vector<16x8xf32>
    %524 = arith.mulf %522, %523 : vector<16x8xf32>
    %c0_157 = arith.constant 0 : index
    %c0_158 = arith.constant 0 : index
    %525 = vector.load %arg19[%c0_157, %c0_158] : memref<16x8xf32, #tpu.memory_space<vmem>>, vector<16x8xf32>
    tpu.vector_store %arg19[%c0_157, %c0_158], %524 {strides = array<i32>} : memref<16x8xf32, #tpu.memory_space<vmem>>, vector<16x8xf32>,
    %c0_159 = arith.constant 0 : index
    %c0_160 = arith.constant 0 : index
    %c0_161 = arith.constant 0 : index
    %526 = vector.load %arg3[%c0_159, %c0_160, %c0_161] : memref<1x16x1xi32, #tpu.memory_space<vmem>>, vector<1x16x1xi32>
    %527 = vector.shape_cast %526 : vector<1x16x1xi32> to vector<16x1xi32>
    %528 = tpu.iota {dimensions = array<i32: 1>} : vector<16x8xi32>
    %529 = tpu.iota {dimensions = array<i32: 0>} : vector<16x1xi32>
    %530 = vector.broadcast %527 : vector<16x1xi32> to vector<16x8xi32>
    %531 = arith.cmpi eq, %528, %530 : vector<16x8xi32>
    %532 = arith.extui %531 : vector<16x8xi1> to vector<16x8xi32>
    %533 = arith.sitofp %532 : vector<16x8xi32> to vector<16x8xf32>
    %c2_i32_162 = arith.constant 2 : i32
    %534 = vector.broadcast %c2_i32_162 : i32 to vector<16x1xi32>
    %535 = arith.cmpi slt, %529, %534 : vector<16x1xi32>
    %536 = arith.extui %535 : vector<16x1xi1> to vector<16x1xi32>
    %537 = arith.sitofp %536 : vector<16x1xi32> to vector<16x1xf32>
    %c0_163 = arith.constant 0 : index
    %c0_164 = arith.constant 0 : index
    %538 = vector.load %arg11[%c0_163, %c0_164] : memref<1x8xf32, #tpu.memory_space<vmem>>, vector<1x8xf32>
    %c0_165 = arith.constant 0 : index
    %c0_166 = arith.constant 0 : index
    %539 = vector.load %arg12[%c0_165, %c0_166] : memref<1x8xf32, #tpu.memory_space<vmem>>, vector<1x8xf32>
    %c0_167 = arith.constant 0 : index
    %c0_168 = arith.constant 0 : index
    %540 = vector.load %arg9[%c0_167, %c0_168] : memref<8x8xf32, #tpu.memory_space<vmem>>, vector<8x8xf32>
    %cst_169 = arith.constant dense<0.000000e+00> : vector<16x8xf32>
    %541 = tpu.matmul %533, %540, %cst_169 {dimension_numbers = #tpu.dot_dimension_numbers<[1], [0], [0], [1], [0, 0, 1, 1], [], []>} : vector<16x8xf32>, vector<8x8xf32>, vector<16x8xf32> -> vector<16x8xf32>
    %cst_170 = arith.constant 0.000000e+00 : f32
    %542 = vector.broadcast %cst_170 : f32 to vector<2x8xf32>
    %543 = vector.extract_strided_slice %541 {offsets = [0, 0], sizes = [14, 8], strides = [1, 1]} : vector<16x8xf32> to vector<14x8xf32>
    %544 = tpu.concatenate %542, %543 in 0 : vector<2x8xf32>, vector<14x8xf32> -> vector<16x8xf32>
    %545 = vector.extract_strided_slice %1 {offsets = [2, 0], sizes = [14, 1], strides = [1, 1]} : vector<16x1xf32> to vector<14x1xf32>
    %cst_171 = arith.constant 0.000000e+00 : f32
    %546 = vector.broadcast %cst_171 : f32 to vector<2x1xf32>
    %547 = tpu.concatenate %545, %546 in 0 : vector<14x1xf32>, vector<2x1xf32> -> vector<16x1xf32>
    %548 = arith.subf %1, %547 : vector<16x1xf32>
    %549 = vector.broadcast %1 : vector<16x1xf32> to vector<16x8xf32>
    %550 = arith.mulf %544, %549 : vector<16x8xf32>
    %551 = arith.addf %524, %550 : vector<16x8xf32>
    %552 = vector.broadcast %538 : vector<1x8xf32> to vector<16x8xf32>
    %553 = vector.broadcast %537 : vector<16x1xf32> to vector<16x8xf32>
    %554 = arith.mulf %552, %553 : vector<16x8xf32>
    %555 = arith.addf %551, %554 : vector<16x8xf32>
    %556 = vector.broadcast %539 : vector<1x8xf32> to vector<16x8xf32>
    %557 = vector.broadcast %548 : vector<16x1xf32> to vector<16x8xf32>
    %558 = arith.mulf %556, %557 : vector<16x8xf32>
    %559 = arith.addf %555, %558 : vector<16x8xf32>
    %560 = arith.mulf %533, %559 : vector<16x8xf32>
    %c0_172 = arith.constant 0 : index
    %c0_173 = arith.constant 0 : index
    %561 = vector.load %arg13[%c0_172, %c0_173] : memref<2x16xf32, #tpu.memory_space<vmem>>, vector<2x16xf32>
    %cst_174 = arith.constant dense<0.000000e+00> : vector<2x8xf32>
    %562 = tpu.matmul %561, %560, %cst_174 {dimension_numbers = #tpu.dot_dimension_numbers<[1], [0], [0], [1], [0, 0, 1, 1], [], []>} : vector<2x16xf32>, vector<16x8xf32>, vector<2x8xf32> -> vector<2x8xf32>
    %cst_175 = arith.constant dense<0.000000e+00> : vector<2xf32>
    %563 = vector.multi_reduction <add>, %562, %cst_175 [1] : vector<2x8xf32> to vector<2xf32>
    %564 = vector.shape_cast %563 : vector<2xf32> to vector<2x1xf32>
    %c0_176 = arith.constant 0 : index
    %c0_177 = arith.constant 0 : index
    %565 = vector.load %arg10[%c0_176, %c0_177] : memref<8x8xf32, #tpu.memory_space<vmem>>, vector<8x8xf32>
    %566 = tpu.iota {dimensions = array<i32: 1>} : vector<2x8xi32>
    %567 = tpu.iota {dimensions = array<i32: 2>} : vector<2x8x8xi32>
    %c0_178 = arith.constant 0 : index
    %c0_179 = arith.constant 0 : index
    %568 = vector.load %arg19[%c0_178, %c0_179] : memref<16x8xf32, #tpu.memory_space<vmem>>, vector<2x8xf32>
    %569 = vector.broadcast %538 : vector<1x8xf32> to vector<2x8xf32>
    %570 = arith.addf %569, %568 : vector<2x8xf32>
    %c0_i32_180 = arith.constant 0 : i32
    %571 = vector.broadcast %c0_i32_180 : i32 to vector<2x8xi32>
    %c0_181 = arith.constant 0 : index
    %c0_182 = arith.constant 0 : index
    %c0_183 = arith.constant 0 : index
    %572 = vector.load %arg15[%c0_181, %c0_182, %c0_183] : memref<1x16x8xi32, #tpu.memory_space<vmem>>, vector<1x2x8xi32>
    %573 = vector.shape_cast %572 : vector<1x2x8xi32> to vector<2x8xi32>
    %574 = vector.shape_cast %571 : vector<2x8xi32> to vector<1x2x8xi32>
    tpu.vector_store %arg15[%c0_181, %c0_182, %c0_183], %574 {strides = array<i32>} : memref<1x16x8xi32, #tpu.memory_space<vmem>>, vector<1x2x8xi32>,
    %c1_i32_184 = arith.constant 1 : i32
    %c2_i32_185 = arith.constant 2 : i32
    %575 = arith.muli %c1_i32_184, %c2_i32_185 : i32
    %576 = tpu.assume_multiple %575, 2 : i32
    %577 = arith.index_cast %576 : i32 to index
    %c0_186 = arith.constant 0 : index
    %578 = vector.load %arg19[%577, %c0_186] : memref<16x8xf32, #tpu.memory_space<vmem>>, vector<2x8xf32>
    %c0_187 = arith.constant 0 : index
    %579 = arith.index_cast %576 : i32 to index
    %c0_188 = arith.constant 0 : index
    %580 = vector.load %arg2[%c0_187, %579, %c0_188] : memref<1x16x1xf32, #tpu.memory_space<vmem>>, vector<1x2x1xf32>
    %581 = vector.shape_cast %580 : vector<1x2x1xf32> to vector<2x1xf32>
    %cst_189 = arith.constant 0.000000e+00 : f32
    %582 = vector.broadcast %cst_189 : f32 to vector<2x1xf32>
    %583 = arith.cmpf ogt, %581, %582 : vector<2x1xf32>
    %584 = vector.shape_cast %570 : vector<2x8xf32> to vector<2x1x8xf32>
    %585 = vector.shape_cast %565 : vector<8x8xf32> to vector<1x8x8xf32>
    %586 = vector.broadcast %584 : vector<2x1x8xf32> to vector<2x8x8xf32>
    %587 = vector.broadcast %585 : vector<1x8x8xf32> to vector<2x8x8xf32>
    %588 = arith.addf %586, %587 : vector<2x8x8xf32>
    %cst_190 = arith.constant dense<0xFF800000> : vector<2x8xf32>
    %589 = vector.multi_reduction <maximumf>, %588, %cst_190 [2] : vector<2x8x8xf32> to vector<2x8xf32>
    %590 = vector.shape_cast %589 : vector<2x8xf32> to vector<2x8x1xf32>
    %591 = vector.broadcast %590 : vector<2x8x1xf32> to vector<2x8x8xf32>
    %592 = arith.subf %588, %591 : vector<2x8x8xf32>
    %593 = math.exp %592 : vector<2x8x8xf32>
    %cst_191 = arith.constant dense<0.000000e+00> : vector<2x8xf32>
    %594 = vector.multi_reduction <add>, %593, %cst_191 [2] : vector<2x8x8xf32> to vector<2x8xf32>
    %595 = math.log %594 : vector<2x8xf32>
    %596 = arith.addf %589, %595 : vector<2x8xf32>
    %597 = vector.shape_cast %570 : vector<2x8xf32> to vector<2x1x8xf32>
    %598 = vector.shape_cast %565 : vector<8x8xf32> to vector<1x8x8xf32>
    %599 = vector.broadcast %597 : vector<2x1x8xf32> to vector<2x8x8xf32>
    %600 = vector.broadcast %598 : vector<1x8x8xf32> to vector<2x8x8xf32>
    %601 = arith.addf %599, %600 : vector<2x8x8xf32>
    %cst_192 = arith.constant dense<0xFF800000> : vector<2x8xf32>
    %602 = vector.multi_reduction <maximumf>, %601, %cst_192 [2] : vector<2x8x8xf32> to vector<2x8xf32>
    %603 = vector.shape_cast %602 : vector<2x8xf32> to vector<2x8x1xf32>
    %604 = vector.broadcast %603 : vector<2x8x1xf32> to vector<2x8x8xf32>
    %605 = arith.cmpf oeq, %601, %604 : vector<2x8x8xf32>
    %c8_i32_193 = arith.constant 8 : i32
    %606 = vector.broadcast %c8_i32_193 : i32 to vector<2x8x8xi32>
    %607 = arith.select %605, %567, %606 : vector<2x8x8xi1>, vector<2x8x8xi32>
    %cst_194 = arith.constant dense<2147483647> : vector<2x8xi32>
    %608 = vector.multi_reduction <minsi>, %607, %cst_194 [2] : vector<2x8x8xi32> to vector<2x8xi32>
    %c0_195 = arith.constant 0 : index
    %609 = arith.index_cast %576 : i32 to index
    %c0_196 = arith.constant 0 : index
    %610 = vector.load %arg15[%c0_195, %609, %c0_196] : memref<1x16x8xi32, #tpu.memory_space<vmem>>, vector<1x2x8xi32>
    %611 = vector.shape_cast %610 : vector<1x2x8xi32> to vector<2x8xi32>
    %612 = vector.shape_cast %608 : vector<2x8xi32> to vector<1x2x8xi32>
    tpu.vector_store %arg15[%c0_195, %609, %c0_196], %612 {strides = array<i32>} : memref<1x16x8xi32, #tpu.memory_space<vmem>>, vector<1x2x8xi32>,
    %613 = arith.addf %596, %578 : vector<2x8xf32>
    %614 = vector.shape_cast %583 : vector<2x1xi1> to vector<2x1xi1>
    %615 = vector.broadcast %614 : vector<2x1xi1> to vector<2x8xi1>
    %616 = arith.select %615, %613, %570 : vector<2x8xi1>, vector<2x8xf32>
    %617 = arith.addf %602, %578 : vector<2x8xf32>
    %618 = vector.shape_cast %583 : vector<2x1xi1> to vector<2x1xi1>
    %619 = vector.broadcast %618 : vector<2x1xi1> to vector<2x8xi1>
    %620 = arith.select %619, %617, %570 : vector<2x8xi1>, vector<2x8xf32>
    %c2_i32_197 = arith.constant 2 : i32
    %c2_i32_198 = arith.constant 2 : i32
    %621 = arith.muli %c2_i32_197, %c2_i32_198 : i32
    %622 = tpu.assume_multiple %621, 2 : i32
    %623 = arith.index_cast %622 : i32 to index
    %c0_199 = arith.constant 0 : index
    %624 = vector.load %arg19[%623, %c0_199] : memref<16x8xf32, #tpu.memory_space<vmem>>, vector<2x8xf32>
    %c0_200 = arith.constant 0 : index
    %625 = arith.index_cast %622 : i32 to index
    %c0_201 = arith.constant 0 : index
    %626 = vector.load %arg2[%c0_200, %625, %c0_201] : memref<1x16x1xf32, #tpu.memory_space<vmem>>, vector<1x2x1xf32>
    %627 = vector.shape_cast %626 : vector<1x2x1xf32> to vector<2x1xf32>
    %cst_202 = arith.constant 0.000000e+00 : f32
    %628 = vector.broadcast %cst_202 : f32 to vector<2x1xf32>
    %629 = arith.cmpf ogt, %627, %628 : vector<2x1xf32>
    %630 = vector.shape_cast %616 : vector<2x8xf32> to vector<2x1x8xf32>
    %631 = vector.shape_cast %565 : vector<8x8xf32> to vector<1x8x8xf32>
    %632 = vector.broadcast %630 : vector<2x1x8xf32> to vector<2x8x8xf32>
    %633 = vector.broadcast %631 : vector<1x8x8xf32> to vector<2x8x8xf32>
    %634 = arith.addf %632, %633 : vector<2x8x8xf32>
    %cst_203 = arith.constant dense<0xFF800000> : vector<2x8xf32>
    %635 = vector.multi_reduction <maximumf>, %634, %cst_203 [2] : vector<2x8x8xf32> to vector<2x8xf32>
    %636 = vector.shape_cast %635 : vector<2x8xf32> to vector<2x8x1xf32>
    %637 = vector.broadcast %636 : vector<2x8x1xf32> to vector<2x8x8xf32>
    %638 = arith.subf %634, %637 : vector<2x8x8xf32>
    %639 = math.exp %638 : vector<2x8x8xf32>
    %cst_204 = arith.constant dense<0.000000e+00> : vector<2x8xf32>
    %640 = vector.multi_reduction <add>, %639, %cst_204 [2] : vector<2x8x8xf32> to vector<2x8xf32>
    %641 = math.log %640 : vector<2x8xf32>
    %642 = arith.addf %635, %641 : vector<2x8xf32>
    %643 = vector.shape_cast %620 : vector<2x8xf32> to vector<2x1x8xf32>
    %644 = vector.shape_cast %565 : vector<8x8xf32> to vector<1x8x8xf32>
    %645 = vector.broadcast %643 : vector<2x1x8xf32> to vector<2x8x8xf32>
    %646 = vector.broadcast %644 : vector<1x8x8xf32> to vector<2x8x8xf32>
    %647 = arith.addf %645, %646 : vector<2x8x8xf32>
    %cst_205 = arith.constant dense<0xFF800000> : vector<2x8xf32>
    %648 = vector.multi_reduction <maximumf>, %647, %cst_205 [2] : vector<2x8x8xf32> to vector<2x8xf32>
    %649 = vector.shape_cast %648 : vector<2x8xf32> to vector<2x8x1xf32>
    %650 = vector.broadcast %649 : vector<2x8x1xf32> to vector<2x8x8xf32>
    %651 = arith.cmpf oeq, %647, %650 : vector<2x8x8xf32>
    %c8_i32_206 = arith.constant 8 : i32
    %652 = vector.broadcast %c8_i32_206 : i32 to vector<2x8x8xi32>
    %653 = arith.select %651, %567, %652 : vector<2x8x8xi1>, vector<2x8x8xi32>
    %cst_207 = arith.constant dense<2147483647> : vector<2x8xi32>
    %654 = vector.multi_reduction <minsi>, %653, %cst_207 [2] : vector<2x8x8xi32> to vector<2x8xi32>
    %c0_208 = arith.constant 0 : index
    %655 = arith.index_cast %622 : i32 to index
    %c0_209 = arith.constant 0 : index
    %656 = vector.load %arg15[%c0_208, %655, %c0_209] : memref<1x16x8xi32, #tpu.memory_space<vmem>>, vector<1x2x8xi32>
    %657 = vector.shape_cast %656 : vector<1x2x8xi32> to vector<2x8xi32>
    %658 = vector.shape_cast %654 : vector<2x8xi32> to vector<1x2x8xi32>
    tpu.vector_store %arg15[%c0_208, %655, %c0_209], %658 {strides = array<i32>} : memref<1x16x8xi32, #tpu.memory_space<vmem>>, vector<1x2x8xi32>,
    %659 = arith.addf %642, %624 : vector<2x8xf32>
    %660 = vector.shape_cast %629 : vector<2x1xi1> to vector<2x1xi1>
    %661 = vector.broadcast %660 : vector<2x1xi1> to vector<2x8xi1>
    %662 = arith.select %661, %659, %616 : vector<2x8xi1>, vector<2x8xf32>
    %663 = arith.addf %648, %624 : vector<2x8xf32>
    %664 = vector.shape_cast %629 : vector<2x1xi1> to vector<2x1xi1>
    %665 = vector.broadcast %664 : vector<2x1xi1> to vector<2x8xi1>
    %666 = arith.select %665, %663, %620 : vector<2x8xi1>, vector<2x8xf32>
    %c3_i32_210 = arith.constant 3 : i32
    %c2_i32_211 = arith.constant 2 : i32
    %667 = arith.muli %c3_i32_210, %c2_i32_211 : i32
    %668 = tpu.assume_multiple %667, 2 : i32
    %669 = arith.index_cast %668 : i32 to index
    %c0_212 = arith.constant 0 : index
    %670 = vector.load %arg19[%669, %c0_212] : memref<16x8xf32, #tpu.memory_space<vmem>>, vector<2x8xf32>
    %c0_213 = arith.constant 0 : index
    %671 = arith.index_cast %668 : i32 to index
    %c0_214 = arith.constant 0 : index
    %672 = vector.load %arg2[%c0_213, %671, %c0_214] : memref<1x16x1xf32, #tpu.memory_space<vmem>>, vector<1x2x1xf32>
    %673 = vector.shape_cast %672 : vector<1x2x1xf32> to vector<2x1xf32>
    %cst_215 = arith.constant 0.000000e+00 : f32
    %674 = vector.broadcast %cst_215 : f32 to vector<2x1xf32>
    %675 = arith.cmpf ogt, %673, %674 : vector<2x1xf32>
    %676 = vector.shape_cast %662 : vector<2x8xf32> to vector<2x1x8xf32>
    %677 = vector.shape_cast %565 : vector<8x8xf32> to vector<1x8x8xf32>
    %678 = vector.broadcast %676 : vector<2x1x8xf32> to vector<2x8x8xf32>
    %679 = vector.broadcast %677 : vector<1x8x8xf32> to vector<2x8x8xf32>
    %680 = arith.addf %678, %679 : vector<2x8x8xf32>
    %cst_216 = arith.constant dense<0xFF800000> : vector<2x8xf32>
    %681 = vector.multi_reduction <maximumf>, %680, %cst_216 [2] : vector<2x8x8xf32> to vector<2x8xf32>
    %682 = vector.shape_cast %681 : vector<2x8xf32> to vector<2x8x1xf32>
    %683 = vector.broadcast %682 : vector<2x8x1xf32> to vector<2x8x8xf32>
    %684 = arith.subf %680, %683 : vector<2x8x8xf32>
    %685 = math.exp %684 : vector<2x8x8xf32>
    %cst_217 = arith.constant dense<0.000000e+00> : vector<2x8xf32>
    %686 = vector.multi_reduction <add>, %685, %cst_217 [2] : vector<2x8x8xf32> to vector<2x8xf32>
    %687 = math.log %686 : vector<2x8xf32>
    %688 = arith.addf %681, %687 : vector<2x8xf32>
    %689 = vector.shape_cast %666 : vector<2x8xf32> to vector<2x1x8xf32>
    %690 = vector.shape_cast %565 : vector<8x8xf32> to vector<1x8x8xf32>
    %691 = vector.broadcast %689 : vector<2x1x8xf32> to vector<2x8x8xf32>
    %692 = vector.broadcast %690 : vector<1x8x8xf32> to vector<2x8x8xf32>
    %693 = arith.addf %691, %692 : vector<2x8x8xf32>
    %cst_218 = arith.constant dense<0xFF800000> : vector<2x8xf32>
    %694 = vector.multi_reduction <maximumf>, %693, %cst_218 [2] : vector<2x8x8xf32> to vector<2x8xf32>
    %695 = vector.shape_cast %694 : vector<2x8xf32> to vector<2x8x1xf32>
    %696 = vector.broadcast %695 : vector<2x8x1xf32> to vector<2x8x8xf32>
    %697 = arith.cmpf oeq, %693, %696 : vector<2x8x8xf32>
    %c8_i32_219 = arith.constant 8 : i32
    %698 = vector.broadcast %c8_i32_219 : i32 to vector<2x8x8xi32>
    %699 = arith.select %697, %567, %698 : vector<2x8x8xi1>, vector<2x8x8xi32>
    %cst_220 = arith.constant dense<2147483647> : vector<2x8xi32>
    %700 = vector.multi_reduction <minsi>, %699, %cst_220 [2] : vector<2x8x8xi32> to vector<2x8xi32>
    %c0_221 = arith.constant 0 : index
    %701 = arith.index_cast %668 : i32 to index
    %c0_222 = arith.constant 0 : index
    %702 = vector.load %arg15[%c0_221, %701, %c0_222] : memref<1x16x8xi32, #tpu.memory_space<vmem>>, vector<1x2x8xi32>
    %703 = vector.shape_cast %702 : vector<1x2x8xi32> to vector<2x8xi32>
    %704 = vector.shape_cast %700 : vector<2x8xi32> to vector<1x2x8xi32>
    tpu.vector_store %arg15[%c0_221, %701, %c0_222], %704 {strides = array<i32>} : memref<1x16x8xi32, #tpu.memory_space<vmem>>, vector<1x2x8xi32>,
    %705 = arith.addf %688, %670 : vector<2x8xf32>
    %706 = vector.shape_cast %675 : vector<2x1xi1> to vector<2x1xi1>
    %707 = vector.broadcast %706 : vector<2x1xi1> to vector<2x8xi1>
    %708 = arith.select %707, %705, %662 : vector<2x8xi1>, vector<2x8xf32>
    %709 = arith.addf %694, %670 : vector<2x8xf32>
    %710 = vector.shape_cast %675 : vector<2x1xi1> to vector<2x1xi1>
    %711 = vector.broadcast %710 : vector<2x1xi1> to vector<2x8xi1>
    %712 = arith.select %711, %709, %666 : vector<2x8xi1>, vector<2x8xf32>
    %c4_i32_223 = arith.constant 4 : i32
    %c2_i32_224 = arith.constant 2 : i32
    %713 = arith.muli %c4_i32_223, %c2_i32_224 : i32
    %714 = tpu.assume_multiple %713, 2 : i32
    %715 = arith.index_cast %714 : i32 to index
    %c0_225 = arith.constant 0 : index
    %716 = vector.load %arg19[%715, %c0_225] : memref<16x8xf32, #tpu.memory_space<vmem>>, vector<2x8xf32>
    %c0_226 = arith.constant 0 : index
    %717 = arith.index_cast %714 : i32 to index
    %c0_227 = arith.constant 0 : index
    %718 = vector.load %arg2[%c0_226, %717, %c0_227] : memref<1x16x1xf32, #tpu.memory_space<vmem>>, vector<1x2x1xf32>
    %719 = vector.shape_cast %718 : vector<1x2x1xf32> to vector<2x1xf32>
    %cst_228 = arith.constant 0.000000e+00 : f32
    %720 = vector.broadcast %cst_228 : f32 to vector<2x1xf32>
    %721 = arith.cmpf ogt, %719, %720 : vector<2x1xf32>
    %722 = vector.shape_cast %708 : vector<2x8xf32> to vector<2x1x8xf32>
    %723 = vector.shape_cast %565 : vector<8x8xf32> to vector<1x8x8xf32>
    %724 = vector.broadcast %722 : vector<2x1x8xf32> to vector<2x8x8xf32>
    %725 = vector.broadcast %723 : vector<1x8x8xf32> to vector<2x8x8xf32>
    %726 = arith.addf %724, %725 : vector<2x8x8xf32>
    %cst_229 = arith.constant dense<0xFF800000> : vector<2x8xf32>
    %727 = vector.multi_reduction <maximumf>, %726, %cst_229 [2] : vector<2x8x8xf32> to vector<2x8xf32>
    %728 = vector.shape_cast %727 : vector<2x8xf32> to vector<2x8x1xf32>
    %729 = vector.broadcast %728 : vector<2x8x1xf32> to vector<2x8x8xf32>
    %730 = arith.subf %726, %729 : vector<2x8x8xf32>
    %731 = math.exp %730 : vector<2x8x8xf32>
    %cst_230 = arith.constant dense<0.000000e+00> : vector<2x8xf32>
    %732 = vector.multi_reduction <add>, %731, %cst_230 [2] : vector<2x8x8xf32> to vector<2x8xf32>
    %733 = math.log %732 : vector<2x8xf32>
    %734 = arith.addf %727, %733 : vector<2x8xf32>
    %735 = vector.shape_cast %712 : vector<2x8xf32> to vector<2x1x8xf32>
    %736 = vector.shape_cast %565 : vector<8x8xf32> to vector<1x8x8xf32>
    %737 = vector.broadcast %735 : vector<2x1x8xf32> to vector<2x8x8xf32>
    %738 = vector.broadcast %736 : vector<1x8x8xf32> to vector<2x8x8xf32>
    %739 = arith.addf %737, %738 : vector<2x8x8xf32>
    %cst_231 = arith.constant dense<0xFF800000> : vector<2x8xf32>
    %740 = vector.multi_reduction <maximumf>, %739, %cst_231 [2] : vector<2x8x8xf32> to vector<2x8xf32>
    %741 = vector.shape_cast %740 : vector<2x8xf32> to vector<2x8x1xf32>
    %742 = vector.broadcast %741 : vector<2x8x1xf32> to vector<2x8x8xf32>
    %743 = arith.cmpf oeq, %739, %742 : vector<2x8x8xf32>
    %c8_i32_232 = arith.constant 8 : i32
    %744 = vector.broadcast %c8_i32_232 : i32 to vector<2x8x8xi32>
    %745 = arith.select %743, %567, %744 : vector<2x8x8xi1>, vector<2x8x8xi32>
    %cst_233 = arith.constant dense<2147483647> : vector<2x8xi32>
    %746 = vector.multi_reduction <minsi>, %745, %cst_233 [2] : vector<2x8x8xi32> to vector<2x8xi32>
    %c0_234 = arith.constant 0 : index
    %747 = arith.index_cast %714 : i32 to index
    %c0_235 = arith.constant 0 : index
    %748 = vector.load %arg15[%c0_234, %747, %c0_235] : memref<1x16x8xi32, #tpu.memory_space<vmem>>, vector<1x2x8xi32>
    %749 = vector.shape_cast %748 : vector<1x2x8xi32> to vector<2x8xi32>
    %750 = vector.shape_cast %746 : vector<2x8xi32> to vector<1x2x8xi32>
    tpu.vector_store %arg15[%c0_234, %747, %c0_235], %750 {strides = array<i32>} : memref<1x16x8xi32, #tpu.memory_space<vmem>>, vector<1x2x8xi32>,
    %751 = arith.addf %734, %716 : vector<2x8xf32>
    %752 = vector.shape_cast %721 : vector<2x1xi1> to vector<2x1xi1>
    %753 = vector.broadcast %752 : vector<2x1xi1> to vector<2x8xi1>
    %754 = arith.select %753, %751, %708 : vector<2x8xi1>, vector<2x8xf32>
    %755 = arith.addf %740, %716 : vector<2x8xf32>
    %756 = vector.shape_cast %721 : vector<2x1xi1> to vector<2x1xi1>
    %757 = vector.broadcast %756 : vector<2x1xi1> to vector<2x8xi1>
    %758 = arith.select %757, %755, %712 : vector<2x8xi1>, vector<2x8xf32>
    %c5_i32_236 = arith.constant 5 : i32
    %c2_i32_237 = arith.constant 2 : i32
    %759 = arith.muli %c5_i32_236, %c2_i32_237 : i32
    %760 = tpu.assume_multiple %759, 2 : i32
    %761 = arith.index_cast %760 : i32 to index
    %c0_238 = arith.constant 0 : index
    %762 = vector.load %arg19[%761, %c0_238] : memref<16x8xf32, #tpu.memory_space<vmem>>, vector<2x8xf32>
    %c0_239 = arith.constant 0 : index
    %763 = arith.index_cast %760 : i32 to index
    %c0_240 = arith.constant 0 : index
    %764 = vector.load %arg2[%c0_239, %763, %c0_240] : memref<1x16x1xf32, #tpu.memory_space<vmem>>, vector<1x2x1xf32>
    %765 = vector.shape_cast %764 : vector<1x2x1xf32> to vector<2x1xf32>
    %cst_241 = arith.constant 0.000000e+00 : f32
    %766 = vector.broadcast %cst_241 : f32 to vector<2x1xf32>
    %767 = arith.cmpf ogt, %765, %766 : vector<2x1xf32>
    %768 = vector.shape_cast %754 : vector<2x8xf32> to vector<2x1x8xf32>
    %769 = vector.shape_cast %565 : vector<8x8xf32> to vector<1x8x8xf32>
    %770 = vector.broadcast %768 : vector<2x1x8xf32> to vector<2x8x8xf32>
    %771 = vector.broadcast %769 : vector<1x8x8xf32> to vector<2x8x8xf32>
    %772 = arith.addf %770, %771 : vector<2x8x8xf32>
    %cst_242 = arith.constant dense<0xFF800000> : vector<2x8xf32>
    %773 = vector.multi_reduction <maximumf>, %772, %cst_242 [2] : vector<2x8x8xf32> to vector<2x8xf32>
    %774 = vector.shape_cast %773 : vector<2x8xf32> to vector<2x8x1xf32>
    %775 = vector.broadcast %774 : vector<2x8x1xf32> to vector<2x8x8xf32>
    %776 = arith.subf %772, %775 : vector<2x8x8xf32>
    %777 = math.exp %776 : vector<2x8x8xf32>
    %cst_243 = arith.constant dense<0.000000e+00> : vector<2x8xf32>
    %778 = vector.multi_reduction <add>, %777, %cst_243 [2] : vector<2x8x8xf32> to vector<2x8xf32>
    %779 = math.log %778 : vector<2x8xf32>
    %780 = arith.addf %773, %779 : vector<2x8xf32>
    %781 = vector.shape_cast %758 : vector<2x8xf32> to vector<2x1x8xf32>
    %782 = vector.shape_cast %565 : vector<8x8xf32> to vector<1x8x8xf32>
    %783 = vector.broadcast %781 : vector<2x1x8xf32> to vector<2x8x8xf32>
    %784 = vector.broadcast %782 : vector<1x8x8xf32> to vector<2x8x8xf32>
    %785 = arith.addf %783, %784 : vector<2x8x8xf32>
    %cst_244 = arith.constant dense<0xFF800000> : vector<2x8xf32>
    %786 = vector.multi_reduction <maximumf>, %785, %cst_244 [2] : vector<2x8x8xf32> to vector<2x8xf32>
    %787 = vector.shape_cast %786 : vector<2x8xf32> to vector<2x8x1xf32>
    %788 = vector.broadcast %787 : vector<2x8x1xf32> to vector<2x8x8xf32>
    %789 = arith.cmpf oeq, %785, %788 : vector<2x8x8xf32>
    %c8_i32_245 = arith.constant 8 : i32
    %790 = vector.broadcast %c8_i32_245 : i32 to vector<2x8x8xi32>
    %791 = arith.select %789, %567, %790 : vector<2x8x8xi1>, vector<2x8x8xi32>
    %cst_246 = arith.constant dense<2147483647> : vector<2x8xi32>
    %792 = vector.multi_reduction <minsi>, %791, %cst_246 [2] : vector<2x8x8xi32> to vector<2x8xi32>
    %c0_247 = arith.constant 0 : index
    %793 = arith.index_cast %760 : i32 to index
    %c0_248 = arith.constant 0 : index
    %794 = vector.load %arg15[%c0_247, %793, %c0_248] : memref<1x16x8xi32, #tpu.memory_space<vmem>>, vector<1x2x8xi32>
    %795 = vector.shape_cast %794 : vector<1x2x8xi32> to vector<2x8xi32>
    %796 = vector.shape_cast %792 : vector<2x8xi32> to vector<1x2x8xi32>
    tpu.vector_store %arg15[%c0_247, %793, %c0_248], %796 {strides = array<i32>} : memref<1x16x8xi32, #tpu.memory_space<vmem>>, vector<1x2x8xi32>,
    %797 = arith.addf %780, %762 : vector<2x8xf32>
    %798 = vector.shape_cast %767 : vector<2x1xi1> to vector<2x1xi1>
    %799 = vector.broadcast %798 : vector<2x1xi1> to vector<2x8xi1>
    %800 = arith.select %799, %797, %754 : vector<2x8xi1>, vector<2x8xf32>
    %801 = arith.addf %786, %762 : vector<2x8xf32>
    %802 = vector.shape_cast %767 : vector<2x1xi1> to vector<2x1xi1>
    %803 = vector.broadcast %802 : vector<2x1xi1> to vector<2x8xi1>
    %804 = arith.select %803, %801, %758 : vector<2x8xi1>, vector<2x8xf32>
    %c6_i32_249 = arith.constant 6 : i32
    %c2_i32_250 = arith.constant 2 : i32
    %805 = arith.muli %c6_i32_249, %c2_i32_250 : i32
    %806 = tpu.assume_multiple %805, 2 : i32
    %807 = arith.index_cast %806 : i32 to index
    %c0_251 = arith.constant 0 : index
    %808 = vector.load %arg19[%807, %c0_251] : memref<16x8xf32, #tpu.memory_space<vmem>>, vector<2x8xf32>
    %c0_252 = arith.constant 0 : index
    %809 = arith.index_cast %806 : i32 to index
    %c0_253 = arith.constant 0 : index
    %810 = vector.load %arg2[%c0_252, %809, %c0_253] : memref<1x16x1xf32, #tpu.memory_space<vmem>>, vector<1x2x1xf32>
    %811 = vector.shape_cast %810 : vector<1x2x1xf32> to vector<2x1xf32>
    %cst_254 = arith.constant 0.000000e+00 : f32
    %812 = vector.broadcast %cst_254 : f32 to vector<2x1xf32>
    %813 = arith.cmpf ogt, %811, %812 : vector<2x1xf32>
    %814 = vector.shape_cast %800 : vector<2x8xf32> to vector<2x1x8xf32>
    %815 = vector.shape_cast %565 : vector<8x8xf32> to vector<1x8x8xf32>
    %816 = vector.broadcast %814 : vector<2x1x8xf32> to vector<2x8x8xf32>
    %817 = vector.broadcast %815 : vector<1x8x8xf32> to vector<2x8x8xf32>
    %818 = arith.addf %816, %817 : vector<2x8x8xf32>
    %cst_255 = arith.constant dense<0xFF800000> : vector<2x8xf32>
    %819 = vector.multi_reduction <maximumf>, %818, %cst_255 [2] : vector<2x8x8xf32> to vector<2x8xf32>
    %820 = vector.shape_cast %819 : vector<2x8xf32> to vector<2x8x1xf32>
    %821 = vector.broadcast %820 : vector<2x8x1xf32> to vector<2x8x8xf32>
    %822 = arith.subf %818, %821 : vector<2x8x8xf32>
    %823 = math.exp %822 : vector<2x8x8xf32>
    %cst_256 = arith.constant dense<0.000000e+00> : vector<2x8xf32>
    %824 = vector.multi_reduction <add>, %823, %cst_256 [2] : vector<2x8x8xf32> to vector<2x8xf32>
    %825 = math.log %824 : vector<2x8xf32>
    %826 = arith.addf %819, %825 : vector<2x8xf32>
    %827 = vector.shape_cast %804 : vector<2x8xf32> to vector<2x1x8xf32>
    %828 = vector.shape_cast %565 : vector<8x8xf32> to vector<1x8x8xf32>
    %829 = vector.broadcast %827 : vector<2x1x8xf32> to vector<2x8x8xf32>
    %830 = vector.broadcast %828 : vector<1x8x8xf32> to vector<2x8x8xf32>
    %831 = arith.addf %829, %830 : vector<2x8x8xf32>
    %cst_257 = arith.constant dense<0xFF800000> : vector<2x8xf32>
    %832 = vector.multi_reduction <maximumf>, %831, %cst_257 [2] : vector<2x8x8xf32> to vector<2x8xf32>
    %833 = vector.shape_cast %832 : vector<2x8xf32> to vector<2x8x1xf32>
    %834 = vector.broadcast %833 : vector<2x8x1xf32> to vector<2x8x8xf32>
    %835 = arith.cmpf oeq, %831, %834 : vector<2x8x8xf32>
    %c8_i32_258 = arith.constant 8 : i32
    %836 = vector.broadcast %c8_i32_258 : i32 to vector<2x8x8xi32>
    %837 = arith.select %835, %567, %836 : vector<2x8x8xi1>, vector<2x8x8xi32>
    %cst_259 = arith.constant dense<2147483647> : vector<2x8xi32>
    %838 = vector.multi_reduction <minsi>, %837, %cst_259 [2] : vector<2x8x8xi32> to vector<2x8xi32>
    %c0_260 = arith.constant 0 : index
    %839 = arith.index_cast %806 : i32 to index
    %c0_261 = arith.constant 0 : index
    %840 = vector.load %arg15[%c0_260, %839, %c0_261] : memref<1x16x8xi32, #tpu.memory_space<vmem>>, vector<1x2x8xi32>
    %841 = vector.shape_cast %840 : vector<1x2x8xi32> to vector<2x8xi32>
    %842 = vector.shape_cast %838 : vector<2x8xi32> to vector<1x2x8xi32>
    tpu.vector_store %arg15[%c0_260, %839, %c0_261], %842 {strides = array<i32>} : memref<1x16x8xi32, #tpu.memory_space<vmem>>, vector<1x2x8xi32>,
    %843 = arith.addf %826, %808 : vector<2x8xf32>
    %844 = vector.shape_cast %813 : vector<2x1xi1> to vector<2x1xi1>
    %845 = vector.broadcast %844 : vector<2x1xi1> to vector<2x8xi1>
    %846 = arith.select %845, %843, %800 : vector<2x8xi1>, vector<2x8xf32>
    %847 = arith.addf %832, %808 : vector<2x8xf32>
    %848 = vector.shape_cast %813 : vector<2x1xi1> to vector<2x1xi1>
    %849 = vector.broadcast %848 : vector<2x1xi1> to vector<2x8xi1>
    %850 = arith.select %849, %847, %804 : vector<2x8xi1>, vector<2x8xf32>
    %c7_i32_262 = arith.constant 7 : i32
    %c2_i32_263 = arith.constant 2 : i32
    %851 = arith.muli %c7_i32_262, %c2_i32_263 : i32
    %852 = tpu.assume_multiple %851, 2 : i32
    %853 = arith.index_cast %852 : i32 to index
    %c0_264 = arith.constant 0 : index
    %854 = vector.load %arg19[%853, %c0_264] : memref<16x8xf32, #tpu.memory_space<vmem>>, vector<2x8xf32>
    %c0_265 = arith.constant 0 : index
    %855 = arith.index_cast %852 : i32 to index
    %c0_266 = arith.constant 0 : index
    %856 = vector.load %arg2[%c0_265, %855, %c0_266] : memref<1x16x1xf32, #tpu.memory_space<vmem>>, vector<1x2x1xf32>
    %857 = vector.shape_cast %856 : vector<1x2x1xf32> to vector<2x1xf32>
    %cst_267 = arith.constant 0.000000e+00 : f32
    %858 = vector.broadcast %cst_267 : f32 to vector<2x1xf32>
    %859 = arith.cmpf ogt, %857, %858 : vector<2x1xf32>
    %860 = vector.shape_cast %846 : vector<2x8xf32> to vector<2x1x8xf32>
    %861 = vector.shape_cast %565 : vector<8x8xf32> to vector<1x8x8xf32>
    %862 = vector.broadcast %860 : vector<2x1x8xf32> to vector<2x8x8xf32>
    %863 = vector.broadcast %861 : vector<1x8x8xf32> to vector<2x8x8xf32>
    %864 = arith.addf %862, %863 : vector<2x8x8xf32>
    %cst_268 = arith.constant dense<0xFF800000> : vector<2x8xf32>
    %865 = vector.multi_reduction <maximumf>, %864, %cst_268 [2] : vector<2x8x8xf32> to vector<2x8xf32>
    %866 = vector.shape_cast %865 : vector<2x8xf32> to vector<2x8x1xf32>
    %867 = vector.broadcast %866 : vector<2x8x1xf32> to vector<2x8x8xf32>
    %868 = arith.subf %864, %867 : vector<2x8x8xf32>
    %869 = math.exp %868 : vector<2x8x8xf32>
    %cst_269 = arith.constant dense<0.000000e+00> : vector<2x8xf32>
    %870 = vector.multi_reduction <add>, %869, %cst_269 [2] : vector<2x8x8xf32> to vector<2x8xf32>
    %871 = math.log %870 : vector<2x8xf32>
    %872 = arith.addf %865, %871 : vector<2x8xf32>
    %873 = vector.shape_cast %850 : vector<2x8xf32> to vector<2x1x8xf32>
    %874 = vector.shape_cast %565 : vector<8x8xf32> to vector<1x8x8xf32>
    %875 = vector.broadcast %873 : vector<2x1x8xf32> to vector<2x8x8xf32>
    %876 = vector.broadcast %874 : vector<1x8x8xf32> to vector<2x8x8xf32>
    %877 = arith.addf %875, %876 : vector<2x8x8xf32>
    %cst_270 = arith.constant dense<0xFF800000> : vector<2x8xf32>
    %878 = vector.multi_reduction <maximumf>, %877, %cst_270 [2] : vector<2x8x8xf32> to vector<2x8xf32>
    %879 = vector.shape_cast %878 : vector<2x8xf32> to vector<2x8x1xf32>
    %880 = vector.broadcast %879 : vector<2x8x1xf32> to vector<2x8x8xf32>
    %881 = arith.cmpf oeq, %877, %880 : vector<2x8x8xf32>
    %c8_i32_271 = arith.constant 8 : i32
    %882 = vector.broadcast %c8_i32_271 : i32 to vector<2x8x8xi32>
    %883 = arith.select %881, %567, %882 : vector<2x8x8xi1>, vector<2x8x8xi32>
    %cst_272 = arith.constant dense<2147483647> : vector<2x8xi32>
    %884 = vector.multi_reduction <minsi>, %883, %cst_272 [2] : vector<2x8x8xi32> to vector<2x8xi32>
    %c0_273 = arith.constant 0 : index
    %885 = arith.index_cast %852 : i32 to index
    %c0_274 = arith.constant 0 : index
    %886 = vector.load %arg15[%c0_273, %885, %c0_274] : memref<1x16x8xi32, #tpu.memory_space<vmem>>, vector<1x2x8xi32>
    %887 = vector.shape_cast %886 : vector<1x2x8xi32> to vector<2x8xi32>
    %888 = vector.shape_cast %884 : vector<2x8xi32> to vector<1x2x8xi32>
    tpu.vector_store %arg15[%c0_273, %885, %c0_274], %888 {strides = array<i32>} : memref<1x16x8xi32, #tpu.memory_space<vmem>>, vector<1x2x8xi32>,
    %889 = arith.addf %872, %854 : vector<2x8xf32>
    %890 = vector.shape_cast %859 : vector<2x1xi1> to vector<2x1xi1>
    %891 = vector.broadcast %890 : vector<2x1xi1> to vector<2x8xi1>
    %892 = arith.select %891, %889, %846 : vector<2x8xi1>, vector<2x8xf32>
    %893 = arith.addf %878, %854 : vector<2x8xf32>
    %894 = vector.shape_cast %859 : vector<2x1xi1> to vector<2x1xi1>
    %895 = vector.broadcast %894 : vector<2x1xi1> to vector<2x8xi1>
    %896 = arith.select %895, %893, %850 : vector<2x8xi1>, vector<2x8xf32>
    %c7_i32_275 = arith.constant 7 : i32
    %897 = vector.broadcast %539 : vector<1x8xf32> to vector<2x8xf32>
    %898 = arith.addf %892, %897 : vector<2x8xf32>
    %cst_276 = arith.constant dense<0xFF800000> : vector<2xf32>
    %899 = vector.multi_reduction <maximumf>, %898, %cst_276 [1] : vector<2x8xf32> to vector<2xf32>
    %900 = vector.shape_cast %899 : vector<2xf32> to vector<2x1xf32>
    %901 = vector.broadcast %900 : vector<2x1xf32> to vector<2x8xf32>
    %902 = arith.subf %898, %901 : vector<2x8xf32>
    %903 = math.exp %902 : vector<2x8xf32>
    %cst_277 = arith.constant dense<0.000000e+00> : vector<2xf32>
    %904 = vector.multi_reduction <add>, %903, %cst_277 [1] : vector<2x8xf32> to vector<2xf32>
    %905 = vector.shape_cast %904 : vector<2xf32> to vector<2x1xf32>
    %906 = math.log %905 : vector<2x1xf32>
    %907 = arith.addf %900, %906 : vector<2x1xf32>
    %908 = arith.subf %564, %907 : vector<2x1xf32>
    %c0_278 = arith.constant 0 : index
    %c0_279 = arith.constant 0 : index
    %c0_280 = arith.constant 0 : index
    %909 = vector.load %arg14[%c0_278, %c0_279, %c0_280] : memref<1x2x1xf32, #tpu.memory_space<vmem>>, vector<1x2x1xf32>
    %910 = vector.shape_cast %909 : vector<1x2x1xf32> to vector<2x1xf32>
    %911 = vector.shape_cast %908 : vector<2x1xf32> to vector<1x2x1xf32>
    tpu.vector_store %arg14[%c0_278, %c0_279, %c0_280], %911 {strides = array<i32>} : memref<1x2x1xf32, #tpu.memory_space<vmem>>, vector<1x2x1xf32>,
    %912 = vector.broadcast %539 : vector<1x8xf32> to vector<2x8xf32>
    %913 = arith.addf %896, %912 : vector<2x8xf32>
    %cst_281 = arith.constant dense<0xFF800000> : vector<2xf32>
    %914 = vector.multi_reduction <maximumf>, %913, %cst_281 [1] : vector<2x8xf32> to vector<2xf32>
    %915 = vector.shape_cast %914 : vector<2xf32> to vector<2x1xf32>
    %916 = vector.broadcast %915 : vector<2x1xf32> to vector<2x8xf32>
    %917 = arith.cmpf oeq, %913, %916 : vector<2x8xf32>
    %c8_i32_282 = arith.constant 8 : i32
    %918 = vector.broadcast %c8_i32_282 : i32 to vector<2x8xi32>
    %919 = arith.select %917, %566, %918 : vector<2x8xi1>, vector<2x8xi32>
    %cst_283 = arith.constant dense<2147483647> : vector<2xi32>
    %920 = vector.multi_reduction <minsi>, %919, %cst_283 [1] : vector<2x8xi32> to vector<2xi32>
    %921 = vector.shape_cast %920 : vector<2xi32> to vector<2x1xi32>
    %c0_284 = arith.constant 0 : index
    %c0_285 = arith.constant 0 : index
    %c0_286 = arith.constant 0 : index
    %922 = vector.load %arg16[%c0_284, %c0_285, %c0_286] : memref<1x2x1xi32, #tpu.memory_space<vmem>>, vector<1x2x1xi32>
    %923 = vector.shape_cast %922 : vector<1x2x1xi32> to vector<2x1xi32>
    %924 = vector.shape_cast %921 : vector<2x1xi32> to vector<1x2x1xi32>
    tpu.vector_store %arg16[%c0_284, %c0_285, %c0_286], %924 {strides = array<i32>} : memref<1x2x1xi32, #tpu.memory_space<vmem>>, vector<1x2x1xi32>,
    return
  }
  func.func @transform_0(%arg0: i32) -> (i32, i32, i32) {
    %c0_i32 = arith.constant 0 : i32
    %c0_i32_0 = arith.constant 0 : i32
    %c0_i32_1 = arith.constant 0 : i32
    return %arg0, %c0_i32, %c0_i32_0 : i32, i32, i32
  }
  func.func @transform_1(%arg0: i32) -> (i32, i32, i32) {
    %c0_i32 = arith.constant 0 : i32
    %c0_i32_0 = arith.constant 0 : i32
    %c0_i32_1 = arith.constant 0 : i32
    return %arg0, %c0_i32, %c0_i32_0 : i32, i32, i32
  }
  func.func @transform_2(%arg0: i32) -> (i32, i32, i32) {
    %c0_i32 = arith.constant 0 : i32
    %c0_i32_0 = arith.constant 0 : i32
    %c0_i32_1 = arith.constant 0 : i32
    return %arg0, %c0_i32, %c0_i32_0 : i32, i32, i32
  }
  func.func @transform_3(%arg0: i32) -> (i32, i32) {
    %c0_i32 = arith.constant 0 : i32
    %c0_i32_0 = arith.constant 0 : i32
    %c0_i32_1 = arith.constant 0 : i32
    return %c0_i32, %c0_i32_0 : i32, i32
  }
  func.func @transform_4(%arg0: i32) -> (i32, i32) {
    %c0_i32 = arith.constant 0 : i32
    %c0_i32_0 = arith.constant 0 : i32
    %c0_i32_1 = arith.constant 0 : i32
    return %c0_i32, %c0_i32_0 : i32, i32
  }
  func.func @transform_5(%arg0: i32) -> (i32, i32) {
    %c0_i32 = arith.constant 0 : i32
    %c0_i32_0 = arith.constant 0 : i32
    %c0_i32_1 = arith.constant 0 : i32
    return %c0_i32, %c0_i32_0 : i32, i32
  }
  func.func @transform_6(%arg0: i32) -> (i32, i32) {
    %c0_i32 = arith.constant 0 : i32
    %c0_i32_0 = arith.constant 0 : i32
    %c0_i32_1 = arith.constant 0 : i32
    return %c0_i32, %c0_i32_0 : i32, i32
  }
  func.func @transform_7(%arg0: i32) -> (i32, i32) {
    %c0_i32 = arith.constant 0 : i32
    %c0_i32_0 = arith.constant 0 : i32
    %c0_i32_1 = arith.constant 0 : i32
    return %c0_i32, %c0_i32_0 : i32, i32
  }
  func.func @transform_8(%arg0: i32) -> (i32, i32) {
    %c0_i32 = arith.constant 0 : i32
    %c0_i32_0 = arith.constant 0 : i32
    %c0_i32_1 = arith.constant 0 : i32
    return %c0_i32, %c0_i32_0 : i32, i32
  }
  func.func @transform_9(%arg0: i32) -> (i32, i32) {
    %c0_i32 = arith.constant 0 : i32
    %c0_i32_0 = arith.constant 0 : i32
    %c0_i32_1 = arith.constant 0 : i32
    return %c0_i32, %c0_i32_0 : i32, i32
  }
  func.func @transform_10(%arg0: i32) -> (i32, i32) {
    %c0_i32 = arith.constant 0 : i32
    %c0_i32_0 = arith.constant 0 : i32
    %c0_i32_1 = arith.constant 0 : i32
    return %c0_i32, %c0_i32_0 : i32, i32
  }
  func.func @transform_11(%arg0: i32) -> (i32, i32) {
    %c0_i32 = arith.constant 0 : i32
    %c0_i32_0 = arith.constant 0 : i32
    %c0_i32_1 = arith.constant 0 : i32
    return %c0_i32, %c0_i32_0 : i32, i32
  }
  func.func @transform_12(%arg0: i32) -> (i32, i32) {
    %c0_i32 = arith.constant 0 : i32
    %c0_i32_0 = arith.constant 0 : i32
    %c0_i32_1 = arith.constant 0 : i32
    return %c0_i32, %c0_i32_0 : i32, i32
  }
  func.func @transform_13(%arg0: i32) -> (i32, i32, i32) {
    %c0_i32 = arith.constant 0 : i32
    %c0_i32_0 = arith.constant 0 : i32
    %c0_i32_1 = arith.constant 0 : i32
    return %arg0, %c0_i32, %c0_i32_0 : i32, i32, i32
  }
  func.func @transform_14(%arg0: i32) -> (i32, i32, i32) {
    %c0_i32 = arith.constant 0 : i32
    %c0_i32_0 = arith.constant 0 : i32
    %c0_i32_1 = arith.constant 0 : i32
    return %arg0, %c0_i32, %c0_i32_0 : i32, i32, i32
  }
  func.func @transform_15(%arg0: i32) -> (i32, i32, i32) {
    %c0_i32 = arith.constant 0 : i32
    %c0_i32_0 = arith.constant 0 : i32
    %c0_i32_1 = arith.constant 0 : i32
    return %arg0, %c0_i32, %c0_i32_0 : i32, i32, i32
  }
}

</mosaic_0001>

<llo_original>
// kernel: tpu_custom_call.1
$region0: #{tpu_custom_call.1}
  #allocation0 [shape = 'u32[]', space=smem, size = 0x4, offset = 0x4, fixed_abs, tag = 'smem constant byte address 0x4 - core index']
  #allocation1 [shape = 'u32[144,128]{1,0:T(1,128)}', space=vmem, size = 0x12000, scoped, tag = 'internal scratch']
  #allocation2 [shape = 'f32[16,128]{1,0:T(8,128)}', space=vmem, size = 0x2000, scoped, tag = 'scratch operand']
  #allocation3 [shape = 'f32[16,32]{1,0:T(8,128)}', space=vmem, size = 0x2000, scoped, tag = 'scratch operand']
  #allocation4 [shape = 'f32[16,8]{1,0:T(8,128)}', space=vmem, size = 0x2000, scoped, tag = 'scratch operand']
  %s0 = inlined_call_operand.vmem [shape: bf16[1,16,32], index: 0, kind: input, shape index: {}]
  %s1 = inlined_call_operand.vmem [shape: f32[1,16,1], index: 1, kind: input, shape index: {}]
  %s2 = inlined_call_operand.vmem [shape: s32[1,16,1], index: 2, kind: input, shape index: {}]
  %s3 = inlined_call_operand.vmem [shape: bf16[32,128], index: 3, kind: input, shape index: {}]
  %s4 = inlined_call_operand.vmem [shape: f32[1,128], index: 4, kind: input, shape index: {}]
  %s5 = inlined_call_operand.vmem [shape: bf16[32,64], index: 5, kind: input, shape index: {}]
  %s6 = inlined_call_operand.vmem [shape: bf16[32,8], index: 6, kind: input, shape index: {}]
  %s7 = inlined_call_operand.vmem [shape: f32[1,8], index: 7, kind: input, shape index: {}]
  %s8 = inlined_call_operand.vmem [shape: f32[8,8], index: 8, kind: input, shape index: {}]
  %s9 = inlined_call_operand.vmem [shape: f32[8,8], index: 9, kind: input, shape index: {}]
  %s10 = inlined_call_operand.vmem [shape: f32[1,8], index: 10, kind: input, shape index: {}]
  %s11 = inlined_call_operand.vmem [shape: f32[1,8], index: 11, kind: input, shape index: {}]
  %s12 = inlined_call_operand.vmem [shape: f32[2,16], index: 12, kind: input, shape index: {}]
  %s13 = inlined_call_operand.vmem [shape: f32[1,2,1], index: 13, kind: output, shape index: {0}]
  %s14 = inlined_call_operand.vmem [shape: s32[1,16,8], index: 14, kind: output, shape index: {1}]
  %s15 = inlined_call_operand.vmem [shape: s32[1,2,1], index: 15, kind: output, shape index: {2}]
  %16 = xla_tuple %s13, %s14, %s15
  %s17 = sld [smem:[#allocation0]]
  $region78: #{tpu_custom_call.1} parent=0
    _
  %s19 = ssub.s32 1, %s17
  %s20 = scalar_select 0, %s19, %s17
  // Predicated region
  $region2: #{tpu_custom_call.1} parent=0 // pred_check
    _
  $region3: #{tpu_custom_call.1} parent=0 // pred_check_branch
    %22 = sbr.rel (0) target = $region5
  $region4: #{tpu_custom_call.1} parent=0 // pred_region
    _
  $region5: #{tpu_custom_call.1} parent=0 // pred_fallthru
    _
  // Predicated region
  $region6: #{tpu_custom_call.1} parent=0 // pred_check
    _
  $region7: #{tpu_custom_call.1} parent=0 // pred_check_branch
    %24 = sbr.rel (0) target = $region9
  $region8: #{tpu_custom_call.1} parent=0 // pred_region
    _
  $region9: #{tpu_custom_call.1} parent=0 // pred_fallthru
    _
  // Predicated region
  $region10: #{tpu_custom_call.1} parent=0 // pred_check
    _
  $region11: #{tpu_custom_call.1} parent=0 // pred_check_branch
    %26 = sbr.rel (0) target = $region13
  $region12: #{tpu_custom_call.1} parent=0 // pred_region
    _
  $region13: #{tpu_custom_call.1} parent=0 // pred_fallthru
    _
  // Predicated region
  $region14: #{tpu_custom_call.1} parent=0 // pred_check
    _
  $region15: #{tpu_custom_call.1} parent=0 // pred_check_branch
    %28 = sbr.rel (0) target = $region17
  $region16: #{tpu_custom_call.1} parent=0 // pred_region
    _
  $region17: #{tpu_custom_call.1} parent=0 // pred_fallthru
    _
  // Predicated region
  $region18: #{tpu_custom_call.1} parent=0 // pred_check
    _
  $region19: #{tpu_custom_call.1} parent=0 // pred_check_branch
    %30 = sbr.rel (0) target = $region21
  $region20: #{tpu_custom_call.1} parent=0 // pred_region
    _
  $region21: #{tpu_custom_call.1} parent=0 // pred_fallthru
    _
  // Predicated region
  $region22: #{tpu_custom_call.1} parent=0 // pred_check
    _
  $region23: #{tpu_custom_call.1} parent=0 // pred_check_branch
    %32 = sbr.rel (0) target = $region25
  $region24: #{tpu_custom_call.1} parent=0 // pred_region
    _
  $region25: #{tpu_custom_call.1} parent=0 // pred_fallthru
    _
  // Predicated region
  $region26: #{tpu_custom_call.1} parent=0 // pred_check
    _
  $region27: #{tpu_custom_call.1} parent=0 // pred_check_branch
    %34 = sbr.rel (0) target = $region29
  $region28: #{tpu_custom_call.1} parent=0 // pred_region
    _
  $region29: #{tpu_custom_call.1} parent=0 // pred_fallthru
    _
  // Predicated region
  $region30: #{tpu_custom_call.1} parent=0 // pred_check
    _
  $region31: #{tpu_custom_call.1} parent=0 // pred_check_branch
    %36 = sbr.rel (0) target = $region33
  $region32: #{tpu_custom_call.1} parent=0 // pred_region
    _
  $region33: #{tpu_custom_call.1} parent=0 // pred_fallthru
    _
  // Predicated region
  $region34: #{tpu_custom_call.1} parent=0 // pred_check
    _
  $region35: #{tpu_custom_call.1} parent=0 // pred_check_branch
    %38 = sbr.rel (0) target = $region37
  $region36: #{tpu_custom_call.1} parent=0 // pred_region
    _
  $region37: #{tpu_custom_call.1} parent=0 // pred_fallthru
    _
  // Predicated region
  $region38: #{tpu_custom_call.1} parent=0 // pred_check
    _
  $region39: #{tpu_custom_call.1} parent=0 // pred_check_branch
    %40 = sbr.rel (0) target = $region41
  $region40: #{tpu_custom_call.1} parent=0 // pred_region
    _
  $region41: #{tpu_custom_call.1} parent=0 // pred_fallthru
    _
  // Predicated region
  $region42: #{tpu_custom_call.1} parent=0 // pred_check
    _
  $region43: #{tpu_custom_call.1} parent=0 // pred_check_branch
    %42 = sbr.rel (0) target = $region45
  $region44: #{tpu_custom_call.1} parent=0 // pred_region
    _
  $region45: #{tpu_custom_call.1} parent=0 // pred_fallthru
    _
  // Predicated region
  $region46: #{tpu_custom_call.1} parent=0 // pred_check
    _
  $region47: #{tpu_custom_call.1} parent=0 // pred_check_branch
    %44 = sbr.rel (0) target = $region49
  $region48: #{tpu_custom_call.1} parent=0 // pred_region
    _
  $region49: #{tpu_custom_call.1} parent=0 // pred_fallthru
    _
  // Predicated region
  $region50: #{tpu_custom_call.1} parent=0 // pred_check
    _
  $region51: #{tpu_custom_call.1} parent=0 // pred_check_branch
    %46 = sbr.rel (0) target = $region53
  $region52: #{tpu_custom_call.1} parent=0 // pred_region
    _
  $region53: #{tpu_custom_call.1} parent=0 // pred_fallthru
    _
  %v48 = vld [vmem:[%s1] sm:$0xff]
  %v49 = vld [vmem:[%s1 + $0x8] sm:$0xff]
  %v50 = vld [vmem:[%s0] sm:$0xf]
  %v51 = vld [vmem:[%s0 + $0x4] sm:$0xf]
  %v52 = vld [vmem:[%s3] sm:$0xf]
  %v53 = vld [vmem:[%s3 + $0x4] sm:$0xf]
  %v54 = vld [vmem:[%s3 + $0x8] sm:$0xf]
  %v55 = vld [vmem:[%s3 + $0xc] sm:$0xf]
  %v56 = vld [vmem:[%s4] sm:$0x1]
  %v58 = vlaneseq
  %v59 = vshrl.u32 %v58, 7
  %v60 = vsub.s32 0, %v59
  %v61 = vrot.slane %v56, %v60
  %v65 = vunpack.c.l.b16 %v50
  %v66 = vunpack.c.l.b16 %v51
  %v67 = vpack.c.b16 %v66, %v65
  %v72 = vunpack.c.l.b16 %v52
  %v73 = vunpack.c.l.b16 %v53
  %v74 = vunpack.c.l.b16 %v54
  %v75 = vunpack.c.l.b16 %v55
  %v76 = vpack.c.b16 %v73, %v72
  %v77 = vpack.c.b16 %v75, %v74
  %vm80 = vcmask 261120
  %v82 = vsel %vm80, %v67, 0
  %84 = vmatprep.subr.bf16.mxu0 0
  %85 = vmatpush1.bf16.msra.mxu0 %v76
  %86 = vmatprep.subr.bf16.mxu0 0
  %87 = vmatpush1.bf16.msra.mxu0 %v77
  %88 = vmatprep.subr.bf16.mxu0 0
  %89 = vmatpush1.bf16.msra.mxu0 0
  %90 = vmatprep.subr.bf16.mxu0 0
  %91 = vmatpush1.bf16.msra.mxu0 0
  %92 = vmatprep.subr.bf16.mxu0 0
  %93 = vmatpush1.bf16.msra.mxu0 0
  %94 = vmatprep.subr.bf16.mxu0 0
  %95 = vmatpush1.bf16.msra.mxu0 0
  %96 = vmatprep.subr.bf16.mxu0 0
  %97 = vmatpush1.bf16.msra.mxu0 0
  %98 = vmatprep.subr.bf16.mxu0 0
  %99 = vmatpush1.bf16.msra.mxu0 0
  %100 = vmatprep.subr.bf16.mxu0 0
  %101 = vmatpush1.bf16.msra.mxu0 0
  %102 = vmatprep.subr.bf16.mxu0 0
  %103 = vmatpush1.bf16.msra.mxu0 0
  %104 = vmatprep.subr.bf16.mxu0 0
  %105 = vmatpush1.bf16.msra.mxu0 0
  %106 = vmatprep.subr.bf16.mxu0 0
  %107 = vmatpush1.bf16.msra.mxu0 0
  %108 = vmatprep.subr.bf16.mxu0 0
  %109 = vmatpush1.bf16.msra.mxu0 0
  %110 = vmatprep.subr.bf16.mxu0 0
  %111 = vmatpush1.bf16.msra.mxu0 0
  %112 = vmatprep.subr.bf16.mxu0 0
  %113 = vmatpush1.bf16.msra.mxu0 0
  %114 = vmatprep.subr.bf16.mxu0 0
  %115 = vmatpush1.bf16.msra.mxu0 0
  %116 = vmatprep.mubr.bf16.mxu0 0
  %117 = vmatmul.mubr.bf16.gmra.mrb[0].mxu0 %v82
  %v118 = vpop.f32.mrb[0].mxu0
  %v119 = vadd.f32 %v61, %v118
  %v120 = vpop.f32.mrb[0].mxu0
  %v121 = vpop.f32.mrb[0].mxu0
  %v122 = vadd.f32 %v61, %v121
  %v123 = vpop.f32.mrb[0].mxu0
  %124 = vdwg.mxu0
  %125 = vst [vmem:[#allocation2] sm:$0xff] %v119
  %126 = vst [vmem:[#allocation2 + $0x8] sm:$0xff] %v122
  %v127 = vld [vmem:[%s5] sm:$0xf]
  %v128 = vld [vmem:[%s5 + $0x4] sm:$0xf]
  %v129 = vld [vmem:[%s5 + $0x8] sm:$0xf]
  %v130 = vld [vmem:[%s5 + $0xc] sm:$0xf]
  %v131 = vlaneseq
  %v132 = vshrl.u32 %v131, 7
  %vm133 = vcmp.lt.s32.totalorder %v132, 2
  %v134 = vlaneseq
  %v135 = vand.u32 %v134, 127
  %vm136 = vcmp.lt.s32.totalorder %v135, 16
  %vm137 = vmxor %vm133, %vm136
  %vm138 = vmxor %vm137, 1
  %v139 = vld [vmem:[#allocation2] sm:$0x3]
  %s140 = scalar_lea.vmem [#allocation2], 14
  %v141 = vld [vmem:[%s140] sm:$0x3]
  %v143 = vrot.slane %v141, 6
  %144 = vrot.lane.b32.xlu0 %v143, 64
  %v145 = vpop.permute.xlu0 %144
  %vm147 = vcmask 1041408
  %v148 = vsel %vm147, %v139, %v145
  %v149 = vld [vmem:[%s1] sm:$0x3]
  %s150 = scalar_lea.vmem %s1, 14
  %v151 = vld [vmem:[%s150] sm:$0x3]
  %v153 = vrot.slane %v151, 6
  %v155 = vsel %vm147, %v149, %v153
  %vm156 = vcmp.gt.f32.partialorder %v155, 0.0
  %v157 = vpack.c.bf16 0.0, 0.0
  %v162 = vunpack.c.l.b16 %v127
  %v163 = vunpack.c.l.b16 %v128
  %v164 = vunpack.c.l.b16 %v129
  %v165 = vunpack.c.l.b16 %v130
  %v166 = vpack.c.b16 %v163, %v162
  %v167 = vpack.c.b16 %v165, %v164
  %v171 = vsel %vm80, %v157, 0
  %173 = vmatprep.subr.bf16.mxu0 0
  %174 = vmatpush1.bf16.msra.mxu0 %v166
  %175 = vmatprep.subr.bf16.mxu0 0
  %176 = vmatpush1.bf16.msra.mxu0 %v167
  %177 = vmatprep.subr.bf16.mxu0 0
  %178 = vmatpush1.bf16.msra.mxu0 0
  %179 = vmatprep.subr.bf16.mxu0 0
  %180 = vmatpush1.bf16.msra.mxu0 0
  %181 = vmatprep.subr.bf16.mxu0 0
  %182 = vmatpush1.bf16.msra.mxu0 0
  %183 = vmatprep.subr.bf16.mxu0 0
  %184 = vmatpush1.bf16.msra.mxu0 0
  %185 = vmatprep.subr.bf16.mxu0 0
  %186 = vmatpush1.bf16.msra.mxu0 0
  %187 = vmatprep.subr.bf16.mxu0 0
  %188 = vmatpush1.bf16.msra.mxu0 0
  %189 = vmatprep.subr.bf16.mxu0 0
  %190 = vmatpush1.bf16.msra.mxu0 0
  %191 = vmatprep.subr.bf16.mxu0 0
  %192 = vmatpush1.bf16.msra.mxu0 0
  %193 = vmatprep.subr.bf16.mxu0 0
  %194 = vmatpush1.bf16.msra.mxu0 0
  %195 = vmatprep.subr.bf16.mxu0 0
  %196 = vmatpush1.bf16.msra.mxu0 0
  %197 = vmatprep.subr.bf16.mxu0 0
  %198 = vmatpush1.bf16.msra.mxu0 0
  %199 = vmatprep.subr.bf16.mxu0 0
  %200 = vmatpush1.bf16.msra.mxu0 0
  %201 = vmatprep.subr.bf16.mxu0 0
  %202 = vmatpush1.bf16.msra.mxu0 0
  %203 = vmatprep.subr.bf16.mxu0 0
  %204 = vmatpush1.bf16.msra.mxu0 0
  %205 = vmatprep.mubr.bf16.mxu0 0
  %206 = vmatmul.mubr.bf16.gmra.mrb[0].mxu0 %v171
  %v207 = vpop.f32.mrb[0].mxu0
  %v208 = vadd.f32 0.0, %v207
  %v209 = vpop.f32.mrb[0].mxu0
  %v210 = vpop.f32.mrb[0].mxu0
  %v211 = vpop.f32.mrb[0].mxu0
  %212 = vdwg.mxu0
  %v213 = vadd.f32 %v148, %v208
  %v214 = vxor.u32 %v213, 2147483648
  %v215 = vmul.f32 %v214, 1.442695
  %v216 = vpow.pop %v215
  %v217 = vadd.f32 %v216, 1.0
  %v218 = vrcp.pop %v217
  %v219 = vmul.f32 1.0, %v218
  %v220 = vtanh.pop %v213
  %v221 = vmul.f32 %v219, 0.0
  %223 = vrot.lane.b32.xlu0 %v220, 96
  %v224 = vpop.permute.xlu0 %223
  %v226 = vmul.f32 %v219, %v224
  %228 = vrot.lane.b32.xlu0 %v226, 16
  %v229 = vpop.permute.xlu0 %228
  %v231 = vadd.f32 %v221, %v229
  %v232 = vtanh.pop %v231
  %234 = vrot.lane.b32.xlu0 %v232, 32
  %v235 = vpop.permute.xlu0 %234
  %v237 = vmul.f32 %v219, %v235
  %v238 = vsel %vm156, 1, 0
  %239 = vset.pattern.permute.xlu0 0
  %240 = vperm.xlu0 %239, %v238
  %v241 = vpop.permute.xlu0 %240
  %vm242 = vcmp.eq.s32.totalorder %v241, 1
  %v243 = vsel %vm242, %v237, 0.0
  %v244 = vsel %vm242, %v231, 0.0
  %246 = vrot.lane.b32.xlu0 %v237, 80
  %v247 = vpop.permute.xlu0 %246
  %vm249 = vcmask 123904
  %250 = vst.msk [vmem:[#allocation3] sm:$0x3] %vm249, %v247
  %251 = vrot.lane.b32.xlu0 %v237, 96
  %v252 = vpop.permute.xlu0 %251
  %s254 = scalar_lea.vmem [#allocation3], 14
  %vm255 = vcmask 257154
  %256 = vst.msk [vmem:[%s254 - $0x2] sm:$0xc] %vm255, %v252
  %s257 = scalar_lea.vmem [#allocation2], 2
  %v258 = vld [vmem:[%s257] sm:$0x3]
  %s259 = scalar_lea.vmem [#allocation2], 12
  %v260 = vld [vmem:[%s259] sm:$0x3]
  %v262 = vrot.slane %v260, 6
  %263 = vrot.lane.b32.xlu0 %v262, 64
  %v264 = vpop.permute.xlu0 %263
  %v266 = vsel %vm147, %v258, %v264
  %s267 = scalar_lea.vmem %s1, 2
  %v268 = vld [vmem:[%s267] sm:$0x3]
  %s269 = scalar_lea.vmem %s1, 12
  %v270 = vld [vmem:[%s269] sm:$0x3]
  %v272 = vrot.slane %v270, 6
  %v274 = vsel %vm147, %v268, %v272
  %vm275 = vcmp.gt.f32.partialorder %v274, 0.0
  %277 = vrot.lane.b32.xlu0 %v243, 80
  %v278 = vpop.permute.xlu0 %277
  %280 = vrot.lane.b32.xlu0 %v243, 96
  %v281 = vpop.permute.xlu0 %280
  %vm283 = vcmask 130048
  %v284 = vsel %vm283, %v278, %v281
  %v285 = vsel %vm138, %v284, 0.0
  %v286 = vpack.c.bf16 %v285, %v285
  %v288 = vsel %vm80, %v286, 0
  %290 = vmatprep.subr.bf16.mxu0 0
  %291 = vmatpush1.bf16.msra.mxu0 %v166
  %292 = vmatprep.subr.bf16.mxu0 0
  %293 = vmatpush1.bf16.msra.mxu0 %v167
  %294 = vmatprep.subr.bf16.mxu0 0
  %295 = vmatpush1.bf16.msra.mxu0 0
  %296 = vmatprep.subr.bf16.mxu0 0
  %297 = vmatpush1.bf16.msra.mxu0 0
  %298 = vmatprep.subr.bf16.mxu0 0
  %299 = vmatpush1.bf16.msra.mxu0 0
  %300 = vmatprep.subr.bf16.mxu0 0
  %301 = vmatpush1.bf16.msra.mxu0 0
  %302 = vmatprep.subr.bf16.mxu0 0
  %303 = vmatpush1.bf16.msra.mxu0 0
  %304 = vmatprep.subr.bf16.mxu0 0
  %305 = vmatpush1.bf16.msra.mxu0 0
  %306 = vmatprep.subr.bf16.mxu0 0
  %307 = vmatpush1.bf16.msra.mxu0 0
  %308 = vmatprep.subr.bf16.mxu0 0
  %309 = vmatpush1.bf16.msra.mxu0 0
  %310 = vmatprep.subr.bf16.mxu0 0
  %311 = vmatpush1.bf16.msra.mxu0 0
  %312 = vmatprep.subr.bf16.mxu0 0
  %313 = vmatpush1.bf16.msra.mxu0 0
  %314 = vmatprep.subr.bf16.mxu0 0
  %315 = vmatpush1.bf16.msra.mxu0 0
  %316 = vmatprep.subr.bf16.mxu0 0
  %317 = vmatpush1.bf16.msra.mxu0 0
  %318 = vmatprep.subr.bf16.mxu0 0
  %319 = vmatpush1.bf16.msra.mxu0 0
  %320 = vmatprep.subr.bf16.mxu0 0
  %321 = vmatpush1.bf16.msra.mxu0 0
  %322 = vmatprep.mubr.bf16.mxu0 0
  %323 = vmatmul.mubr.bf16.gmra.mrb[0].mxu0 %v288
  %v324 = vpop.f32.mrb[0].mxu0
  %v325 = vadd.f32 0.0, %v324
  %v326 = vpop.f32.mrb[0].mxu0
  %v327 = vpop.f32.mrb[0].mxu0
  %v328 = vpop.f32.mrb[0].mxu0
  %329 = vdwg.mxu0
  %v330 = vadd.f32 %v266, %v325
  %v331 = vxor.u32 %v330, 2147483648
  %v332 = vmul.f32 %v331, 1.442695
  %v333 = vpow.pop %v332
  %v334 = vadd.f32 %v333, 1.0
  %v335 = vrcp.pop %v334
  %v336 = vmul.f32 1.0, %v335
  %v337 = vtanh.pop %v330
  %v338 = vmul.f32 %v336, %v244
  %340 = vrot.lane.b32.xlu0 %v337, 96
  %v341 = vpop.permute.xlu0 %340
  %v343 = vmul.f32 %v336, %v341
  %345 = vrot.lane.b32.xlu0 %v343, 16
  %v346 = vpop.permute.xlu0 %345
  %v348 = vadd.f32 %v338, %v346
  %v349 = vtanh.pop %v348
  %351 = vrot.lane.b32.xlu0 %v349, 32
  %v352 = vpop.permute.xlu0 %351
  %v354 = vmul.f32 %v336, %v352
  %v355 = vsel %vm275, 1, 0
  %356 = vset.pattern.permute.xlu0 0
  %357 = vperm.xlu0 %356, %v355
  %v358 = vpop.permute.xlu0 %357
  %vm359 = vcmp.eq.s32.totalorder %v358, 1
  %v360 = vsel %vm359, %v354, %v243
  %v361 = vsel %vm359, %v348, %v244
  %363 = vrot.lane.b32.xlu0 %v354, 80
  %v364 = vpop.permute.xlu0 %363
  %s366 = scalar_lea.vmem [#allocation3], 2
  %367 = vst.msk [vmem:[%s366] sm:$0x3] %vm249, %v364
  %368 = vrot.lane.b32.xlu0 %v354, 96
  %v369 = vpop.permute.xlu0 %368
  %s371 = scalar_lea.vmem [#allocation3], 12
  %372 = vst.msk [vmem:[%s371 - $0x2] sm:$0xc] %vm255, %v369
  %s373 = scalar_lea.vmem [#allocation2], 4
  %v374 = vld [vmem:[%s373] sm:$0x3]
  %s375 = scalar_lea.vmem [#allocation2], 10
  %v376 = vld [vmem:[%s375] sm:$0x3]
  %v378 = vrot.slane %v376, 6
  %379 = vrot.lane.b32.xlu0 %v378, 64
  %v380 = vpop.permute.xlu0 %379
  %v382 = vsel %vm147, %v374, %v380
  %s383 = scalar_lea.vmem %s1, 4
  %v384 = vld [vmem:[%s383] sm:$0x3]
  %s385 = scalar_lea.vmem %s1, 10
  %v386 = vld [vmem:[%s385] sm:$0x3]
  %v388 = vrot.slane %v386, 6
  %v390 = vsel %vm147, %v384, %v388
  %vm391 = vcmp.gt.f32.partialorder %v390, 0.0
  %393 = vrot.lane.b32.xlu0 %v360, 80
  %v394 = vpop.permute.xlu0 %393
  %396 = vrot.lane.b32.xlu0 %v360, 96
  %v397 = vpop.permute.xlu0 %396
  %v399 = vsel %vm283, %v394, %v397
  %v400 = vsel %vm138, %v399, 0.0
  %v401 = vpack.c.bf16 %v400, %v400
  %v403 = vsel %vm80, %v401, 0
  %405 = vmatprep.subr.bf16.mxu0 0
  %406 = vmatpush1.bf16.msra.mxu0 %v166
  %407 = vmatprep.subr.bf16.mxu0 0
  %408 = vmatpush1.bf16.msra.mxu0 %v167
  %409 = vmatprep.subr.bf16.mxu0 0
  %410 = vmatpush1.bf16.msra.mxu0 0
  %411 = vmatprep.subr.bf16.mxu0 0
  %412 = vmatpush1.bf16.msra.mxu0 0
  %413 = vmatprep.subr.bf16.mxu0 0
  %414 = vmatpush1.bf16.msra.mxu0 0
  %415 = vmatprep.subr.bf16.mxu0 0
  %416 = vmatpush1.bf16.msra.mxu0 0
  %417 = vmatprep.subr.bf16.mxu0 0
  %418 = vmatpush1.bf16.msra.mxu0 0
  %419 = vmatprep.subr.bf16.mxu0 0
  %420 = vmatpush1.bf16.msra.mxu0 0
  %421 = vmatprep.subr.bf16.mxu0 0
  %422 = vmatpush1.bf16.msra.mxu0 0
  %423 = vmatprep.subr.bf16.mxu0 0
  %424 = vmatpush1.bf16.msra.mxu0 0
  %425 = vmatprep.subr.bf16.mxu0 0
  %426 = vmatpush1.bf16.msra.mxu0 0
  %427 = vmatprep.subr.bf16.mxu0 0
  %428 = vmatpush1.bf16.msra.mxu0 0
  %429 = vmatprep.subr.bf16.mxu0 0
  %430 = vmatpush1.bf16.msra.mxu0 0
  %431 = vmatprep.subr.bf16.mxu0 0
  %432 = vmatpush1.bf16.msra.mxu0 0
  %433 = vmatprep.subr.bf16.mxu0 0
  %434 = vmatpush1.bf16.msra.mxu0 0
  %435 = vmatprep.subr.bf16.mxu0 0
  %436 = vmatpush1.bf16.msra.mxu0 0
  %437 = vmatprep.mubr.bf16.mxu0 0
  %438 = vmatmul.mubr.bf16.gmra.mrb[0].mxu0 %v403
  %v439 = vpop.f32.mrb[0].mxu0
  %v440 = vadd.f32 0.0, %v439
  %v441 = vpop.f32.mrb[0].mxu0
  %v442 = vpop.f32.mrb[0].mxu0
  %v443 = vpop.f32.mrb[0].mxu0
  %444 = vdwg.mxu0
  %v445 = vadd.f32 %v382, %v440
  %v446 = vxor.u32 %v445, 2147483648
  %v447 = vmul.f32 %v446, 1.442695
  %v448 = vpow.pop %v447
  %v449 = vadd.f32 %v448, 1.0
  %v450 = vrcp.pop %v449
  %v451 = vmul.f32 1.0, %v450
  %v452 = vtanh.pop %v445
  %v453 = vmul.f32 %v451, %v361
  %455 = vrot.lane.b32.xlu0 %v452, 96
  %v456 = vpop.permute.xlu0 %455
  %v458 = vmul.f32 %v451, %v456
  %460 = vrot.lane.b32.xlu0 %v458, 16
  %v461 = vpop.permute.xlu0 %460
  %v463 = vadd.f32 %v453, %v461
  %v464 = vtanh.pop %v463
  %466 = vrot.lane.b32.xlu0 %v464, 32
  %v467 = vpop.permute.xlu0 %466
  %v469 = vmul.f32 %v451, %v467
  %v470 = vsel %vm391, 1, 0
  %471 = vset.pattern.permute.xlu0 0
  %472 = vperm.xlu0 %471, %v470
  %v473 = vpop.permute.xlu0 %472
  %vm474 = vcmp.eq.s32.totalorder %v473, 1
  %v475 = vsel %vm474, %v469, %v360
  %v476 = vsel %vm474, %v463, %v361
  %478 = vrot.lane.b32.xlu0 %v469, 80
  %v479 = vpop.permute.xlu0 %478
  %s481 = scalar_lea.vmem [#allocation3], 4
  %482 = vst.msk [vmem:[%s481] sm:$0x3] %vm249, %v479
  %483 = vrot.lane.b32.xlu0 %v469, 96
  %v484 = vpop.permute.xlu0 %483
  %s486 = scalar_lea.vmem [#allocation3], 10
  %487 = vst.msk [vmem:[%s486 - $0x2] sm:$0xc] %vm255, %v484
  %s488 = scalar_lea.vmem [#allocation2], 6
  %v489 = vld [vmem:[%s488] sm:$0x3]
  %s490 = scalar_lea.vmem [#allocation2], 8
  %v491 = vld [vmem:[%s490] sm:$0x3]
  %v493 = vrot.slane %v491, 6
  %494 = vrot.lane.b32.xlu0 %v493, 64
  %v495 = vpop.permute.xlu0 %494
  %v497 = vsel %vm147, %v489, %v495
  %s498 = scalar_lea.vmem %s1, 6
  %v499 = vld [vmem:[%s498] sm:$0x3]
  %s500 = scalar_lea.vmem %s1, 8
  %v501 = vld [vmem:[%s500] sm:$0x3]
  %v503 = vrot.slane %v501, 6
  %v505 = vsel %vm147, %v499, %v503
  %vm506 = vcmp.gt.f32.partialorder %v505, 0.0
  %508 = vrot.lane.b32.xlu0 %v475, 80
  %v509 = vpop.permute.xlu0 %508
  %511 = vrot.lane.b32.xlu0 %v475, 96
  %v512 = vpop.permute.xlu0 %511
  %v514 = vsel %vm283, %v509, %v512
  %v515 = vsel %vm138, %v514, 0.0
  %v516 = vpack.c.bf16 %v515, %v515
  %v518 = vsel %vm80, %v516, 0
  %520 = vmatprep.subr.bf16.mxu0 0
  %521 = vmatpush1.bf16.msra.mxu0 %v166
  %522 = vmatprep.subr.bf16.mxu0 0
  %523 = vmatpush1.bf16.msra.mxu0 %v167
  %524 = vmatprep.subr.bf16.mxu0 0
  %525 = vmatpush1.bf16.msra.mxu0 0
  %526 = vmatprep.subr.bf16.mxu0 0
  %527 = vmatpush1.bf16.msra.mxu0 0
  %528 = vmatprep.subr.bf16.mxu0 0
  %529 = vmatpush1.bf16.msra.mxu0 0
  %530 = vmatprep.subr.bf16.mxu0 0
  %531 = vmatpush1.bf16.msra.mxu0 0
  %532 = vmatprep.subr.bf16.mxu0 0
  %533 = vmatpush1.bf16.msra.mxu0 0
  %534 = vmatprep.subr.bf16.mxu0 0
  %535 = vmatpush1.bf16.msra.mxu0 0
  %536 = vmatprep.subr.bf16.mxu0 0
  %537 = vmatpush1.bf16.msra.mxu0 0
  %538 = vmatprep.subr.bf16.mxu0 0
  %539 = vmatpush1.bf16.msra.mxu0 0
  %540 = vmatprep.subr.bf16.mxu0 0
  %541 = vmatpush1.bf16.msra.mxu0 0
  %542 = vmatprep.subr.bf16.mxu0 0
  %543 = vmatpush1.bf16.msra.mxu0 0
  %544 = vmatprep.subr.bf16.mxu0 0
  %545 = vmatpush1.bf16.msra.mxu0 0
  %546 = vmatprep.subr.bf16.mxu0 0
  %547 = vmatpush1.bf16.msra.mxu0 0
  %548 = vmatprep.subr.bf16.mxu0 0
  %549 = vmatpush1.bf16.msra.mxu0 0
  %550 = vmatprep.subr.bf16.mxu0 0
  %551 = vmatpush1.bf16.msra.mxu0 0
  %552 = vmatprep.mubr.bf16.mxu0 0
  %553 = vmatmul.mubr.bf16.gmra.mrb[0].mxu0 %v518
  %v554 = vpop.f32.mrb[0].mxu0
  %v555 = vadd.f32 0.0, %v554
  %v556 = vpop.f32.mrb[0].mxu0
  %v557 = vpop.f32.mrb[0].mxu0
  %v558 = vpop.f32.mrb[0].mxu0
  %559 = vdwg.mxu0
  %v560 = vadd.f32 %v497, %v555
  %v561 = vxor.u32 %v560, 2147483648
  %v562 = vmul.f32 %v561, 1.442695
  %v563 = vpow.pop %v562
  %v564 = vadd.f32 %v563, 1.0
  %v565 = vrcp.pop %v564
  %v566 = vmul.f32 1.0, %v565
  %v567 = vtanh.pop %v560
  %v568 = vmul.f32 %v566, %v476
  %570 = vrot.lane.b32.xlu0 %v567, 96
  %v571 = vpop.permute.xlu0 %570
  %v573 = vmul.f32 %v566, %v571
  %575 = vrot.lane.b32.xlu0 %v573, 16
  %v576 = vpop.permute.xlu0 %575
  %v578 = vadd.f32 %v568, %v576
  %v579 = vtanh.pop %v578
  %581 = vrot.lane.b32.xlu0 %v579, 32
  %v582 = vpop.permute.xlu0 %581
  %v584 = vmul.f32 %v566, %v582
  %v585 = vsel %vm506, 1, 0
  %586 = vset.pattern.permute.xlu0 0
  %587 = vperm.xlu0 %586, %v585
  %v588 = vpop.permute.xlu0 %587
  %vm589 = vcmp.eq.s32.totalorder %v588, 1
  %v590 = vsel %vm589, %v584, %v475
  %v591 = vsel %vm589, %v578, %v476
  %593 = vrot.lane.b32.xlu0 %v584, 80
  %v594 = vpop.permute.xlu0 %593
  %s596 = scalar_lea.vmem [#allocation3], 6
  %597 = vst.msk [vmem:[%s596] sm:$0x3] %vm249, %v594
  %598 = vrot.lane.b32.xlu0 %v584, 96
  %v599 = vpop.permute.xlu0 %598
  %s601 = scalar_lea.vmem [#allocation3], 8
  %602 = vst.msk [vmem:[%s601 - $0x2] sm:$0xc] %vm255, %v599
  %v603 = vld [vmem:[%s490] sm:$0x3]
  %v604 = vld [vmem:[%s488] sm:$0x3]
  %v606 = vrot.slane %v604, 6
  %607 = vrot.lane.b32.xlu0 %v606, 64
  %v608 = vpop.permute.xlu0 %607
  %v610 = vsel %vm147, %v603, %v608
  %v611 = vld [vmem:[%s500] sm:$0x3]
  %v612 = vld [vmem:[%s498] sm:$0x3]
  %v614 = vrot.slane %v612, 6
  %v616 = vsel %vm147, %v611, %v614
  %vm617 = vcmp.gt.f32.partialorder %v616, 0.0
  %619 = vrot.lane.b32.xlu0 %v590, 80
  %v620 = vpop.permute.xlu0 %619
  %622 = vrot.lane.b32.xlu0 %v590, 96
  %v623 = vpop.permute.xlu0 %622
  %v625 = vsel %vm283, %v620, %v623
  %v626 = vsel %vm138, %v625, 0.0
  %v627 = vpack.c.bf16 %v626, %v626
  %v629 = vsel %vm80, %v627, 0
  %631 = vmatprep.subr.bf16.mxu0 0
  %632 = vmatpush1.bf16.msra.mxu0 %v166
  %633 = vmatprep.subr.bf16.mxu0 0
  %634 = vmatpush1.bf16.msra.mxu0 %v167
  %635 = vmatprep.subr.bf16.mxu0 0
  %636 = vmatpush1.bf16.msra.mxu0 0
  %637 = vmatprep.subr.bf16.mxu0 0
  %638 = vmatpush1.bf16.msra.mxu0 0
  %639 = vmatprep.subr.bf16.mxu0 0
  %640 = vmatpush1.bf16.msra.mxu0 0
  %641 = vmatprep.subr.bf16.mxu0 0
  %642 = vmatpush1.bf16.msra.mxu0 0
  %643 = vmatprep.subr.bf16.mxu0 0
  %644 = vmatpush1.bf16.msra.mxu0 0
  %645 = vmatprep.subr.bf16.mxu0 0
  %646 = vmatpush1.bf16.msra.mxu0 0
  %647 = vmatprep.subr.bf16.mxu0 0
  %648 = vmatpush1.bf16.msra.mxu0 0
  %649 = vmatprep.subr.bf16.mxu0 0
  %650 = vmatpush1.bf16.msra.mxu0 0
  %651 = vmatprep.subr.bf16.mxu0 0
  %652 = vmatpush1.bf16.msra.mxu0 0
  %653 = vmatprep.subr.bf16.mxu0 0
  %654 = vmatpush1.bf16.msra.mxu0 0
  %655 = vmatprep.subr.bf16.mxu0 0
  %656 = vmatpush1.bf16.msra.mxu0 0
  %657 = vmatprep.subr.bf16.mxu0 0
  %658 = vmatpush1.bf16.msra.mxu0 0
  %659 = vmatprep.subr.bf16.mxu0 0
  %660 = vmatpush1.bf16.msra.mxu0 0
  %661 = vmatprep.subr.bf16.mxu0 0
  %662 = vmatpush1.bf16.msra.mxu0 0
  %663 = vmatprep.mubr.bf16.mxu0 0
  %664 = vmatmul.mubr.bf16.gmra.mrb[0].mxu0 %v629
  %v665 = vpop.f32.mrb[0].mxu0
  %v666 = vadd.f32 0.0, %v665
  %v667 = vpop.f32.mrb[0].mxu0
  %v668 = vpop.f32.mrb[0].mxu0
  %v669 = vpop.f32.mrb[0].mxu0
  %670 = vdwg.mxu0
  %v671 = vadd.f32 %v610, %v666
  %v672 = vxor.u32 %v671, 2147483648
  %v673 = vmul.f32 %v672, 1.442695
  %v674 = vpow.pop %v673
  %v675 = vadd.f32 %v674, 1.0
  %v676 = vrcp.pop %v675
  %v677 = vmul.f32 1.0, %v676
  %v678 = vtanh.pop %v671
  %v679 = vmul.f32 %v677, %v591
  %681 = vrot.lane.b32.xlu0 %v678, 96
  %v682 = vpop.permute.xlu0 %681
  %v684 = vmul.f32 %v677, %v682
  %686 = vrot.lane.b32.xlu0 %v684, 16
  %v687 = vpop.permute.xlu0 %686
  %v689 = vadd.f32 %v679, %v687
  %v690 = vtanh.pop %v689
  %692 = vrot.lane.b32.xlu0 %v690, 32
  %v693 = vpop.permute.xlu0 %692
  %v695 = vmul.f32 %v677, %v693
  %v696 = vsel %vm617, 1, 0
  %697 = vset.pattern.permute.xlu0 0
  %698 = vperm.xlu0 %697, %v696
  %v699 = vpop.permute.xlu0 %698
  %vm700 = vcmp.eq.s32.totalorder %v699, 1
  %v701 = vsel %vm700, %v695, %v590
  %v702 = vsel %vm700, %v689, %v591
  %704 = vrot.lane.b32.xlu0 %v695, 80
  %v705 = vpop.permute.xlu0 %704
  %707 = vst.msk [vmem:[%s601] sm:$0x3] %vm249, %v705
  %708 = vrot.lane.b32.xlu0 %v695, 96
  %v709 = vpop.permute.xlu0 %708
  %711 = vst.msk [vmem:[%s596 - $0x2] sm:$0xc] %vm255, %v709
  %v712 = vld [vmem:[%s375] sm:$0x3]
  %v713 = vld [vmem:[%s373] sm:$0x3]
  %v715 = vrot.slane %v713, 6
  %716 = vrot.lane.b32.xlu0 %v715, 64
  %v717 = vpop.permute.xlu0 %716
  %v719 = vsel %vm147, %v712, %v717
  %v720 = vld [vmem:[%s385] sm:$0x3]
  %v721 = vld [vmem:[%s383] sm:$0x3]
  %v723 = vrot.slane %v721, 6
  %v725 = vsel %vm147, %v720, %v723
  %vm726 = vcmp.gt.f32.partialorder %v725, 0.0
  %728 = vrot.lane.b32.xlu0 %v701, 80
  %v729 = vpop.permute.xlu0 %728
  %731 = vrot.lane.b32.xlu0 %v701, 96
  %v732 = vpop.permute.xlu0 %731
  %v734 = vsel %vm283, %v729, %v732
  %v735 = vsel %vm138, %v734, 0.0
  %v736 = vpack.c.bf16 %v735, %v735
  %v738 = vsel %vm80, %v736, 0
  %740 = vmatprep.subr.bf16.mxu0 0
  %741 = vmatpush1.bf16.msra.mxu0 %v166
  %742 = vmatprep.subr.bf16.mxu0 0
  %743 = vmatpush1.bf16.msra.mxu0 %v167
  %744 = vmatprep.subr.bf16.mxu0 0
  %745 = vmatpush1.bf16.msra.mxu0 0
  %746 = vmatprep.subr.bf16.mxu0 0
  %747 = vmatpush1.bf16.msra.mxu0 0
  %748 = vmatprep.subr.bf16.mxu0 0
  %749 = vmatpush1.bf16.msra.mxu0 0
  %750 = vmatprep.subr.bf16.mxu0 0
  %751 = vmatpush1.bf16.msra.mxu0 0
  %752 = vmatprep.subr.bf16.mxu0 0
  %753 = vmatpush1.bf16.msra.mxu0 0
  %754 = vmatprep.subr.bf16.mxu0 0
  %755 = vmatpush1.bf16.msra.mxu0 0
  %756 = vmatprep.subr.bf16.mxu0 0
  %757 = vmatpush1.bf16.msra.mxu0 0
  %758 = vmatprep.subr.bf16.mxu0 0
  %759 = vmatpush1.bf16.msra.mxu0 0
  %760 = vmatprep.subr.bf16.mxu0 0
  %761 = vmatpush1.bf16.msra.mxu0 0
  %762 = vmatprep.subr.bf16.mxu0 0
  %763 = vmatpush1.bf16.msra.mxu0 0
  %764 = vmatprep.subr.bf16.mxu0 0
  %765 = vmatpush1.bf16.msra.mxu0 0
  %766 = vmatprep.subr.bf16.mxu0 0
  %767 = vmatpush1.bf16.msra.mxu0 0
  %768 = vmatprep.subr.bf16.mxu0 0
  %769 = vmatpush1.bf16.msra.mxu0 0
  %770 = vmatprep.subr.bf16.mxu0 0
  %771 = vmatpush1.bf16.msra.mxu0 0
  %772 = vmatprep.mubr.bf16.mxu0 0
  %773 = vmatmul.mubr.bf16.gmra.mrb[0].mxu0 %v738
  %v774 = vpop.f32.mrb[0].mxu0
  %v775 = vadd.f32 0.0, %v774
  %v776 = vpop.f32.mrb[0].mxu0
  %v777 = vpop.f32.mrb[0].mxu0
  %v778 = vpop.f32.mrb[0].mxu0
  %779 = vdwg.mxu0
  %v780 = vadd.f32 %v719, %v775
  %v781 = vxor.u32 %v780, 2147483648
  %v782 = vmul.f32 %v781, 1.442695
  %v783 = vpow.pop %v782
  %v784 = vadd.f32 %v783, 1.0
  %v785 = vrcp.pop %v784
  %v786 = vmul.f32 1.0, %v785
  %v787 = vtanh.pop %v780
  %v788 = vmul.f32 %v786, %v702
  %790 = vrot.lane.b32.xlu0 %v787, 96
  %v791 = vpop.permute.xlu0 %790
  %v793 = vmul.f32 %v786, %v791
  %795 = vrot.lane.b32.xlu0 %v793, 16
  %v796 = vpop.permute.xlu0 %795
  %v798 = vadd.f32 %v788, %v796
  %v799 = vtanh.pop %v798
  %801 = vrot.lane.b32.xlu0 %v799, 32
  %v802 = vpop.permute.xlu0 %801
  %v804 = vmul.f32 %v786, %v802
  %v805 = vsel %vm726, 1, 0
  %806 = vset.pattern.permute.xlu0 0
  %807 = vperm.xlu0 %806, %v805
  %v808 = vpop.permute.xlu0 %807
  %vm809 = vcmp.eq.s32.totalorder %v808, 1
  %v810 = vsel %vm809, %v804, %v701
  %v811 = vsel %vm809, %v798, %v702
  %813 = vrot.lane.b32.xlu0 %v804, 80
  %v814 = vpop.permute.xlu0 %813
  %816 = vst.msk [vmem:[%s486] sm:$0x3] %vm249, %v814
  %817 = vrot.lane.b32.xlu0 %v804, 96
  %v818 = vpop.permute.xlu0 %817
  %820 = vst.msk [vmem:[%s481 - $0x2] sm:$0xc] %vm255, %v818
  %v821 = vld [vmem:[%s259] sm:$0x3]
  %v822 = vld [vmem:[%s257] sm:$0x3]
  %v824 = vrot.slane %v822, 6
  %825 = vrot.lane.b32.xlu0 %v824, 64
  %v826 = vpop.permute.xlu0 %825
  %v828 = vsel %vm147, %v821, %v826
  %v829 = vld [vmem:[%s269] sm:$0x3]
  %v830 = vld [vmem:[%s267] sm:$0x3]
  %v832 = vrot.slane %v830, 6
  %v834 = vsel %vm147, %v829, %v832
  %vm835 = vcmp.gt.f32.partialorder %v834, 0.0
  %837 = vrot.lane.b32.xlu0 %v810, 80
  %v838 = vpop.permute.xlu0 %837
  %840 = vrot.lane.b32.xlu0 %v810, 96
  %v841 = vpop.permute.xlu0 %840
  %v843 = vsel %vm283, %v838, %v841
  %v844 = vsel %vm138, %v843, 0.0
  %v845 = vpack.c.bf16 %v844, %v844
  %v847 = vsel %vm80, %v845, 0
  %849 = vmatprep.subr.bf16.mxu0 0
  %850 = vmatpush1.bf16.msra.mxu0 %v166
  %851 = vmatprep.subr.bf16.mxu0 0
  %852 = vmatpush1.bf16.msra.mxu0 %v167
  %853 = vmatprep.subr.bf16.mxu0 0
  %854 = vmatpush1.bf16.msra.mxu0 0
  %855 = vmatprep.subr.bf16.mxu0 0
  %856 = vmatpush1.bf16.msra.mxu0 0
  %857 = vmatprep.subr.bf16.mxu0 0
  %858 = vmatpush1.bf16.msra.mxu0 0
  %859 = vmatprep.subr.bf16.mxu0 0
  %860 = vmatpush1.bf16.msra.mxu0 0
  %861 = vmatprep.subr.bf16.mxu0 0
  %862 = vmatpush1.bf16.msra.mxu0 0
  %863 = vmatprep.subr.bf16.mxu0 0
  %864 = vmatpush1.bf16.msra.mxu0 0
  %865 = vmatprep.subr.bf16.mxu0 0
  %866 = vmatpush1.bf16.msra.mxu0 0
  %867 = vmatprep.subr.bf16.mxu0 0
  %868 = vmatpush1.bf16.msra.mxu0 0
  %869 = vmatprep.subr.bf16.mxu0 0
  %870 = vmatpush1.bf16.msra.mxu0 0
  %871 = vmatprep.subr.bf16.mxu0 0
  %872 = vmatpush1.bf16.msra.mxu0 0
  %873 = vmatprep.subr.bf16.mxu0 0
  %874 = vmatpush1.bf16.msra.mxu0 0
  %875 = vmatprep.subr.bf16.mxu0 0
  %876 = vmatpush1.bf16.msra.mxu0 0
  %877 = vmatprep.subr.bf16.mxu0 0
  %878 = vmatpush1.bf16.msra.mxu0 0
  %879 = vmatprep.subr.bf16.mxu0 0
  %880 = vmatpush1.bf16.msra.mxu0 0
  %881 = vmatprep.mubr.bf16.mxu0 0
  %882 = vmatmul.mubr.bf16.gmra.mrb[0].mxu0 %v847
  %v883 = vpop.f32.mrb[0].mxu0
  %v884 = vadd.f32 0.0, %v883
  %v885 = vpop.f32.mrb[0].mxu0
  %v886 = vpop.f32.mrb[0].mxu0
  %v887 = vpop.f32.mrb[0].mxu0
  %888 = vdwg.mxu0
  %v889 = vadd.f32 %v828, %v884
  %v890 = vxor.u32 %v889, 2147483648
  %v891 = vmul.f32 %v890, 1.442695
  %v892 = vpow.pop %v891
  %v893 = vadd.f32 %v892, 1.0
  %v894 = vrcp.pop %v893
  %v895 = vmul.f32 1.0, %v894
  %v896 = vtanh.pop %v889
  %v897 = vmul.f32 %v895, %v811
  %899 = vrot.lane.b32.xlu0 %v896, 96
  %v900 = vpop.permute.xlu0 %899
  %v902 = vmul.f32 %v895, %v900
  %904 = vrot.lane.b32.xlu0 %v902, 16
  %v905 = vpop.permute.xlu0 %904
  %v907 = vadd.f32 %v897, %v905
  %v908 = vtanh.pop %v907
  %910 = vrot.lane.b32.xlu0 %v908, 32
  %v911 = vpop.permute.xlu0 %910
  %v913 = vmul.f32 %v895, %v911
  %v914 = vsel %vm835, 1, 0
  %915 = vset.pattern.permute.xlu0 0
  %916 = vperm.xlu0 %915, %v914
  %v917 = vpop.permute.xlu0 %916
  %vm918 = vcmp.eq.s32.totalorder %v917, 1
  %v919 = vsel %vm918, %v913, %v810
  %v920 = vsel %vm918, %v907, %v811
  %922 = vrot.lane.b32.xlu0 %v913, 80
  %v923 = vpop.permute.xlu0 %922
  %925 = vst.msk [vmem:[%s371] sm:$0x3] %vm249, %v923
  %926 = vrot.lane.b32.xlu0 %v913, 96
  %v927 = vpop.permute.xlu0 %926
  %929 = vst.msk [vmem:[%s366 - $0x2] sm:$0xc] %vm255, %v927
  %v930 = vld [vmem:[%s140] sm:$0x3]
  %v931 = vld [vmem:[#allocation2] sm:$0x3]
  %v933 = vrot.slane %v931, 6
  %934 = vrot.lane.b32.xlu0 %v933, 64
  %v935 = vpop.permute.xlu0 %934
  %v937 = vsel %vm147, %v930, %v935
  %939 = vrot.lane.b32.xlu0 %v919, 80
  %v940 = vpop.permute.xlu0 %939
  %942 = vrot.lane.b32.xlu0 %v919, 96
  %v943 = vpop.permute.xlu0 %942
  %v945 = vsel %vm283, %v940, %v943
  %v946 = vsel %vm138, %v945, 0.0
  %v947 = vpack.c.bf16 %v946, %v946
  %v949 = vsel %vm80, %v947, 0
  %951 = vmatprep.subr.bf16.mxu0 0
  %952 = vmatpush1.bf16.msra.mxu0 %v166
  %953 = vmatprep.subr.bf16.mxu0 0
  %954 = vmatpush1.bf16.msra.mxu0 %v167
  %955 = vmatprep.subr.bf16.mxu0 0
  %956 = vmatpush1.bf16.msra.mxu0 0
  %957 = vmatprep.subr.bf16.mxu0 0
  %958 = vmatpush1.bf16.msra.mxu0 0
  %959 = vmatprep.subr.bf16.mxu0 0
  %960 = vmatpush1.bf16.msra.mxu0 0
  %961 = vmatprep.subr.bf16.mxu0 0
  %962 = vmatpush1.bf16.msra.mxu0 0
  %963 = vmatprep.subr.bf16.mxu0 0
  %964 = vmatpush1.bf16.msra.mxu0 0
  %965 = vmatprep.subr.bf16.mxu0 0
  %966 = vmatpush1.bf16.msra.mxu0 0
  %967 = vmatprep.subr.bf16.mxu0 0
  %968 = vmatpush1.bf16.msra.mxu0 0
  %969 = vmatprep.subr.bf16.mxu0 0
  %970 = vmatpush1.bf16.msra.mxu0 0
  %971 = vmatprep.subr.bf16.mxu0 0
  %972 = vmatpush1.bf16.msra.mxu0 0
  %973 = vmatprep.subr.bf16.mxu0 0
  %974 = vmatpush1.bf16.msra.mxu0 0
  %975 = vmatprep.subr.bf16.mxu0 0
  %976 = vmatpush1.bf16.msra.mxu0 0
  %977 = vmatprep.subr.bf16.mxu0 0
  %978 = vmatpush1.bf16.msra.mxu0 0
  %979 = vmatprep.subr.bf16.mxu0 0
  %980 = vmatpush1.bf16.msra.mxu0 0
  %981 = vmatprep.subr.bf16.mxu0 0
  %982 = vmatpush1.bf16.msra.mxu0 0
  %983 = vmatprep.mubr.bf16.mxu0 0
  %984 = vmatmul.mubr.bf16.gmra.mrb[0].mxu0 %v949
  %v985 = vpop.f32.mrb[0].mxu0
  %v986 = vadd.f32 0.0, %v985
  %v987 = vpop.f32.mrb[0].mxu0
  %v988 = vpop.f32.mrb[0].mxu0
  %v989 = vpop.f32.mrb[0].mxu0
  %990 = vdwg.mxu0
  %v991 = vadd.f32 %v937, %v986
  %v992 = vxor.u32 %v991, 2147483648
  %v993 = vmul.f32 %v992, 1.442695
  %v994 = vpow.pop %v993
  %v995 = vadd.f32 %v994, 1.0
  %v996 = vrcp.pop %v995
  %v997 = vmul.f32 1.0, %v996
  %v998 = vtanh.pop %v991
  %v999 = vmul.f32 %v997, %v920
  %1001 = vrot.lane.b32.xlu0 %v998, 96
  %v1002 = vpop.permute.xlu0 %1001
  %v1004 = vmul.f32 %v997, %v1002
  %1006 = vrot.lane.b32.xlu0 %v1004, 16
  %v1007 = vpop.permute.xlu0 %1006
  %v1009 = vadd.f32 %v999, %v1007
  %v1010 = vtanh.pop %v1009
  %1012 = vrot.lane.b32.xlu0 %v1010, 32
  %v1013 = vpop.permute.xlu0 %1012
  %v1015 = vmul.f32 %v997, %v1013
  %1017 = vrot.lane.b32.xlu0 %v1015, 80
  %v1018 = vpop.permute.xlu0 %1017
  %1020 = vst.msk [vmem:[%s254] sm:$0x3] %vm249, %v1018
  %1021 = vrot.lane.b32.xlu0 %v1015, 96
  %v1022 = vpop.permute.xlu0 %1021
  %1024 = vst.msk [vmem:[#allocation3 - $0x2] sm:$0xc] %vm255, %v1022
  %v1025 = vld [vmem:[#allocation3] sm:$0xff]
  %v1026 = vld [vmem:[#allocation3 + $0x8] sm:$0xff]
  %v1027 = vpack.c.bf16 %v1026, %v1025
  %v1028 = vld [vmem:[%s6] sm:$0xf]
  %v1029 = vld [vmem:[%s6 + $0x4] sm:$0xf]
  %v1030 = vld [vmem:[%s6 + $0x8] sm:$0xf]
  %v1031 = vld [vmem:[%s6 + $0xc] sm:$0xf]
  %v1032 = vld [vmem:[%s7] sm:$0x1]
  %v1034 = vlaneseq
  %v1035 = vshrl.u32 %v1034, 7
  %v1036 = vsub.s32 0, %v1035
  %v1037 = vrot.slane %v1032, %v1036
  %v1043 = vunpack.c.l.b16 %v1028
  %v1044 = vunpack.c.l.b16 %v1029
  %v1045 = vunpack.c.l.b16 %v1030
  %v1046 = vunpack.c.l.b16 %v1031
  %v1047 = vpack.c.b16 %v1044, %v1043
  %v1048 = vpack.c.b16 %v1046, %v1045
  %v1052 = vsel %vm80, %v1027, 0
  %1054 = vmatprep.subr.bf16.mxu0 0
  %1055 = vmatpush1.bf16.msra.mxu0 %v1047
  %1056 = vmatprep.subr.bf16.mxu0 0
  %1057 = vmatpush1.bf16.msra.mxu0 %v1048
  %1058 = vmatprep.subr.bf16.mxu0 0
  %1059 = vmatpush1.bf16.msra.mxu0 0
  %1060 = vmatprep.subr.bf16.mxu0 0
  %1061 = vmatpush1.bf16.msra.mxu0 0
  %1062 = vmatprep.subr.bf16.mxu0 0
  %1063 = vmatpush1.bf16.msra.mxu0 0
  %1064 = vmatprep.subr.bf16.mxu0 0
  %1065 = vmatpush1.bf16.msra.mxu0 0
  %1066 = vmatprep.subr.bf16.mxu0 0
  %1067 = vmatpush1.bf16.msra.mxu0 0
  %1068 = vmatprep.subr.bf16.mxu0 0
  %1069 = vmatpush1.bf16.msra.mxu0 0
  %1070 = vmatprep.subr.bf16.mxu0 0
  %1071 = vmatpush1.bf16.msra.mxu0 0
  %1072 = vmatprep.subr.bf16.mxu0 0
  %1073 = vmatpush1.bf16.msra.mxu0 0
  %1074 = vmatprep.subr.bf16.mxu0 0
  %1075 = vmatpush1.bf16.msra.mxu0 0
  %1076 = vmatprep.subr.bf16.mxu0 0
  %1077 = vmatpush1.bf16.msra.mxu0 0
  %1078 = vmatprep.subr.bf16.mxu0 0
  %1079 = vmatpush1.bf16.msra.mxu0 0
  %1080 = vmatprep.subr.bf16.mxu0 0
  %1081 = vmatpush1.bf16.msra.mxu0 0
  %1082 = vmatprep.subr.bf16.mxu0 0
  %1083 = vmatpush1.bf16.msra.mxu0 0
  %1084 = vmatprep.subr.bf16.mxu0 0
  %1085 = vmatpush1.bf16.msra.mxu0 0
  %1086 = vmatprep.mubr.bf16.mxu0 0
  %1087 = vmatmul.mubr.bf16.gmra.mrb[0].mxu0 %v1052
  %v1088 = vpop.f32.mrb[0].mxu0
  %v1089 = vadd.f32 %v1037, %v1088
  %v1090 = vpop.f32.mrb[0].mxu0
  %v1091 = vpop.f32.mrb[0].mxu0
  %v1092 = vadd.f32 %v1037, %v1091
  %v1093 = vpop.f32.mrb[0].mxu0
  %1094 = vdwg.mxu0
  %1096 = vset.pattern.permute.xlu0 0
  %1097 = vperm.xlu0 %1096, %v48
  %v1098 = vpop.permute.xlu0 %1097
  %1101 = vset.pattern.permute.xlu0 0
  %1102 = vperm.xlu0 %1101, %v49
  %v1103 = vpop.permute.xlu0 %1102
  %v1105 = vmul.f32 %v1089, %v1098
  %v1106 = vmul.f32 %v1092, %v1103
  %vm1107 = vcmask 64512
  %1108 = vst.msk [vmem:[#allocation4] sm:$0xff] %vm1107, %v1105
  %1109 = vst.msk [vmem:[#allocation4 + $0x8] sm:$0xff] %vm1107, %v1106
  %v1110 = vld [vmem:[%s2] sm:$0xff]
  %v1111 = vld [vmem:[%s2 + $0x8] sm:$0xff]
  %v1112 = vadd.s32 %v132, 8
  %1113 = vset.pattern.permute.xlu0 0
  %1114 = vperm.xlu0 %1113, %v1110
  %v1115 = vpop.permute.xlu0 %1114
  %1116 = vset.pattern.permute.xlu0 0
  %1117 = vperm.xlu0 %1116, %v1111
  %v1118 = vpop.permute.xlu0 %1117
  %vm1119 = vcmp.eq.s32.totalorder %v135, %v1115
  %vm1120 = vcmp.eq.s32.totalorder %v135, %v1118
  %v1121 = vsel %vm1119, 1, 0
  %v1122 = vsel %vm1120, 1, 0
  %v1123 = vcvt.s32.f32 %v1121
  %v1124 = vcvt.s32.f32 %v1122
  %vm1125 = vcmp.lt.s32.totalorder %v1112, 2
  %v1126 = vsel %vm133, 1, 0
  %v1127 = vsel %vm1125, 1, 0
  %v1128 = vcvt.s32.f32 %v1126
  %v1129 = vcvt.s32.f32 %v1127
  %v1130 = vld [vmem:[%s10] sm:$0x1]
  %v1131 = vld [vmem:[%s11] sm:$0x1]
  %v1132 = vld [vmem:[%s8] sm:$0xff]
  %v1134 = vsel %vm1107, %v1123, 0
  %v1137 = vsel %vm1107, %v1124, 0
  %1139 = vmatprep.subr.mxu0 0.0
  %1140 = vmatpush1.msra.mxu0 %v1132
  %1141 = vmatprep.subr.mxu0 0.0
  %1142 = vmatpush1.msra.mxu0 0.0
  %1143 = vmatprep.subr.mxu0 0.0
  %1144 = vmatpush1.msra.mxu0 0.0
  %1145 = vmatprep.subr.mxu0 0.0
  %1146 = vmatpush1.msra.mxu0 0.0
  %1147 = vmatprep.subr.mxu0 0.0
  %1148 = vmatpush1.msra.mxu0 0.0
  %1149 = vmatprep.subr.mxu0 0.0
  %1150 = vmatpush1.msra.mxu0 0.0
  %1151 = vmatprep.subr.mxu0 0.0
  %1152 = vmatpush1.msra.mxu0 0.0
  %1153 = vmatprep.subr.mxu0 0.0
  %1154 = vmatpush1.msra.mxu0 0.0
  %1155 = vmatprep.subr.mxu0 0.0
  %1156 = vmatpush1.msra.mxu0 0.0
  %1157 = vmatprep.subr.mxu0 0.0
  %1158 = vmatpush1.msra.mxu0 0.0
  %1159 = vmatprep.subr.mxu0 0.0
  %1160 = vmatpush1.msra.mxu0 0.0
  %1161 = vmatprep.subr.mxu0 0.0
  %1162 = vmatpush1.msra.mxu0 0.0
  %1163 = vmatprep.subr.mxu0 0.0
  %1164 = vmatpush1.msra.mxu0 0.0
  %1165 = vmatprep.subr.mxu0 0.0
  %1166 = vmatpush1.msra.mxu0 0.0
  %1167 = vmatprep.subr.mxu0 0.0
  %1168 = vmatpush1.msra.mxu0 0.0
  %1169 = vmatprep.subr.mxu0 0.0
  %1170 = vmatpush1.msra.mxu0 0.0
  %1171 = vmatprep.subr.mxu0 0.0
  %1172 = vmatpush1.msra.mxu0 0.0
  %1173 = vmatprep.subr.mxu0 0.0
  %1174 = vmatpush1.msra.mxu0 0.0
  %1175 = vmatprep.subr.mxu0 0.0
  %1176 = vmatpush1.msra.mxu0 0.0
  %1177 = vmatprep.subr.mxu0 0.0
  %1178 = vmatpush1.msra.mxu0 0.0
  %1179 = vmatprep.subr.mxu0 0.0
  %1180 = vmatpush1.msra.mxu0 0.0
  %1181 = vmatprep.subr.mxu0 0.0
  %1182 = vmatpush1.msra.mxu0 0.0
  %1183 = vmatprep.subr.mxu0 0.0
  %1184 = vmatpush1.msra.mxu0 0.0
  %1185 = vmatprep.subr.mxu0 0.0
  %1186 = vmatpush1.msra.mxu0 0.0
  %1187 = vmatprep.subr.mxu0 0.0
  %1188 = vmatpush1.msra.mxu0 0.0
  %1189 = vmatprep.subr.mxu0 0.0
  %1190 = vmatpush1.msra.mxu0 0.0
  %1191 = vmatprep.subr.mxu0 0.0
  %1192 = vmatpush1.msra.mxu0 0.0
  %1193 = vmatprep.subr.mxu0 0.0
  %1194 = vmatpush1.msra.mxu0 0.0
  %1195 = vmatprep.subr.mxu0 0.0
  %1196 = vmatpush1.msra.mxu0 0.0
  %1197 = vmatprep.subr.mxu0 0.0
  %1198 = vmatpush1.msra.mxu0 0.0
  %1199 = vmatprep.subr.mxu0 0.0
  %1200 = vmatpush1.msra.mxu0 0.0
  %1201 = vmatprep.subr.mxu0 0.0
  %1202 = vmatpush1.msra.mxu0 0.0
  %1203 = vmatprep.mubr.f32.mxu0 0.0
  %1204 = vmatmul.mubr.f32.gmra.mrb[0].mxu0 %v1134
  %v1205 = vpop.f32.mrb[0].mxu0
  %v1206 = vadd.f32 0.0, %v1205
  %v1207 = vpop.f32.mrb[0].mxu0
  %1208 = vmatprep.mubr.f32.mxu0 0.0
  %1209 = vmatmul.mubr.f32.gmra.mrb[0].mxu0 %v1137
  %v1210 = vpop.f32.mrb[0].mxu0
  %v1211 = vadd.f32 0.0, %v1210
  %v1212 = vpop.f32.mrb[0].mxu0
  %1213 = vdwg.mxu0
  %v1216 = vrot.slane %v1206, 6
  %v1217 = vrot.slane %v1211, 6
  %v1218 = vsel %vm147, %v1216, %v1217
  %v1221 = vsel %vm147, 0.0, %v1216
  %vm1222 = vcmask 1045504
  %v1223 = vrot.slane %v48, 2
  %v1224 = vrot.slane %v49, 2
  %v1225 = vsel %vm1222, %v1223, %v1224
  %v1228 = vsel %vm1222, %v1224, 0.0
  %v1229 = vsub.f32 %v48, %v1225
  %v1230 = vsub.f32 %v49, %v1228
  %v1231 = vmul.f32 %v1221, %v1098
  %v1232 = vmul.f32 %v1218, %v1103
  %v1233 = vadd.f32 %v1105, %v1231
  %v1234 = vadd.f32 %v1106, %v1232
  %v1236 = vlaneseq
  %v1237 = vshrl.u32 %v1236, 7
  %v1238 = vsub.s32 0, %v1237
  %v1239 = vrot.slane %v1130, %v1238
  %v1241 = vmul.f32 %v1239, %v1128
  %v1242 = vmul.f32 %v1239, %v1129
  %v1243 = vadd.f32 %v1233, %v1241
  %v1244 = vadd.f32 %v1234, %v1242
  %v1246 = vlaneseq
  %v1247 = vshrl.u32 %v1246, 7
  %v1248 = vsub.s32 0, %v1247
  %v1249 = vrot.slane %v1131, %v1248
  %1252 = vset.pattern.permute.xlu0 0
  %1253 = vperm.xlu0 %1252, %v1229
  %v1254 = vpop.permute.xlu0 %1253
  %1257 = vset.pattern.permute.xlu0 0
  %1258 = vperm.xlu0 %1257, %v1230
  %v1259 = vpop.permute.xlu0 %1258
  %v1261 = vmul.f32 %v1249, %v1254
  %v1262 = vmul.f32 %v1249, %v1259
  %v1263 = vadd.f32 %v1243, %v1261
  %v1264 = vadd.f32 %v1244, %v1262
  %v1265 = vmul.f32 %v1123, %v1263
  %v1266 = vmul.f32 %v1124, %v1264
  %v1267 = vld [vmem:[%s12] sm:$0x3]
  %v1269 = vsel %vm283, %v1267, 0
  %1271 = vmatprep.subr.mxu0 0.0
  %1272 = vmatpush1.msra.mxu0 %v1265
  %1273 = vmatprep.subr.mxu0 0.0
  %1274 = vmatpush1.msra.mxu0 %v1266
  %1275 = vmatprep.subr.mxu0 0.0
  %1276 = vmatpush1.msra.mxu0 0.0
  %1277 = vmatprep.subr.mxu0 0.0
  %1278 = vmatpush1.msra.mxu0 0.0
  %1279 = vmatprep.subr.mxu0 0.0
  %1280 = vmatpush1.msra.mxu0 0.0
  %1281 = vmatprep.subr.mxu0 0.0
  %1282 = vmatpush1.msra.mxu0 0.0
  %1283 = vmatprep.subr.mxu0 0.0
  %1284 = vmatpush1.msra.mxu0 0.0
  %1285 = vmatprep.subr.mxu0 0.0
  %1286 = vmatpush1.msra.mxu0 0.0
  %1287 = vmatprep.subr.mxu0 0.0
  %1288 = vmatpush1.msra.mxu0 0.0
  %1289 = vmatprep.subr.mxu0 0.0
  %1290 = vmatpush1.msra.mxu0 0.0
  %1291 = vmatprep.subr.mxu0 0.0
  %1292 = vmatpush1.msra.mxu0 0.0
  %1293 = vmatprep.subr.mxu0 0.0
  %1294 = vmatpush1.msra.mxu0 0.0
  %1295 = vmatprep.subr.mxu0 0.0
  %1296 = vmatpush1.msra.mxu0 0.0
  %1297 = vmatprep.subr.mxu0 0.0
  %1298 = vmatpush1.msra.mxu0 0.0
  %1299 = vmatprep.subr.mxu0 0.0
  %1300 = vmatpush1.msra.mxu0 0.0
  %1301 = vmatprep.subr.mxu0 0.0
  %1302 = vmatpush1.msra.mxu0 0.0
  %1303 = vmatprep.subr.mxu0 0.0
  %1304 = vmatpush1.msra.mxu0 0.0
  %1305 = vmatprep.subr.mxu0 0.0
  %1306 = vmatpush1.msra.mxu0 0.0
  %1307 = vmatprep.subr.mxu0 0.0
  %1308 = vmatpush1.msra.mxu0 0.0
  %1309 = vmatprep.subr.mxu0 0.0
  %1310 = vmatpush1.msra.mxu0 0.0
  %1311 = vmatprep.subr.mxu0 0.0
  %1312 = vmatpush1.msra.mxu0 0.0
  %1313 = vmatprep.subr.mxu0 0.0
  %1314 = vmatpush1.msra.mxu0 0.0
  %1315 = vmatprep.subr.mxu0 0.0
  %1316 = vmatpush1.msra.mxu0 0.0
  %1317 = vmatprep.subr.mxu0 0.0
  %1318 = vmatpush1.msra.mxu0 0.0
  %1319 = vmatprep.subr.mxu0 0.0
  %1320 = vmatpush1.msra.mxu0 0.0
  %1321 = vmatprep.subr.mxu0 0.0
  %1322 = vmatpush1.msra.mxu0 0.0
  %1323 = vmatprep.subr.mxu0 0.0
  %1324 = vmatpush1.msra.mxu0 0.0
  %1325 = vmatprep.subr.mxu0 0.0
  %1326 = vmatpush1.msra.mxu0 0.0
  %1327 = vmatprep.subr.mxu0 0.0
  %1328 = vmatpush1.msra.mxu0 0.0
  %1329 = vmatprep.subr.mxu0 0.0
  %1330 = vmatpush1.msra.mxu0 0.0
  %1331 = vmatprep.subr.mxu0 0.0
  %1332 = vmatpush1.msra.mxu0 0.0
  %1333 = vmatprep.subr.mxu0 0.0
  %1334 = vmatpush1.msra.mxu0 0.0
  %1335 = vmatprep.mubr.f32.mxu0 0.0
  %1336 = vmatmul.mubr.f32.gmra.mrb[0].mxu0 %v1269
  %v1337 = vpop.f32.mrb[0].mxu0
  %v1338 = vadd.f32 0.0, %v1337
  %v1339 = vpop.f32.mrb[0].mxu0
  %1340 = vdwg.mxu0
  %vm1341 = vcmask 58368
  %v1342 = vsel %vm1341, %v1338, 0.0
  %1343 = vadd.xlane.f32.xlu0 %v1342
  %v1344 = vpop.xlane.xlu0 %1343
  %v1345 = vld [vmem:[%s9] sm:$0xff]
  %v1346 = vld [vmem:[#allocation4] sm:$0x3]
  %v1347 = vadd.f32 %v1239, %v1346
  %1348 = vst.msk [vmem:[%s14] sm:$0x3] %vm1341, 0
  %s1349 = scalar_lea.vmem [#allocation4], 2
  %v1350 = vld [vmem:[%s1349] sm:$0x3]
  %v1351 = vld [vmem:[%s267] sm:$0x3]
  %vm1352 = vcmp.gt.f32.partialorder %v1351, 0.0
  %v1355 = vunpack.c.l.s4 1966171168
  %v1356 = vunpack.c.0.s8 %v1355
  %v1357 = vlaneseq
  %v1358 = vshrl.u32 %v1357, 7
  %v1359 = vsub.s32 %v1356, %v1358
  %v1360 = vrot.slane %v1347, %v1359
  %v1361 = vcombine.high %v1360, %v1360
  %v1363 = vunpack.c.l.s4 1966171168
  %v1364 = vunpack.c.0.s8 %v1363
  %v1365 = vlaneseq
  %v1366 = vshrl.u32 %v1365, 7
  %v1367 = vsub.s32 %v1364, %v1366
  %v1368 = vrot.slane %v1360, %v1367
  %v1370 = vunpack.c.l.s4 1966171168
  %v1371 = vunpack.c.0.s8 %v1370
  %v1372 = vlaneseq
  %v1373 = vshrl.u32 %v1372, 7
  %v1374 = vsub.s32 %v1371, %v1373
  %v1375 = vrot.slane %v1361, %v1374
  %v1376 = vlaneseq
  %v1377 = vshrl.u32 %v1376, 7
  %v1378 = vsub.s32 0, %v1377
  %v1379 = vrot.slane %v1368, %v1378
  %v1380 = vlaneseq
  %v1381 = vshrl.u32 %v1380, 7
  %v1382 = vsub.s32 0, %v1381
  %v1383 = vrot.slane %v1375, %v1382
  %v1386 = vadd.f32 %v1379, %v1345
  %v1387 = vadd.f32 %v1383, %v1345
  %v1388 = vsel %vm1107, %v1386, -inf
  %1389 = vmax.xlane.f32.xlu0 %v1388
  %v1390 = vpop.xlane.xlu0 %1389
  %v1391 = vsel %vm1107, %v1387, -inf
  %1392 = vmax.xlane.f32.xlu0 %v1391
  %v1393 = vpop.xlane.xlu0 %1392
  %v1394 = vsub.f32 %v1386, %v1390
  %v1395 = vsub.f32 %v1387, %v1393
  %v1396 = vmul.f32 %v1394, 1.442695
  %v1397 = vpow.pop %v1396
  %v1398 = vmul.f32 %v1395, 1.442695
  %v1399 = vpow.pop %v1398
  %v1400 = vsel %vm1107, %v1397, 0.0
  %1401 = vadd.xlane.f32.xlu0 %v1400
  %v1402 = vpop.xlane.xlu0 %1401
  %v1403 = vsel %vm1107, %v1399, 0.0
  %1404 = vadd.xlane.f32.xlu0 %v1403
  %v1405 = vpop.xlane.xlu0 %1404
  %v1406 = vlog2.pop %v1402
  %v1407 = vmul.f32 %v1406, 0.6931472
  %v1408 = vlog2.pop %v1405
  %v1409 = vmul.f32 %v1408, 0.6931472
  %v1410 = vadd.f32 %v1390, %v1407
  %v1411 = vadd.f32 %v1393, %v1409
  %vm1412 = vcmp.eq.f32.partialorder %v1386, %v1390
  %vm1413 = vcmp.eq.f32.partialorder %v1387, %v1393
  %v1414 = vsel %vm1412, %v135, 8
  %v1415 = vsel %vm1413, %v135, 8
  %v1416 = vsel %vm1107, %v1414, 2147483647
  %v1417 = vand.u32 %v1416, 65535
  %v1418 = vshra.s32 %v1416, 16
  %v1419 = vcvt.s32.f32 %v1417
  %v1420 = vcvt.s32.f32 %v1418
  %1421 = vmin.xlane.f32.xlu0 %v1420
  %v1422 = vpop.xlane.xlu0 %1421
  %vm1423 = vcmp.eq.f32.partialorder %v1420, %v1422
  %v1424 = vsel %vm1423, %v1419, inf
  %1425 = vmin.xlane.f32.xlu0 %v1424
  %v1426 = vpop.xlane.xlu0 %1425
  %v1427 = vcvt.f32.s32 %v1426
  %v1428 = vcvt.f32.s32 %v1422
  %v1429 = vshll.u32 %v1428, 16
  %v1430 = vadd.s32 %v1429, %v1427
  %v1431 = vsel %vm1107, %v1415, 2147483647
  %v1432 = vand.u32 %v1431, 65535
  %v1433 = vshra.s32 %v1431, 16
  %v1434 = vcvt.s32.f32 %v1432
  %v1435 = vcvt.s32.f32 %v1433
  %1436 = vmin.xlane.f32.xlu0 %v1435
  %v1437 = vpop.xlane.xlu0 %1436
  %vm1438 = vcmp.eq.f32.partialorder %v1435, %v1437
  %v1439 = vsel %vm1438, %v1434, inf
  %1440 = vmin.xlane.f32.xlu0 %v1439
  %v1441 = vpop.xlane.xlu0 %1440
  %v1442 = vcvt.f32.s32 %v1441
  %v1443 = vcvt.f32.s32 %v1437
  %v1444 = vshll.u32 %v1443, 16
  %v1445 = vadd.s32 %v1444, %v1442
  %v1446 = vlaneseq
  %v1447 = vshrl.u32 %v1446, 7
  %v1448 = vsub.s32 %v135, %v1447
  %v1449 = vrot.slane %v1430, %v1448
  %v1450 = vlaneseq
  %v1451 = vshrl.u32 %v1450, 7
  %v1452 = vsub.s32 %v135, %v1451
  %v1453 = vrot.slane %v1445, %v1452
  %vm1454 = vcmask 1041409
  %v1455 = vsel %vm1454, %v1453, %v1449
  %s1456 = scalar_lea.vmem %s14, 2
  %1457 = vst.msk [vmem:[%s1456] sm:$0x3] %vm1341, %v1455
  %v1459 = vlaneseq
  %v1460 = vshrl.u32 %v1459, 7
  %v1461 = vsub.s32 0, %v1460
  %v1462 = vrot.slane %v1350, %v1461
  %1464 = vbcast.lane.b32.xlu0 %v1462, 256
  %v1465 = vpop.permute.xlu0 %1464
  %v1466 = vlaneseq
  %v1467 = vshrl.u32 %v1466, 7
  %v1468 = vsub.s32 1, %v1467
  %v1469 = vrot.slane %v1350, %v1468
  %1471 = vbcast.lane.b32.xlu0 %v1469, 256
  %v1472 = vpop.permute.xlu0 %1471
  %v1475 = vadd.f32 %v1410, %v1465
  %v1476 = vadd.f32 %v1411, %v1472
  %v1477 = vsel %vm1352, 1, 0
  %1478 = vset.pattern.permute.xlu0 0
  %1479 = vperm.xlu0 %1478, %v1477
  %v1480 = vpop.permute.xlu0 %1479
  %vm1481 = vcmp.eq.s32.totalorder %v1480, 1
  %1484 = vset.pattern.permute.xlu0 0
  %1485 = vperm.xlu0 %1484, %v1475
  %v1486 = vpop.permute.xlu0 %1485
  %1487 = vset.pattern.permute.xlu0 0
  %1488 = vperm.xlu0 %1487, %v1476
  %v1489 = vpop.permute.xlu0 %1488
  %v1490 = vlaneseq
  %v1491 = vshrl.u32 %v1490, 7
  %v1492 = vsub.s32 %v135, %v1491
  %v1493 = vrot.slane %v1486, %v1492
  %v1494 = vlaneseq
  %v1495 = vshrl.u32 %v1494, 7
  %v1496 = vsub.s32 %v135, %v1495
  %v1497 = vrot.slane %v1489, %v1496
  %v1498 = vsel %vm1454, %v1497, %v1493
  %v1500 = vsel %vm1481, %v1498, %v1347
  %v1501 = vadd.f32 %v1390, %v1465
  %v1502 = vadd.f32 %v1393, %v1472
  %1505 = vset.pattern.permute.xlu0 0
  %1506 = vperm.xlu0 %1505, %v1501
  %v1507 = vpop.permute.xlu0 %1506
  %1508 = vset.pattern.permute.xlu0 0
  %1509 = vperm.xlu0 %1508, %v1502
  %v1510 = vpop.permute.xlu0 %1509
  %v1511 = vlaneseq
  %v1512 = vshrl.u32 %v1511, 7
  %v1513 = vsub.s32 %v135, %v1512
  %v1514 = vrot.slane %v1507, %v1513
  %v1515 = vlaneseq
  %v1516 = vshrl.u32 %v1515, 7
  %v1517 = vsub.s32 %v135, %v1516
  %v1518 = vrot.slane %v1510, %v1517
  %v1519 = vsel %vm1454, %v1518, %v1514
  %v1521 = vsel %vm1481, %v1519, %v1347
  %s1522 = scalar_lea.vmem [#allocation4], 4
  %v1523 = vld [vmem:[%s1522] sm:$0x3]
  %v1524 = vld [vmem:[%s383] sm:$0x3]
  %vm1525 = vcmp.gt.f32.partialorder %v1524, 0.0
  %v1528 = vunpack.c.l.s4 1966171168
  %v1529 = vunpack.c.0.s8 %v1528
  %v1530 = vlaneseq
  %v1531 = vshrl.u32 %v1530, 7
  %v1532 = vsub.s32 %v1529, %v1531
  %v1533 = vrot.slane %v1500, %v1532
  %v1534 = vcombine.high %v1533, %v1533
  %v1536 = vunpack.c.l.s4 1966171168
  %v1537 = vunpack.c.0.s8 %v1536
  %v1538 = vlaneseq
  %v1539 = vshrl.u32 %v1538, 7
  %v1540 = vsub.s32 %v1537, %v1539
  %v1541 = vrot.slane %v1533, %v1540
  %v1543 = vunpack.c.l.s4 1966171168
  %v1544 = vunpack.c.0.s8 %v1543
  %v1545 = vlaneseq
  %v1546 = vshrl.u32 %v1545, 7
  %v1547 = vsub.s32 %v1544, %v1546
  %v1548 = vrot.slane %v1534, %v1547
  %v1549 = vlaneseq
  %v1550 = vshrl.u32 %v1549, 7
  %v1551 = vsub.s32 0, %v1550
  %v1552 = vrot.slane %v1541, %v1551
  %v1553 = vlaneseq
  %v1554 = vshrl.u32 %v1553, 7
  %v1555 = vsub.s32 0, %v1554
  %v1556 = vrot.slane %v1548, %v1555
  %v1559 = vadd.f32 %v1552, %v1345
  %v1560 = vadd.f32 %v1556, %v1345
  %v1561 = vsel %vm1107, %v1559, -inf
  %1562 = vmax.xlane.f32.xlu0 %v1561
  %v1563 = vpop.xlane.xlu0 %1562
  %v1564 = vsel %vm1107, %v1560, -inf
  %1565 = vmax.xlane.f32.xlu0 %v1564
  %v1566 = vpop.xlane.xlu0 %1565
  %v1567 = vsub.f32 %v1559, %v1563
  %v1568 = vsub.f32 %v1560, %v1566
  %v1569 = vmul.f32 %v1567, 1.442695
  %v1570 = vpow.pop %v1569
  %v1571 = vmul.f32 %v1568, 1.442695
  %v1572 = vpow.pop %v1571
  %v1573 = vsel %vm1107, %v1570, 0.0
  %1574 = vadd.xlane.f32.xlu0 %v1573
  %v1575 = vpop.xlane.xlu0 %1574
  %v1576 = vsel %vm1107, %v1572, 0.0
  %1577 = vadd.xlane.f32.xlu0 %v1576
  %v1578 = vpop.xlane.xlu0 %1577
  %v1579 = vlog2.pop %v1575
  %v1580 = vmul.f32 %v1579, 0.6931472
  %v1581 = vlog2.pop %v1578
  %v1582 = vmul.f32 %v1581, 0.6931472
  %v1583 = vadd.f32 %v1563, %v1580
  %v1584 = vadd.f32 %v1566, %v1582
  %v1587 = vunpack.c.l.s4 1966171168
  %v1588 = vunpack.c.0.s8 %v1587
  %v1589 = vlaneseq
  %v1590 = vshrl.u32 %v1589, 7
  %v1591 = vsub.s32 %v1588, %v1590
  %v1592 = vrot.slane %v1521, %v1591
  %v1593 = vcombine.high %v1592, %v1592
  %v1595 = vunpack.c.l.s4 1966171168
  %v1596 = vunpack.c.0.s8 %v1595
  %v1597 = vlaneseq
  %v1598 = vshrl.u32 %v1597, 7
  %v1599 = vsub.s32 %v1596, %v1598
  %v1600 = vrot.slane %v1592, %v1599
  %v1602 = vunpack.c.l.s4 1966171168
  %v1603 = vunpack.c.0.s8 %v1602
  %v1604 = vlaneseq
  %v1605 = vshrl.u32 %v1604, 7
  %v1606 = vsub.s32 %v1603, %v1605
  %v1607 = vrot.slane %v1593, %v1606
  %v1608 = vlaneseq
  %v1609 = vshrl.u32 %v1608, 7
  %v1610 = vsub.s32 0, %v1609
  %v1611 = vrot.slane %v1600, %v1610
  %v1612 = vlaneseq
  %v1613 = vshrl.u32 %v1612, 7
  %v1614 = vsub.s32 0, %v1613
  %v1615 = vrot.slane %v1607, %v1614
  %v1618 = vadd.f32 %v1611, %v1345
  %v1619 = vadd.f32 %v1615, %v1345
  %v1620 = vsel %vm1107, %v1618, -inf
  %1621 = vmax.xlane.f32.xlu0 %v1620
  %v1622 = vpop.xlane.xlu0 %1621
  %v1623 = vsel %vm1107, %v1619, -inf
  %1624 = vmax.xlane.f32.xlu0 %v1623
  %v1625 = vpop.xlane.xlu0 %1624
  %vm1626 = vcmp.eq.f32.partialorder %v1618, %v1622
  %vm1627 = vcmp.eq.f32.partialorder %v1619, %v1625
  %v1628 = vsel %vm1626, %v135, 8
  %v1629 = vsel %vm1627, %v135, 8
  %v1630 = vsel %vm1107, %v1628, 2147483647
  %v1631 = vand.u32 %v1630, 65535
  %v1632 = vshra.s32 %v1630, 16
  %v1633 = vcvt.s32.f32 %v1631
  %v1634 = vcvt.s32.f32 %v1632
  %1635 = vmin.xlane.f32.xlu0 %v1634
  %v1636 = vpop.xlane.xlu0 %1635
  %vm1637 = vcmp.eq.f32.partialorder %v1634, %v1636
  %v1638 = vsel %vm1637, %v1633, inf
  %1639 = vmin.xlane.f32.xlu0 %v1638
  %v1640 = vpop.xlane.xlu0 %1639
  %v1641 = vcvt.f32.s32 %v1640
  %v1642 = vcvt.f32.s32 %v1636
  %v1643 = vshll.u32 %v1642, 16
  %v1644 = vadd.s32 %v1643, %v1641
  %v1645 = vsel %vm1107, %v1629, 2147483647
  %v1646 = vand.u32 %v1645, 65535
  %v1647 = vshra.s32 %v1645, 16
  %v1648 = vcvt.s32.f32 %v1646
  %v1649 = vcvt.s32.f32 %v1647
  %1650 = vmin.xlane.f32.xlu0 %v1649
  %v1651 = vpop.xlane.xlu0 %1650
  %vm1652 = vcmp.eq.f32.partialorder %v1649, %v1651
  %v1653 = vsel %vm1652, %v1648, inf
  %1654 = vmin.xlane.f32.xlu0 %v1653
  %v1655 = vpop.xlane.xlu0 %1654
  %v1656 = vcvt.f32.s32 %v1655
  %v1657 = vcvt.f32.s32 %v1651
  %v1658 = vshll.u32 %v1657, 16
  %v1659 = vadd.s32 %v1658, %v1656
  %v1660 = vlaneseq
  %v1661 = vshrl.u32 %v1660, 7
  %v1662 = vsub.s32 %v135, %v1661
  %v1663 = vrot.slane %v1644, %v1662
  %v1664 = vlaneseq
  %v1665 = vshrl.u32 %v1664, 7
  %v1666 = vsub.s32 %v135, %v1665
  %v1667 = vrot.slane %v1659, %v1666
  %v1668 = vsel %vm1454, %v1667, %v1663
  %s1669 = scalar_lea.vmem %s14, 4
  %1670 = vst.msk [vmem:[%s1669] sm:$0x3] %vm1341, %v1668
  %v1672 = vlaneseq
  %v1673 = vshrl.u32 %v1672, 7
  %v1674 = vsub.s32 0, %v1673
  %v1675 = vrot.slane %v1523, %v1674
  %1677 = vbcast.lane.b32.xlu0 %v1675, 256
  %v1678 = vpop.permute.xlu0 %1677
  %v1679 = vlaneseq
  %v1680 = vshrl.u32 %v1679, 7
  %v1681 = vsub.s32 1, %v1680
  %v1682 = vrot.slane %v1523, %v1681
  %1684 = vbcast.lane.b32.xlu0 %v1682, 256
  %v1685 = vpop.permute.xlu0 %1684
  %v1688 = vadd.f32 %v1583, %v1678
  %v1689 = vadd.f32 %v1584, %v1685
  %v1690 = vsel %vm1525, 1, 0
  %1691 = vset.pattern.permute.xlu0 0
  %1692 = vperm.xlu0 %1691, %v1690
  %v1693 = vpop.permute.xlu0 %1692
  %vm1694 = vcmp.eq.s32.totalorder %v1693, 1
  %1697 = vset.pattern.permute.xlu0 0
  %1698 = vperm.xlu0 %1697, %v1688
  %v1699 = vpop.permute.xlu0 %1698
  %1700 = vset.pattern.permute.xlu0 0
  %1701 = vperm.xlu0 %1700, %v1689
  %v1702 = vpop.permute.xlu0 %1701
  %v1703 = vlaneseq
  %v1704 = vshrl.u32 %v1703, 7
  %v1705 = vsub.s32 %v135, %v1704
  %v1706 = vrot.slane %v1699, %v1705
  %v1707 = vlaneseq
  %v1708 = vshrl.u32 %v1707, 7
  %v1709 = vsub.s32 %v135, %v1708
  %v1710 = vrot.slane %v1702, %v1709
  %v1711 = vsel %vm1454, %v1710, %v1706
  %v1713 = vsel %vm1694, %v1711, %v1500
  %v1714 = vadd.f32 %v1622, %v1678
  %v1715 = vadd.f32 %v1625, %v1685
  %1718 = vset.pattern.permute.xlu0 0
  %1719 = vperm.xlu0 %1718, %v1714
  %v1720 = vpop.permute.xlu0 %1719
  %1721 = vset.pattern.permute.xlu0 0
  %1722 = vperm.xlu0 %1721, %v1715
  %v1723 = vpop.permute.xlu0 %1722
  %v1724 = vlaneseq
  %v1725 = vshrl.u32 %v1724, 7
  %v1726 = vsub.s32 %v135, %v1725
  %v1727 = vrot.slane %v1720, %v1726
  %v1728 = vlaneseq
  %v1729 = vshrl.u32 %v1728, 7
  %v1730 = vsub.s32 %v135, %v1729
  %v1731 = vrot.slane %v1723, %v1730
  %v1732 = vsel %vm1454, %v1731, %v1727
  %v1734 = vsel %vm1694, %v1732, %v1521
  %s1735 = scalar_lea.vmem [#allocation4], 6
  %v1736 = vld [vmem:[%s1735] sm:$0x3]
  %v1737 = vld [vmem:[%s498] sm:$0x3]
  %vm1738 = vcmp.gt.f32.partialorder %v1737, 0.0
  %v1741 = vunpack.c.l.s4 1966171168
  %v1742 = vunpack.c.0.s8 %v1741
  %v1743 = vlaneseq
  %v1744 = vshrl.u32 %v1743, 7
  %v1745 = vsub.s32 %v1742, %v1744
  %v1746 = vrot.slane %v1713, %v1745
  %v1747 = vcombine.high %v1746, %v1746
  %v1749 = vunpack.c.l.s4 1966171168
  %v1750 = vunpack.c.0.s8 %v1749
  %v1751 = vlaneseq
  %v1752 = vshrl.u32 %v1751, 7
  %v1753 = vsub.s32 %v1750, %v1752
  %v1754 = vrot.slane %v1746, %v1753
  %v1756 = vunpack.c.l.s4 1966171168
  %v1757 = vunpack.c.0.s8 %v1756
  %v1758 = vlaneseq
  %v1759 = vshrl.u32 %v1758, 7
  %v1760 = vsub.s32 %v1757, %v1759
  %v1761 = vrot.slane %v1747, %v1760
  %v1762 = vlaneseq
  %v1763 = vshrl.u32 %v1762, 7
  %v1764 = vsub.s32 0, %v1763
  %v1765 = vrot.slane %v1754, %v1764
  %v1766 = vlaneseq
  %v1767 = vshrl.u32 %v1766, 7
  %v1768 = vsub.s32 0, %v1767
  %v1769 = vrot.slane %v1761, %v1768
  %v1772 = vadd.f32 %v1765, %v1345
  %v1773 = vadd.f32 %v1769, %v1345
  %v1774 = vsel %vm1107, %v1772, -inf
  %1775 = vmax.xlane.f32.xlu0 %v1774
  %v1776 = vpop.xlane.xlu0 %1775
  %v1777 = vsel %vm1107, %v1773, -inf
  %1778 = vmax.xlane.f32.xlu0 %v1777
  %v1779 = vpop.xlane.xlu0 %1778
  %v1780 = vsub.f32 %v1772, %v1776
  %v1781 = vsub.f32 %v1773, %v1779
  %v1782 = vmul.f32 %v1780, 1.442695
  %v1783 = vpow.pop %v1782
  %v1784 = vmul.f32 %v1781, 1.442695
  %v1785 = vpow.pop %v1784
  %v1786 = vsel %vm1107, %v1783, 0.0
  %1787 = vadd.xlane.f32.xlu0 %v1786
  %v1788 = vpop.xlane.xlu0 %1787
  %v1789 = vsel %vm1107, %v1785, 0.0
  %1790 = vadd.xlane.f32.xlu0 %v1789
  %v1791 = vpop.xlane.xlu0 %1790
  %v1792 = vlog2.pop %v1788
  %v1793 = vmul.f32 %v1792, 0.6931472
  %v1794 = vlog2.pop %v1791
  %v1795 = vmul.f32 %v1794, 0.6931472
  %v1796 = vadd.f32 %v1776, %v1793
  %v1797 = vadd.f32 %v1779, %v1795
  %v1800 = vunpack.c.l.s4 1966171168
  %v1801 = vunpack.c.0.s8 %v1800
  %v1802 = vlaneseq
  %v1803 = vshrl.u32 %v1802, 7
  %v1804 = vsub.s32 %v1801, %v1803
  %v1805 = vrot.slane %v1734, %v1804
  %v1806 = vcombine.high %v1805, %v1805
  %v1808 = vunpack.c.l.s4 1966171168
  %v1809 = vunpack.c.0.s8 %v1808
  %v1810 = vlaneseq
  %v1811 = vshrl.u32 %v1810, 7
  %v1812 = vsub.s32 %v1809, %v1811
  %v1813 = vrot.slane %v1805, %v1812
  %v1815 = vunpack.c.l.s4 1966171168
  %v1816 = vunpack.c.0.s8 %v1815
  %v1817 = vlaneseq
  %v1818 = vshrl.u32 %v1817, 7
  %v1819 = vsub.s32 %v1816, %v1818
  %v1820 = vrot.slane %v1806, %v1819
  %v1821 = vlaneseq
  %v1822 = vshrl.u32 %v1821, 7
  %v1823 = vsub.s32 0, %v1822
  %v1824 = vrot.slane %v1813, %v1823
  %v1825 = vlaneseq
  %v1826 = vshrl.u32 %v1825, 7
  %v1827 = vsub.s32 0, %v1826
  %v1828 = vrot.slane %v1820, %v1827
  %v1831 = vadd.f32 %v1824, %v1345
  %v1832 = vadd.f32 %v1828, %v1345
  %v1833 = vsel %vm1107, %v1831, -inf
  %1834 = vmax.xlane.f32.xlu0 %v1833
  %v1835 = vpop.xlane.xlu0 %1834
  %v1836 = vsel %vm1107, %v1832, -inf
  %1837 = vmax.xlane.f32.xlu0 %v1836
  %v1838 = vpop.xlane.xlu0 %1837
  %vm1839 = vcmp.eq.f32.partialorder %v1831, %v1835
  %vm1840 = vcmp.eq.f32.partialorder %v1832, %v1838
  %v1841 = vsel %vm1839, %v135, 8
  %v1842 = vsel %vm1840, %v135, 8
  %v1843 = vsel %vm1107, %v1841, 2147483647
  %v1844 = vand.u32 %v1843, 65535
  %v1845 = vshra.s32 %v1843, 16
  %v1846 = vcvt.s32.f32 %v1844
  %v1847 = vcvt.s32.f32 %v1845
  %1848 = vmin.xlane.f32.xlu0 %v1847
  %v1849 = vpop.xlane.xlu0 %1848
  %vm1850 = vcmp.eq.f32.partialorder %v1847, %v1849
  %v1851 = vsel %vm1850, %v1846, inf
  %1852 = vmin.xlane.f32.xlu0 %v1851
  %v1853 = vpop.xlane.xlu0 %1852
  %v1854 = vcvt.f32.s32 %v1853
  %v1855 = vcvt.f32.s32 %v1849
  %v1856 = vshll.u32 %v1855, 16
  %v1857 = vadd.s32 %v1856, %v1854
  %v1858 = vsel %vm1107, %v1842, 2147483647
  %v1859 = vand.u32 %v1858, 65535
  %v1860 = vshra.s32 %v1858, 16
  %v1861 = vcvt.s32.f32 %v1859
  %v1862 = vcvt.s32.f32 %v1860
  %1863 = vmin.xlane.f32.xlu0 %v1862
  %v1864 = vpop.xlane.xlu0 %1863
  %vm1865 = vcmp.eq.f32.partialorder %v1862, %v1864
  %v1866 = vsel %vm1865, %v1861, inf
  %1867 = vmin.xlane.f32.xlu0 %v1866
  %v1868 = vpop.xlane.xlu0 %1867
  %v1869 = vcvt.f32.s32 %v1868
  %v1870 = vcvt.f32.s32 %v1864
  %v1871 = vshll.u32 %v1870, 16
  %v1872 = vadd.s32 %v1871, %v1869
  %v1873 = vlaneseq
  %v1874 = vshrl.u32 %v1873, 7
  %v1875 = vsub.s32 %v135, %v1874
  %v1876 = vrot.slane %v1857, %v1875
  %v1877 = vlaneseq
  %v1878 = vshrl.u32 %v1877, 7
  %v1879 = vsub.s32 %v135, %v1878
  %v1880 = vrot.slane %v1872, %v1879
  %v1881 = vsel %vm1454, %v1880, %v1876
  %s1882 = scalar_lea.vmem %s14, 6
  %1883 = vst.msk [vmem:[%s1882] sm:$0x3] %vm1341, %v1881
  %v1885 = vlaneseq
  %v1886 = vshrl.u32 %v1885, 7
  %v1887 = vsub.s32 0, %v1886
  %v1888 = vrot.slane %v1736, %v1887
  %1890 = vbcast.lane.b32.xlu0 %v1888, 256
  %v1891 = vpop.permute.xlu0 %1890
  %v1892 = vlaneseq
  %v1893 = vshrl.u32 %v1892, 7
  %v1894 = vsub.s32 1, %v1893
  %v1895 = vrot.slane %v1736, %v1894
  %1897 = vbcast.lane.b32.xlu0 %v1895, 256
  %v1898 = vpop.permute.xlu0 %1897
  %v1901 = vadd.f32 %v1796, %v1891
  %v1902 = vadd.f32 %v1797, %v1898
  %v1903 = vsel %vm1738, 1, 0
  %1904 = vset.pattern.permute.xlu0 0
  %1905 = vperm.xlu0 %1904, %v1903
  %v1906 = vpop.permute.xlu0 %1905
  %vm1907 = vcmp.eq.s32.totalorder %v1906, 1
  %1910 = vset.pattern.permute.xlu0 0
  %1911 = vperm.xlu0 %1910, %v1901
  %v1912 = vpop.permute.xlu0 %1911
  %1913 = vset.pattern.permute.xlu0 0
  %1914 = vperm.xlu0 %1913, %v1902
  %v1915 = vpop.permute.xlu0 %1914
  %v1916 = vlaneseq
  %v1917 = vshrl.u32 %v1916, 7
  %v1918 = vsub.s32 %v135, %v1917
  %v1919 = vrot.slane %v1912, %v1918
  %v1920 = vlaneseq
  %v1921 = vshrl.u32 %v1920, 7
  %v1922 = vsub.s32 %v135, %v1921
  %v1923 = vrot.slane %v1915, %v1922
  %v1924 = vsel %vm1454, %v1923, %v1919
  %v1926 = vsel %vm1907, %v1924, %v1713
  %v1927 = vadd.f32 %v1835, %v1891
  %v1928 = vadd.f32 %v1838, %v1898
  %1931 = vset.pattern.permute.xlu0 0
  %1932 = vperm.xlu0 %1931, %v1927
  %v1933 = vpop.permute.xlu0 %1932
  %1934 = vset.pattern.permute.xlu0 0
  %1935 = vperm.xlu0 %1934, %v1928
  %v1936 = vpop.permute.xlu0 %1935
  %v1937 = vlaneseq
  %v1938 = vshrl.u32 %v1937, 7
  %v1939 = vsub.s32 %v135, %v1938
  %v1940 = vrot.slane %v1933, %v1939
  %v1941 = vlaneseq
  %v1942 = vshrl.u32 %v1941, 7
  %v1943 = vsub.s32 %v135, %v1942
  %v1944 = vrot.slane %v1936, %v1943
  %v1945 = vsel %vm1454, %v1944, %v1940
  %v1947 = vsel %vm1907, %v1945, %v1734
  %s1948 = scalar_lea.vmem [#allocation4], 8
  %v1949 = vld [vmem:[%s1948] sm:$0x3]
  %v1950 = vld [vmem:[%s500] sm:$0x3]
  %vm1951 = vcmp.gt.f32.partialorder %v1950, 0.0
  %v1954 = vunpack.c.l.s4 1966171168
  %v1955 = vunpack.c.0.s8 %v1954
  %v1956 = vlaneseq
  %v1957 = vshrl.u32 %v1956, 7
  %v1958 = vsub.s32 %v1955, %v1957
  %v1959 = vrot.slane %v1926, %v1958
  %v1960 = vcombine.high %v1959, %v1959
  %v1962 = vunpack.c.l.s4 1966171168
  %v1963 = vunpack.c.0.s8 %v1962
  %v1964 = vlaneseq
  %v1965 = vshrl.u32 %v1964, 7
  %v1966 = vsub.s32 %v1963, %v1965
  %v1967 = vrot.slane %v1959, %v1966
  %v1969 = vunpack.c.l.s4 1966171168
  %v1970 = vunpack.c.0.s8 %v1969
  %v1971 = vlaneseq
  %v1972 = vshrl.u32 %v1971, 7
  %v1973 = vsub.s32 %v1970, %v1972
  %v1974 = vrot.slane %v1960, %v1973
  %v1975 = vlaneseq
  %v1976 = vshrl.u32 %v1975, 7
  %v1977 = vsub.s32 0, %v1976
  %v1978 = vrot.slane %v1967, %v1977
  %v1979 = vlaneseq
  %v1980 = vshrl.u32 %v1979, 7
  %v1981 = vsub.s32 0, %v1980
  %v1982 = vrot.slane %v1974, %v1981
  %v1985 = vadd.f32 %v1978, %v1345
  %v1986 = vadd.f32 %v1982, %v1345
  %v1987 = vsel %vm1107, %v1985, -inf
  %1988 = vmax.xlane.f32.xlu0 %v1987
  %v1989 = vpop.xlane.xlu0 %1988
  %v1990 = vsel %vm1107, %v1986, -inf
  %1991 = vmax.xlane.f32.xlu0 %v1990
  %v1992 = vpop.xlane.xlu0 %1991
  %v1993 = vsub.f32 %v1985, %v1989
  %v1994 = vsub.f32 %v1986, %v1992
  %v1995 = vmul.f32 %v1993, 1.442695
  %v1996 = vpow.pop %v1995
  %v1997 = vmul.f32 %v1994, 1.442695
  %v1998 = vpow.pop %v1997
  %v1999 = vsel %vm1107, %v1996, 0.0
  %2000 = vadd.xlane.f32.xlu0 %v1999
  %v2001 = vpop.xlane.xlu0 %2000
  %v2002 = vsel %vm1107, %v1998, 0.0
  %2003 = vadd.xlane.f32.xlu0 %v2002
  %v2004 = vpop.xlane.xlu0 %2003
  %v2005 = vlog2.pop %v2001
  %v2006 = vmul.f32 %v2005, 0.6931472
  %v2007 = vlog2.pop %v2004
  %v2008 = vmul.f32 %v2007, 0.6931472
  %v2009 = vadd.f32 %v1989, %v2006
  %v2010 = vadd.f32 %v1992, %v2008
  %v2013 = vunpack.c.l.s4 1966171168
  %v2014 = vunpack.c.0.s8 %v2013
  %v2015 = vlaneseq
  %v2016 = vshrl.u32 %v2015, 7
  %v2017 = vsub.s32 %v2014, %v2016
  %v2018 = vrot.slane %v1947, %v2017
  %v2019 = vcombine.high %v2018, %v2018
  %v2021 = vunpack.c.l.s4 1966171168
  %v2022 = vunpack.c.0.s8 %v2021
  %v2023 = vlaneseq
  %v2024 = vshrl.u32 %v2023, 7
  %v2025 = vsub.s32 %v2022, %v2024
  %v2026 = vrot.slane %v2018, %v2025
  %v2028 = vunpack.c.l.s4 1966171168
  %v2029 = vunpack.c.0.s8 %v2028
  %v2030 = vlaneseq
  %v2031 = vshrl.u32 %v2030, 7
  %v2032 = vsub.s32 %v2029, %v2031
  %v2033 = vrot.slane %v2019, %v2032
  %v2034 = vlaneseq
  %v2035 = vshrl.u32 %v2034, 7
  %v2036 = vsub.s32 0, %v2035
  %v2037 = vrot.slane %v2026, %v2036
  %v2038 = vlaneseq
  %v2039 = vshrl.u32 %v2038, 7
  %v2040 = vsub.s32 0, %v2039
  %v2041 = vrot.slane %v2033, %v2040
  %v2044 = vadd.f32 %v2037, %v1345
  %v2045 = vadd.f32 %v2041, %v1345
  %v2046 = vsel %vm1107, %v2044, -inf
  %2047 = vmax.xlane.f32.xlu0 %v2046
  %v2048 = vpop.xlane.xlu0 %2047
  %v2049 = vsel %vm1107, %v2045, -inf
  %2050 = vmax.xlane.f32.xlu0 %v2049
  %v2051 = vpop.xlane.xlu0 %2050
  %vm2052 = vcmp.eq.f32.partialorder %v2044, %v2048
  %vm2053 = vcmp.eq.f32.partialorder %v2045, %v2051
  %v2054 = vsel %vm2052, %v135, 8
  %v2055 = vsel %vm2053, %v135, 8
  %v2056 = vsel %vm1107, %v2054, 2147483647
  %v2057 = vand.u32 %v2056, 65535
  %v2058 = vshra.s32 %v2056, 16
  %v2059 = vcvt.s32.f32 %v2057
  %v2060 = vcvt.s32.f32 %v2058
  %2061 = vmin.xlane.f32.xlu0 %v2060
  %v2062 = vpop.xlane.xlu0 %2061
  %vm2063 = vcmp.eq.f32.partialorder %v2060, %v2062
  %v2064 = vsel %vm2063, %v2059, inf
  %2065 = vmin.xlane.f32.xlu0 %v2064
  %v2066 = vpop.xlane.xlu0 %2065
  %v2067 = vcvt.f32.s32 %v2066
  %v2068 = vcvt.f32.s32 %v2062
  %v2069 = vshll.u32 %v2068, 16
  %v2070 = vadd.s32 %v2069, %v2067
  %v2071 = vsel %vm1107, %v2055, 2147483647
  %v2072 = vand.u32 %v2071, 65535
  %v2073 = vshra.s32 %v2071, 16
  %v2074 = vcvt.s32.f32 %v2072
  %v2075 = vcvt.s32.f32 %v2073
  %2076 = vmin.xlane.f32.xlu0 %v2075
  %v2077 = vpop.xlane.xlu0 %2076
  %vm2078 = vcmp.eq.f32.partialorder %v2075, %v2077
  %v2079 = vsel %vm2078, %v2074, inf
  %2080 = vmin.xlane.f32.xlu0 %v2079
  %v2081 = vpop.xlane.xlu0 %2080
  %v2082 = vcvt.f32.s32 %v2081
  %v2083 = vcvt.f32.s32 %v2077
  %v2084 = vshll.u32 %v2083, 16
  %v2085 = vadd.s32 %v2084, %v2082
  %v2086 = vlaneseq
  %v2087 = vshrl.u32 %v2086, 7
  %v2088 = vsub.s32 %v135, %v2087
  %v2089 = vrot.slane %v2070, %v2088
  %v2090 = vlaneseq
  %v2091 = vshrl.u32 %v2090, 7
  %v2092 = vsub.s32 %v135, %v2091
  %v2093 = vrot.slane %v2085, %v2092
  %v2094 = vsel %vm1454, %v2093, %v2089
  %s2095 = scalar_lea.vmem %s14, 8
  %2096 = vst.msk [vmem:[%s2095] sm:$0x3] %vm1341, %v2094
  %v2098 = vlaneseq
  %v2099 = vshrl.u32 %v2098, 7
  %v2100 = vsub.s32 0, %v2099
  %v2101 = vrot.slane %v1949, %v2100
  %2103 = vbcast.lane.b32.xlu0 %v2101, 256
  %v2104 = vpop.permute.xlu0 %2103
  %v2105 = vlaneseq
  %v2106 = vshrl.u32 %v2105, 7
  %v2107 = vsub.s32 1, %v2106
  %v2108 = vrot.slane %v1949, %v2107
  %2110 = vbcast.lane.b32.xlu0 %v2108, 256
  %v2111 = vpop.permute.xlu0 %2110
  %v2114 = vadd.f32 %v2009, %v2104
  %v2115 = vadd.f32 %v2010, %v2111
  %v2116 = vsel %vm1951, 1, 0
  %2117 = vset.pattern.permute.xlu0 0
  %2118 = vperm.xlu0 %2117, %v2116
  %v2119 = vpop.permute.xlu0 %2118
  %vm2120 = vcmp.eq.s32.totalorder %v2119, 1
  %2123 = vset.pattern.permute.xlu0 0
  %2124 = vperm.xlu0 %2123, %v2114
  %v2125 = vpop.permute.xlu0 %2124
  %2126 = vset.pattern.permute.xlu0 0
  %2127 = vperm.xlu0 %2126, %v2115
  %v2128 = vpop.permute.xlu0 %2127
  %v2129 = vlaneseq
  %v2130 = vshrl.u32 %v2129, 7
  %v2131 = vsub.s32 %v135, %v2130
  %v2132 = vrot.slane %v2125, %v2131
  %v2133 = vlaneseq
  %v2134 = vshrl.u32 %v2133, 7
  %v2135 = vsub.s32 %v135, %v2134
  %v2136 = vrot.slane %v2128, %v2135
  %v2137 = vsel %vm1454, %v2136, %v2132
  %v2139 = vsel %vm2120, %v2137, %v1926
  %v2140 = vadd.f32 %v2048, %v2104
  %v2141 = vadd.f32 %v2051, %v2111
  %2144 = vset.pattern.permute.xlu0 0
  %2145 = vperm.xlu0 %2144, %v2140
  %v2146 = vpop.permute.xlu0 %2145
  %2147 = vset.pattern.permute.xlu0 0
  %2148 = vperm.xlu0 %2147, %v2141
  %v2149 = vpop.permute.xlu0 %2148
  %v2150 = vlaneseq
  %v2151 = vshrl.u32 %v2150, 7
  %v2152 = vsub.s32 %v135, %v2151
  %v2153 = vrot.slane %v2146, %v2152
  %v2154 = vlaneseq
  %v2155 = vshrl.u32 %v2154, 7
  %v2156 = vsub.s32 %v135, %v2155
  %v2157 = vrot.slane %v2149, %v2156
  %v2158 = vsel %vm1454, %v2157, %v2153
  %v2160 = vsel %vm2120, %v2158, %v1947
  %s2161 = scalar_lea.vmem [#allocation4], 10
  %v2162 = vld [vmem:[%s2161] sm:$0x3]
  %v2163 = vld [vmem:[%s385] sm:$0x3]
  %vm2164 = vcmp.gt.f32.partialorder %v2163, 0.0
  %v2167 = vunpack.c.l.s4 1966171168
  %v2168 = vunpack.c.0.s8 %v2167
  %v2169 = vlaneseq
  %v2170 = vshrl.u32 %v2169, 7
  %v2171 = vsub.s32 %v2168, %v2170
  %v2172 = vrot.slane %v2139, %v2171
  %v2173 = vcombine.high %v2172, %v2172
  %v2175 = vunpack.c.l.s4 1966171168
  %v2176 = vunpack.c.0.s8 %v2175
  %v2177 = vlaneseq
  %v2178 = vshrl.u32 %v2177, 7
  %v2179 = vsub.s32 %v2176, %v2178
  %v2180 = vrot.slane %v2172, %v2179
  %v2182 = vunpack.c.l.s4 1966171168
  %v2183 = vunpack.c.0.s8 %v2182
  %v2184 = vlaneseq
  %v2185 = vshrl.u32 %v2184, 7
  %v2186 = vsub.s32 %v2183, %v2185
  %v2187 = vrot.slane %v2173, %v2186
  %v2188 = vlaneseq
  %v2189 = vshrl.u32 %v2188, 7
  %v2190 = vsub.s32 0, %v2189
  %v2191 = vrot.slane %v2180, %v2190
  %v2192 = vlaneseq
  %v2193 = vshrl.u32 %v2192, 7
  %v2194 = vsub.s32 0, %v2193
  %v2195 = vrot.slane %v2187, %v2194
  %v2198 = vadd.f32 %v2191, %v1345
  %v2199 = vadd.f32 %v2195, %v1345
  %v2200 = vsel %vm1107, %v2198, -inf
  %2201 = vmax.xlane.f32.xlu0 %v2200
  %v2202 = vpop.xlane.xlu0 %2201
  %v2203 = vsel %vm1107, %v2199, -inf
  %2204 = vmax.xlane.f32.xlu0 %v2203
  %v2205 = vpop.xlane.xlu0 %2204
  %v2206 = vsub.f32 %v2198, %v2202
  %v2207 = vsub.f32 %v2199, %v2205
  %v2208 = vmul.f32 %v2206, 1.442695
  %v2209 = vpow.pop %v2208
  %v2210 = vmul.f32 %v2207, 1.442695
  %v2211 = vpow.pop %v2210
  %v2212 = vsel %vm1107, %v2209, 0.0
  %2213 = vadd.xlane.f32.xlu0 %v2212
  %v2214 = vpop.xlane.xlu0 %2213
  %v2215 = vsel %vm1107, %v2211, 0.0
  %2216 = vadd.xlane.f32.xlu0 %v2215
  %v2217 = vpop.xlane.xlu0 %2216
  %v2218 = vlog2.pop %v2214
  %v2219 = vmul.f32 %v2218, 0.6931472
  %v2220 = vlog2.pop %v2217
  %v2221 = vmul.f32 %v2220, 0.6931472
  %v2222 = vadd.f32 %v2202, %v2219
  %v2223 = vadd.f32 %v2205, %v2221
  %v2226 = vunpack.c.l.s4 1966171168
  %v2227 = vunpack.c.0.s8 %v2226
  %v2228 = vlaneseq
  %v2229 = vshrl.u32 %v2228, 7
  %v2230 = vsub.s32 %v2227, %v2229
  %v2231 = vrot.slane %v2160, %v2230
  %v2232 = vcombine.high %v2231, %v2231
  %v2234 = vunpack.c.l.s4 1966171168
  %v2235 = vunpack.c.0.s8 %v2234
  %v2236 = vlaneseq
  %v2237 = vshrl.u32 %v2236, 7
  %v2238 = vsub.s32 %v2235, %v2237
  %v2239 = vrot.slane %v2231, %v2238
  %v2241 = vunpack.c.l.s4 1966171168
  %v2242 = vunpack.c.0.s8 %v2241
  %v2243 = vlaneseq
  %v2244 = vshrl.u32 %v2243, 7
  %v2245 = vsub.s32 %v2242, %v2244
  %v2246 = vrot.slane %v2232, %v2245
  %v2247 = vlaneseq
  %v2248 = vshrl.u32 %v2247, 7
  %v2249 = vsub.s32 0, %v2248
  %v2250 = vrot.slane %v2239, %v2249
  %v2251 = vlaneseq
  %v2252 = vshrl.u32 %v2251, 7
  %v2253 = vsub.s32 0, %v2252
  %v2254 = vrot.slane %v2246, %v2253
  %v2257 = vadd.f32 %v2250, %v1345
  %v2258 = vadd.f32 %v2254, %v1345
  %v2259 = vsel %vm1107, %v2257, -inf
  %2260 = vmax.xlane.f32.xlu0 %v2259
  %v2261 = vpop.xlane.xlu0 %2260
  %v2262 = vsel %vm1107, %v2258, -inf
  %2263 = vmax.xlane.f32.xlu0 %v2262
  %v2264 = vpop.xlane.xlu0 %2263
  %vm2265 = vcmp.eq.f32.partialorder %v2257, %v2261
  %vm2266 = vcmp.eq.f32.partialorder %v2258, %v2264
  %v2267 = vsel %vm2265, %v135, 8
  %v2268 = vsel %vm2266, %v135, 8
  %v2269 = vsel %vm1107, %v2267, 2147483647
  %v2270 = vand.u32 %v2269, 65535
  %v2271 = vshra.s32 %v2269, 16
  %v2272 = vcvt.s32.f32 %v2270
  %v2273 = vcvt.s32.f32 %v2271
  %2274 = vmin.xlane.f32.xlu0 %v2273
  %v2275 = vpop.xlane.xlu0 %2274
  %vm2276 = vcmp.eq.f32.partialorder %v2273, %v2275
  %v2277 = vsel %vm2276, %v2272, inf
  %2278 = vmin.xlane.f32.xlu0 %v2277
  %v2279 = vpop.xlane.xlu0 %2278
  %v2280 = vcvt.f32.s32 %v2279
  %v2281 = vcvt.f32.s32 %v2275
  %v2282 = vshll.u32 %v2281, 16
  %v2283 = vadd.s32 %v2282, %v2280
  %v2284 = vsel %vm1107, %v2268, 2147483647
  %v2285 = vand.u32 %v2284, 65535
  %v2286 = vshra.s32 %v2284, 16
  %v2287 = vcvt.s32.f32 %v2285
  %v2288 = vcvt.s32.f32 %v2286
  %2289 = vmin.xlane.f32.xlu0 %v2288
  %v2290 = vpop.xlane.xlu0 %2289
  %vm2291 = vcmp.eq.f32.partialorder %v2288, %v2290
  %v2292 = vsel %vm2291, %v2287, inf
  %2293 = vmin.xlane.f32.xlu0 %v2292
  %v2294 = vpop.xlane.xlu0 %2293
  %v2295 = vcvt.f32.s32 %v2294
  %v2296 = vcvt.f32.s32 %v2290
  %v2297 = vshll.u32 %v2296, 16
  %v2298 = vadd.s32 %v2297, %v2295
  %v2299 = vlaneseq
  %v2300 = vshrl.u32 %v2299, 7
  %v2301 = vsub.s32 %v135, %v2300
  %v2302 = vrot.slane %v2283, %v2301
  %v2303 = vlaneseq
  %v2304 = vshrl.u32 %v2303, 7
  %v2305 = vsub.s32 %v135, %v2304
  %v2306 = vrot.slane %v2298, %v2305
  %v2307 = vsel %vm1454, %v2306, %v2302
  %s2308 = scalar_lea.vmem %s14, 10
  %2309 = vst.msk [vmem:[%s2308] sm:$0x3] %vm1341, %v2307
  %v2311 = vlaneseq
  %v2312 = vshrl.u32 %v2311, 7
  %v2313 = vsub.s32 0, %v2312
  %v2314 = vrot.slane %v2162, %v2313
  %2316 = vbcast.lane.b32.xlu0 %v2314, 256
  %v2317 = vpop.permute.xlu0 %2316
  %v2318 = vlaneseq
  %v2319 = vshrl.u32 %v2318, 7
  %v2320 = vsub.s32 1, %v2319
  %v2321 = vrot.slane %v2162, %v2320
  %2323 = vbcast.lane.b32.xlu0 %v2321, 256
  %v2324 = vpop.permute.xlu0 %2323
  %v2327 = vadd.f32 %v2222, %v2317
  %v2328 = vadd.f32 %v2223, %v2324
  %v2329 = vsel %vm2164, 1, 0
  %2330 = vset.pattern.permute.xlu0 0
  %2331 = vperm.xlu0 %2330, %v2329
  %v2332 = vpop.permute.xlu0 %2331
  %vm2333 = vcmp.eq.s32.totalorder %v2332, 1
  %2336 = vset.pattern.permute.xlu0 0
  %2337 = vperm.xlu0 %2336, %v2327
  %v2338 = vpop.permute.xlu0 %2337
  %2339 = vset.pattern.permute.xlu0 0
  %2340 = vperm.xlu0 %2339, %v2328
  %v2341 = vpop.permute.xlu0 %2340
  %v2342 = vlaneseq
  %v2343 = vshrl.u32 %v2342, 7
  %v2344 = vsub.s32 %v135, %v2343
  %v2345 = vrot.slane %v2338, %v2344
  %v2346 = vlaneseq
  %v2347 = vshrl.u32 %v2346, 7
  %v2348 = vsub.s32 %v135, %v2347
  %v2349 = vrot.slane %v2341, %v2348
  %v2350 = vsel %vm1454, %v2349, %v2345
  %v2352 = vsel %vm2333, %v2350, %v2139
  %v2353 = vadd.f32 %v2261, %v2317
  %v2354 = vadd.f32 %v2264, %v2324
  %2357 = vset.pattern.permute.xlu0 0
  %2358 = vperm.xlu0 %2357, %v2353
  %v2359 = vpop.permute.xlu0 %2358
  %2360 = vset.pattern.permute.xlu0 0
  %2361 = vperm.xlu0 %2360, %v2354
  %v2362 = vpop.permute.xlu0 %2361
  %v2363 = vlaneseq
  %v2364 = vshrl.u32 %v2363, 7
  %v2365 = vsub.s32 %v135, %v2364
  %v2366 = vrot.slane %v2359, %v2365
  %v2367 = vlaneseq
  %v2368 = vshrl.u32 %v2367, 7
  %v2369 = vsub.s32 %v135, %v2368
  %v2370 = vrot.slane %v2362, %v2369
  %v2371 = vsel %vm1454, %v2370, %v2366
  %v2373 = vsel %vm2333, %v2371, %v2160
  %s2374 = scalar_lea.vmem [#allocation4], 12
  %v2375 = vld [vmem:[%s2374] sm:$0x3]
  %v2376 = vld [vmem:[%s269] sm:$0x3]
  %vm2377 = vcmp.gt.f32.partialorder %v2376, 0.0
  %v2380 = vunpack.c.l.s4 1966171168
  %v2381 = vunpack.c.0.s8 %v2380
  %v2382 = vlaneseq
  %v2383 = vshrl.u32 %v2382, 7
  %v2384 = vsub.s32 %v2381, %v2383
  %v2385 = vrot.slane %v2352, %v2384
  %v2386 = vcombine.high %v2385, %v2385
  %v2388 = vunpack.c.l.s4 1966171168
  %v2389 = vunpack.c.0.s8 %v2388
  %v2390 = vlaneseq
  %v2391 = vshrl.u32 %v2390, 7
  %v2392 = vsub.s32 %v2389, %v2391
  %v2393 = vrot.slane %v2385, %v2392
  %v2395 = vunpack.c.l.s4 1966171168
  %v2396 = vunpack.c.0.s8 %v2395
  %v2397 = vlaneseq
  %v2398 = vshrl.u32 %v2397, 7
  %v2399 = vsub.s32 %v2396, %v2398
  %v2400 = vrot.slane %v2386, %v2399
  %v2401 = vlaneseq
  %v2402 = vshrl.u32 %v2401, 7
  %v2403 = vsub.s32 0, %v2402
  %v2404 = vrot.slane %v2393, %v2403
  %v2405 = vlaneseq
  %v2406 = vshrl.u32 %v2405, 7
  %v2407 = vsub.s32 0, %v2406
  %v2408 = vrot.slane %v2400, %v2407
  %v2411 = vadd.f32 %v2404, %v1345
  %v2412 = vadd.f32 %v2408, %v1345
  %v2413 = vsel %vm1107, %v2411, -inf
  %2414 = vmax.xlane.f32.xlu0 %v2413
  %v2415 = vpop.xlane.xlu0 %2414
  %v2416 = vsel %vm1107, %v2412, -inf
  %2417 = vmax.xlane.f32.xlu0 %v2416
  %v2418 = vpop.xlane.xlu0 %2417
  %v2419 = vsub.f32 %v2411, %v2415
  %v2420 = vsub.f32 %v2412, %v2418
  %v2421 = vmul.f32 %v2419, 1.442695
  %v2422 = vpow.pop %v2421
  %v2423 = vmul.f32 %v2420, 1.442695
  %v2424 = vpow.pop %v2423
  %v2425 = vsel %vm1107, %v2422, 0.0
  %2426 = vadd.xlane.f32.xlu0 %v2425
  %v2427 = vpop.xlane.xlu0 %2426
  %v2428 = vsel %vm1107, %v2424, 0.0
  %2429 = vadd.xlane.f32.xlu0 %v2428
  %v2430 = vpop.xlane.xlu0 %2429
  %v2431 = vlog2.pop %v2427
  %v2432 = vmul.f32 %v2431, 0.6931472
  %v2433 = vlog2.pop %v2430
  %v2434 = vmul.f32 %v2433, 0.6931472
  %v2435 = vadd.f32 %v2415, %v2432
  %v2436 = vadd.f32 %v2418, %v2434
  %v2439 = vunpack.c.l.s4 1966171168
  %v2440 = vunpack.c.0.s8 %v2439
  %v2441 = vlaneseq
  %v2442 = vshrl.u32 %v2441, 7
  %v2443 = vsub.s32 %v2440, %v2442
  %v2444 = vrot.slane %v2373, %v2443
  %v2445 = vcombine.high %v2444, %v2444
  %v2447 = vunpack.c.l.s4 1966171168
  %v2448 = vunpack.c.0.s8 %v2447
  %v2449 = vlaneseq
  %v2450 = vshrl.u32 %v2449, 7
  %v2451 = vsub.s32 %v2448, %v2450
  %v2452 = vrot.slane %v2444, %v2451
  %v2454 = vunpack.c.l.s4 1966171168
  %v2455 = vunpack.c.0.s8 %v2454
  %v2456 = vlaneseq
  %v2457 = vshrl.u32 %v2456, 7
  %v2458 = vsub.s32 %v2455, %v2457
  %v2459 = vrot.slane %v2445, %v2458
  %v2460 = vlaneseq
  %v2461 = vshrl.u32 %v2460, 7
  %v2462 = vsub.s32 0, %v2461
  %v2463 = vrot.slane %v2452, %v2462
  %v2464 = vlaneseq
  %v2465 = vshrl.u32 %v2464, 7
  %v2466 = vsub.s32 0, %v2465
  %v2467 = vrot.slane %v2459, %v2466
  %v2470 = vadd.f32 %v2463, %v1345
  %v2471 = vadd.f32 %v2467, %v1345
  %v2472 = vsel %vm1107, %v2470, -inf
  %2473 = vmax.xlane.f32.xlu0 %v2472
  %v2474 = vpop.xlane.xlu0 %2473
  %v2475 = vsel %vm1107, %v2471, -inf
  %2476 = vmax.xlane.f32.xlu0 %v2475
  %v2477 = vpop.xlane.xlu0 %2476
  %vm2478 = vcmp.eq.f32.partialorder %v2470, %v2474
  %vm2479 = vcmp.eq.f32.partialorder %v2471, %v2477
  %v2480 = vsel %vm2478, %v135, 8
  %v2481 = vsel %vm2479, %v135, 8
  %v2482 = vsel %vm1107, %v2480, 2147483647
  %v2483 = vand.u32 %v2482, 65535
  %v2484 = vshra.s32 %v2482, 16
  %v2485 = vcvt.s32.f32 %v2483
  %v2486 = vcvt.s32.f32 %v2484
  %2487 = vmin.xlane.f32.xlu0 %v2486
  %v2488 = vpop.xlane.xlu0 %2487
  %vm2489 = vcmp.eq.f32.partialorder %v2486, %v2488
  %v2490 = vsel %vm2489, %v2485, inf
  %2491 = vmin.xlane.f32.xlu0 %v2490
  %v2492 = vpop.xlane.xlu0 %2491
  %v2493 = vcvt.f32.s32 %v2492
  %v2494 = vcvt.f32.s32 %v2488
  %v2495 = vshll.u32 %v2494, 16
  %v2496 = vadd.s32 %v2495, %v2493
  %v2497 = vsel %vm1107, %v2481, 2147483647
  %v2498 = vand.u32 %v2497, 65535
  %v2499 = vshra.s32 %v2497, 16
  %v2500 = vcvt.s32.f32 %v2498
  %v2501 = vcvt.s32.f32 %v2499
  %2502 = vmin.xlane.f32.xlu0 %v2501
  %v2503 = vpop.xlane.xlu0 %2502
  %vm2504 = vcmp.eq.f32.partialorder %v2501, %v2503
  %v2505 = vsel %vm2504, %v2500, inf
  %2506 = vmin.xlane.f32.xlu0 %v2505
  %v2507 = vpop.xlane.xlu0 %2506
  %v2508 = vcvt.f32.s32 %v2507
  %v2509 = vcvt.f32.s32 %v2503
  %v2510 = vshll.u32 %v2509, 16
  %v2511 = vadd.s32 %v2510, %v2508
  %v2512 = vlaneseq
  %v2513 = vshrl.u32 %v2512, 7
  %v2514 = vsub.s32 %v135, %v2513
  %v2515 = vrot.slane %v2496, %v2514
  %v2516 = vlaneseq
  %v2517 = vshrl.u32 %v2516, 7
  %v2518 = vsub.s32 %v135, %v2517
  %v2519 = vrot.slane %v2511, %v2518
  %v2520 = vsel %vm1454, %v2519, %v2515
  %s2521 = scalar_lea.vmem %s14, 12
  %2522 = vst.msk [vmem:[%s2521] sm:$0x3] %vm1341, %v2520
  %v2524 = vlaneseq
  %v2525 = vshrl.u32 %v2524, 7
  %v2526 = vsub.s32 0, %v2525
  %v2527 = vrot.slane %v2375, %v2526
  %2529 = vbcast.lane.b32.xlu0 %v2527, 256
  %v2530 = vpop.permute.xlu0 %2529
  %v2531 = vlaneseq
  %v2532 = vshrl.u32 %v2531, 7
  %v2533 = vsub.s32 1, %v2532
  %v2534 = vrot.slane %v2375, %v2533
  %2536 = vbcast.lane.b32.xlu0 %v2534, 256
  %v2537 = vpop.permute.xlu0 %2536
  %v2540 = vadd.f32 %v2435, %v2530
  %v2541 = vadd.f32 %v2436, %v2537
  %v2542 = vsel %vm2377, 1, 0
  %2543 = vset.pattern.permute.xlu0 0
  %2544 = vperm.xlu0 %2543, %v2542
  %v2545 = vpop.permute.xlu0 %2544
  %vm2546 = vcmp.eq.s32.totalorder %v2545, 1
  %2549 = vset.pattern.permute.xlu0 0
  %2550 = vperm.xlu0 %2549, %v2540
  %v2551 = vpop.permute.xlu0 %2550
  %2552 = vset.pattern.permute.xlu0 0
  %2553 = vperm.xlu0 %2552, %v2541
  %v2554 = vpop.permute.xlu0 %2553
  %v2555 = vlaneseq
  %v2556 = vshrl.u32 %v2555, 7
  %v2557 = vsub.s32 %v135, %v2556
  %v2558 = vrot.slane %v2551, %v2557
  %v2559 = vlaneseq
  %v2560 = vshrl.u32 %v2559, 7
  %v2561 = vsub.s32 %v135, %v2560
  %v2562 = vrot.slane %v2554, %v2561
  %v2563 = vsel %vm1454, %v2562, %v2558
  %v2565 = vsel %vm2546, %v2563, %v2352
  %v2566 = vadd.f32 %v2474, %v2530
  %v2567 = vadd.f32 %v2477, %v2537
  %2570 = vset.pattern.permute.xlu0 0
  %2571 = vperm.xlu0 %2570, %v2566
  %v2572 = vpop.permute.xlu0 %2571
  %2573 = vset.pattern.permute.xlu0 0
  %2574 = vperm.xlu0 %2573, %v2567
  %v2575 = vpop.permute.xlu0 %2574
  %v2576 = vlaneseq
  %v2577 = vshrl.u32 %v2576, 7
  %v2578 = vsub.s32 %v135, %v2577
  %v2579 = vrot.slane %v2572, %v2578
  %v2580 = vlaneseq
  %v2581 = vshrl.u32 %v2580, 7
  %v2582 = vsub.s32 %v135, %v2581
  %v2583 = vrot.slane %v2575, %v2582
  %v2584 = vsel %vm1454, %v2583, %v2579
  %v2586 = vsel %vm2546, %v2584, %v2373
  %s2587 = scalar_lea.vmem [#allocation4], 14
  %v2588 = vld [vmem:[%s2587] sm:$0x3]
  %v2589 = vld [vmem:[%s150] sm:$0x3]
  %vm2590 = vcmp.gt.f32.partialorder %v2589, 0.0
  %v2593 = vunpack.c.l.s4 1966171168
  %v2594 = vunpack.c.0.s8 %v2593
  %v2595 = vlaneseq
  %v2596 = vshrl.u32 %v2595, 7
  %v2597 = vsub.s32 %v2594, %v2596
  %v2598 = vrot.slane %v2565, %v2597
  %v2599 = vcombine.high %v2598, %v2598
  %v2601 = vunpack.c.l.s4 1966171168
  %v2602 = vunpack.c.0.s8 %v2601
  %v2603 = vlaneseq
  %v2604 = vshrl.u32 %v2603, 7
  %v2605 = vsub.s32 %v2602, %v2604
  %v2606 = vrot.slane %v2598, %v2605
  %v2608 = vunpack.c.l.s4 1966171168
  %v2609 = vunpack.c.0.s8 %v2608
  %v2610 = vlaneseq
  %v2611 = vshrl.u32 %v2610, 7
  %v2612 = vsub.s32 %v2609, %v2611
  %v2613 = vrot.slane %v2599, %v2612
  %v2614 = vlaneseq
  %v2615 = vshrl.u32 %v2614, 7
  %v2616 = vsub.s32 0, %v2615
  %v2617 = vrot.slane %v2606, %v2616
  %v2618 = vlaneseq
  %v2619 = vshrl.u32 %v2618, 7
  %v2620 = vsub.s32 0, %v2619
  %v2621 = vrot.slane %v2613, %v2620
  %v2624 = vadd.f32 %v2617, %v1345
  %v2625 = vadd.f32 %v2621, %v1345
  %v2626 = vsel %vm1107, %v2624, -inf
  %2627 = vmax.xlane.f32.xlu0 %v2626
  %v2628 = vpop.xlane.xlu0 %2627
  %v2629 = vsel %vm1107, %v2625, -inf
  %2630 = vmax.xlane.f32.xlu0 %v2629
  %v2631 = vpop.xlane.xlu0 %2630
  %v2632 = vsub.f32 %v2624, %v2628
  %v2633 = vsub.f32 %v2625, %v2631
  %v2634 = vmul.f32 %v2632, 1.442695
  %v2635 = vpow.pop %v2634
  %v2636 = vmul.f32 %v2633, 1.442695
  %v2637 = vpow.pop %v2636
  %v2638 = vsel %vm1107, %v2635, 0.0
  %2639 = vadd.xlane.f32.xlu0 %v2638
  %v2640 = vpop.xlane.xlu0 %2639
  %v2641 = vsel %vm1107, %v2637, 0.0
  %2642 = vadd.xlane.f32.xlu0 %v2641
  %v2643 = vpop.xlane.xlu0 %2642
  %v2644 = vlog2.pop %v2640
  %v2645 = vmul.f32 %v2644, 0.6931472
  %v2646 = vlog2.pop %v2643
  %v2647 = vmul.f32 %v2646, 0.6931472
  %v2648 = vadd.f32 %v2628, %v2645
  %v2649 = vadd.f32 %v2631, %v2647
  %v2652 = vunpack.c.l.s4 1966171168
  %v2653 = vunpack.c.0.s8 %v2652
  %v2654 = vlaneseq
  %v2655 = vshrl.u32 %v2654, 7
  %v2656 = vsub.s32 %v2653, %v2655
  %v2657 = vrot.slane %v2586, %v2656
  %v2658 = vcombine.high %v2657, %v2657
  %v2660 = vunpack.c.l.s4 1966171168
  %v2661 = vunpack.c.0.s8 %v2660
  %v2662 = vlaneseq
  %v2663 = vshrl.u32 %v2662, 7
  %v2664 = vsub.s32 %v2661, %v2663
  %v2665 = vrot.slane %v2657, %v2664
  %v2667 = vunpack.c.l.s4 1966171168
  %v2668 = vunpack.c.0.s8 %v2667
  %v2669 = vlaneseq
  %v2670 = vshrl.u32 %v2669, 7
  %v2671 = vsub.s32 %v2668, %v2670
  %v2672 = vrot.slane %v2658, %v2671
  %v2673 = vlaneseq
  %v2674 = vshrl.u32 %v2673, 7
  %v2675 = vsub.s32 0, %v2674
  %v2676 = vrot.slane %v2665, %v2675
  %v2677 = vlaneseq
  %v2678 = vshrl.u32 %v2677, 7
  %v2679 = vsub.s32 0, %v2678
  %v2680 = vrot.slane %v2672, %v2679
  %v2683 = vadd.f32 %v2676, %v1345
  %v2684 = vadd.f32 %v2680, %v1345
  %v2685 = vsel %vm1107, %v2683, -inf
  %2686 = vmax.xlane.f32.xlu0 %v2685
  %v2687 = vpop.xlane.xlu0 %2686
  %v2688 = vsel %vm1107, %v2684, -inf
  %2689 = vmax.xlane.f32.xlu0 %v2688
  %v2690 = vpop.xlane.xlu0 %2689
  %vm2691 = vcmp.eq.f32.partialorder %v2683, %v2687
  %vm2692 = vcmp.eq.f32.partialorder %v2684, %v2690
  %v2693 = vsel %vm2691, %v135, 8
  %v2694 = vsel %vm2692, %v135, 8
  %v2695 = vsel %vm1107, %v2693, 2147483647
  %v2696 = vand.u32 %v2695, 65535
  %v2697 = vshra.s32 %v2695, 16
  %v2698 = vcvt.s32.f32 %v2696
  %v2699 = vcvt.s32.f32 %v2697
  %2700 = vmin.xlane.f32.xlu0 %v2699
  %v2701 = vpop.xlane.xlu0 %2700
  %vm2702 = vcmp.eq.f32.partialorder %v2699, %v2701
  %v2703 = vsel %vm2702, %v2698, inf
  %2704 = vmin.xlane.f32.xlu0 %v2703
  %v2705 = vpop.xlane.xlu0 %2704
  %v2706 = vcvt.f32.s32 %v2705
  %v2707 = vcvt.f32.s32 %v2701
  %v2708 = vshll.u32 %v2707, 16
  %v2709 = vadd.s32 %v2708, %v2706
  %v2710 = vsel %vm1107, %v2694, 2147483647
  %v2711 = vand.u32 %v2710, 65535
  %v2712 = vshra.s32 %v2710, 16
  %v2713 = vcvt.s32.f32 %v2711
  %v2714 = vcvt.s32.f32 %v2712
  %2715 = vmin.xlane.f32.xlu0 %v2714
  %v2716 = vpop.xlane.xlu0 %2715
  %vm2717 = vcmp.eq.f32.partialorder %v2714, %v2716
  %v2718 = vsel %vm2717, %v2713, inf
  %2719 = vmin.xlane.f32.xlu0 %v2718
  %v2720 = vpop.xlane.xlu0 %2719
  %v2721 = vcvt.f32.s32 %v2720
  %v2722 = vcvt.f32.s32 %v2716
  %v2723 = vshll.u32 %v2722, 16
  %v2724 = vadd.s32 %v2723, %v2721
  %v2725 = vlaneseq
  %v2726 = vshrl.u32 %v2725, 7
  %v2727 = vsub.s32 %v135, %v2726
  %v2728 = vrot.slane %v2709, %v2727
  %v2729 = vlaneseq
  %v2730 = vshrl.u32 %v2729, 7
  %v2731 = vsub.s32 %v135, %v2730
  %v2732 = vrot.slane %v2724, %v2731
  %v2733 = vsel %vm1454, %v2732, %v2728
  %s2734 = scalar_lea.vmem %s14, 14
  %2735 = vst.msk [vmem:[%s2734] sm:$0x3] %vm1341, %v2733
  %v2737 = vlaneseq
  %v2738 = vshrl.u32 %v2737, 7
  %v2739 = vsub.s32 0, %v2738
  %v2740 = vrot.slane %v2588, %v2739
  %2742 = vbcast.lane.b32.xlu0 %v2740, 256
  %v2743 = vpop.permute.xlu0 %2742
  %v2744 = vlaneseq
  %v2745 = vshrl.u32 %v2744, 7
  %v2746 = vsub.s32 1, %v2745
  %v2747 = vrot.slane %v2588, %v2746
  %2749 = vbcast.lane.b32.xlu0 %v2747, 256
  %v2750 = vpop.permute.xlu0 %2749
  %v2753 = vadd.f32 %v2648, %v2743
  %v2754 = vadd.f32 %v2649, %v2750
  %v2755 = vsel %vm2590, 1, 0
  %2756 = vset.pattern.permute.xlu0 0
  %2757 = vperm.xlu0 %2756, %v2755
  %v2758 = vpop.permute.xlu0 %2757
  %vm2759 = vcmp.eq.s32.totalorder %v2758, 1
  %2762 = vset.pattern.permute.xlu0 0
  %2763 = vperm.xlu0 %2762, %v2753
  %v2764 = vpop.permute.xlu0 %2763
  %2765 = vset.pattern.permute.xlu0 0
  %2766 = vperm.xlu0 %2765, %v2754
  %v2767 = vpop.permute.xlu0 %2766
  %v2768 = vlaneseq
  %v2769 = vshrl.u32 %v2768, 7
  %v2770 = vsub.s32 %v135, %v2769
  %v2771 = vrot.slane %v2764, %v2770
  %v2772 = vlaneseq
  %v2773 = vshrl.u32 %v2772, 7
  %v2774 = vsub.s32 %v135, %v2773
  %v2775 = vrot.slane %v2767, %v2774
  %v2776 = vsel %vm1454, %v2775, %v2771
  %v2778 = vsel %vm2759, %v2776, %v2565
  %v2779 = vadd.f32 %v2687, %v2743
  %v2780 = vadd.f32 %v2690, %v2750
  %2783 = vset.pattern.permute.xlu0 0
  %2784 = vperm.xlu0 %2783, %v2779
  %v2785 = vpop.permute.xlu0 %2784
  %2786 = vset.pattern.permute.xlu0 0
  %2787 = vperm.xlu0 %2786, %v2780
  %v2788 = vpop.permute.xlu0 %2787
  %v2789 = vlaneseq
  %v2790 = vshrl.u32 %v2789, 7
  %v2791 = vsub.s32 %v135, %v2790
  %v2792 = vrot.slane %v2785, %v2791
  %v2793 = vlaneseq
  %v2794 = vshrl.u32 %v2793, 7
  %v2795 = vsub.s32 %v135, %v2794
  %v2796 = vrot.slane %v2788, %v2795
  %v2797 = vsel %vm1454, %v2796, %v2792
  %v2799 = vsel %vm2759, %v2797, %v2586
  %v2800 = vadd.f32 %v2778, %v1249
  %v2801 = vsel %vm1341, %v2800, -inf
  %2802 = vmax.xlane.f32.xlu0 %v2801
  %v2803 = vpop.xlane.xlu0 %2802
  %v2804 = vsub.f32 %v2800, %v2803
  %v2805 = vmul.f32 %v2804, 1.442695
  %v2806 = vpow.pop %v2805
  %v2807 = vsel %vm1341, %v2806, 0.0
  %2808 = vadd.xlane.f32.xlu0 %v2807
  %v2809 = vpop.xlane.xlu0 %2808
  %v2810 = vlog2.pop %v2809
  %v2811 = vmul.f32 %v2810, 0.6931472
  %v2812 = vadd.f32 %v2803, %v2811
  %v2813 = vsub.f32 %v1344, %v2812
  %vm2814 = vcmask 1024
  %2815 = vst.msk [vmem:[%s13] sm:$0x3] %vm2814, %v2813
  %v2816 = vadd.f32 %v2799, %v1249
  %v2817 = vsel %vm1341, %v2816, -inf
  %2818 = vmax.xlane.f32.xlu0 %v2817
  %v2819 = vpop.xlane.xlu0 %2818
  %vm2820 = vcmp.eq.f32.partialorder %v2816, %v2819
  %v2821 = vsel %vm2820, %v135, 8
  %v2822 = vsel %vm1341, %v2821, 2147483647
  %v2823 = vand.u32 %v2822, 65535
  %v2824 = vshra.s32 %v2822, 16
  %v2825 = vcvt.s32.f32 %v2823
  %v2826 = vcvt.s32.f32 %v2824
  %2827 = vmin.xlane.f32.xlu0 %v2826
  %v2828 = vpop.xlane.xlu0 %2827
  %vm2829 = vcmp.eq.f32.partialorder %v2826, %v2828
  %v2830 = vsel %vm2829, %v2825, inf
  %2831 = vmin.xlane.f32.xlu0 %v2830
  %v2832 = vpop.xlane.xlu0 %2831
  %v2833 = vcvt.f32.s32 %v2832
  %v2834 = vcvt.f32.s32 %v2828
  %v2835 = vshll.u32 %v2834, 16
  %v2836 = vadd.s32 %v2835, %v2833
  %2837 = vst.msk [vmem:[%s15] sm:$0x3] %vm2814, %v2836
  // Predicated region
  $region54: #{tpu_custom_call.1} parent=0 // pred_check
    _
  $region55: #{tpu_custom_call.1} parent=0 // pred_check_branch
    %2839 = sbr.rel (0) target = $region57
  $region56: #{tpu_custom_call.1} parent=0 // pred_region
    _
  $region57: #{tpu_custom_call.1} parent=0 // pred_fallthru
    _
  // Predicated region
  $region58: #{tpu_custom_call.1} parent=0 // pred_check
    _
  $region59: #{tpu_custom_call.1} parent=0 // pred_check_branch
    %2841 = sbr.rel (0) target = $region61
  $region60: #{tpu_custom_call.1} parent=0 // pred_region
    _
  $region61: #{tpu_custom_call.1} parent=0 // pred_fallthru
    _
  // Predicated region
  $region62: #{tpu_custom_call.1} parent=0 // pred_check
    _
  $region63: #{tpu_custom_call.1} parent=0 // pred_check_branch
    %2843 = sbr.rel (0) target = $region65
  $region64: #{tpu_custom_call.1} parent=0 // pred_region
    _
  $region65: #{tpu_custom_call.1} parent=0 // pred_fallthru
    _
  // Predicated region
  $region66: #{tpu_custom_call.1} parent=0 // pred_check
    _
  $region67: #{tpu_custom_call.1} parent=0 // pred_check_branch
    %2845 = sbr.rel (0) target = $region69
  $region68: #{tpu_custom_call.1} parent=0 // pred_region
    _
  $region69: #{tpu_custom_call.1} parent=0 // pred_fallthru
    _
  // Predicated region
  $region70: #{tpu_custom_call.1} parent=0 // pred_check
    _
  $region71: #{tpu_custom_call.1} parent=0 // pred_check_branch
    %2847 = sbr.rel (0) target = $region73
  $region72: #{tpu_custom_call.1} parent=0 // pred_region
    _
  $region73: #{tpu_custom_call.1} parent=0 // pred_fallthru
    _
  // Predicated region
  $region74: #{tpu_custom_call.1} parent=0 // pred_check
    _
  $region75: #{tpu_custom_call.1} parent=0 // pred_check_branch
    %2849 = sbr.rel (0) target = $region77
  $region76: #{tpu_custom_call.1} parent=0 // pred_region
    _
  $region77: #{tpu_custom_call.1} parent=0 // pred_fallthru
    _

</llo_original>
